<compile_context>
chip_gen: v6e
topology: v6e:2x2x1
jax: 0.10.0
libtpu: 0.0.40
codegen_flags: <defaults>
</compile_context>

<pallas_src>
import jax
import jax.numpy as jnp
from jax.experimental import pallas as pl
from jax.experimental.pallas import tpu as pltpu


# ------------------------------ Pallas kernels ------------------------------

def _conv1x1_kernel(relu):
    """y = act(w_t @ x + shift):  x (Cin, L) bf16, w_t (Cout, Cin) bf16 (BN
    scale folded), shift (Cout, 1) f32.  MXU matmul with f32 accumulation,
    bias/ReLU in f32, cast only at the final store."""
    def kernel(x_ref, w_ref, b_ref, o_ref):
        x = x_ref[0]                                      # (Cin, L_blk) bf16
        y = jnp.dot(w_ref[...], x,
                    preferred_element_type=jnp.float32)   # (Cout, L_blk) f32
        y = y + b_ref[...]                                # (Cout, 1) broadcast
        if relu:
            y = jnp.maximum(y, 0.0)
        o_ref[0] = y.astype(o_ref.dtype)
    return kernel


def _pick_lane_block(L, lane_block_max):
    # Lane-dense tiles: full extent when small / non-128-multiple, otherwise a
    # fixed big block with pl.cdiv + tail masking (never degrades to 128).
    if L % 128 == 0:
        return min(L, lane_block_max)
    return L


def conv1x1(x, w_t, shift, *, relu, out_dtype=jnp.bfloat16, lane_block_max=2048):
    """Fused 1x1 conv (+ folded BN + optional ReLU) on x of shape (B, Cin, L).

    Returns (B, Cout, L) in `out_dtype`.  Grid is (B, ceil(L/blk)); weight and
    shift stay VMEM-resident across all steps.
    """
    B, Cin, L = x.shape
    Cout = w_t.shape[0]
    blk = _pick_lane_block(L, lane_block_max)
    grid = (B, pl.cdiv(L, blk))
    return pl.pallas_call(
        _conv1x1_kernel(relu),
        out_shape=jax.ShapeDtypeStruct((B, Cout, L), out_dtype),
        grid_spec=pltpu.PrefetchScalarGridSpec(
            num_scalar_prefetch=0,
            grid=grid,
            in_specs=[pl.BlockSpec((1, Cin, blk), lambda b, j: (b, 0, j)),
                      pl.BlockSpec((Cout, Cin), lambda b, j: (0, 0)),
                      pl.BlockSpec((Cout, 1), lambda b, j: (0, 0))],
            out_specs=pl.BlockSpec((1, Cout, blk), lambda b, j: (b, 0, j))),
        compiler_params=pltpu.CompilerParams(
            dimension_semantics=("parallel", "parallel")),
    )(x, w_t, shift)


def _ffc_main_kernel(xl_ref, xg_ref, x3_ref, fu_ref, xs_ref,
                     wll_ref, wgl_ref, wlg_ref, w2_ref, bl_ref, bg_ref,
                     ol_ref, og_ref):
    """Fused outer FFC step (+ conv2 of SpectralTransform), two outputs:

      out_l = relu( W_ll @ x_l + W_gl @ x_g + b_l )          (bn_l folded)
      out_g = relu( W_lg @ x_l + W_2 @ (x3 + fu + xs) + b_g ) (bn_g folded,
                                                               incl. into W_2)
    All adds / bias / ReLU in f32; bf16 only at the MXU inputs and never as a
    separate HBM pass.
    """
    f32 = jnp.float32
    xl = xl_ref[0]                                        # (in_cl, blk) bf16
    xg = xg_ref[0]                                        # (in_cg, blk) bf16
    # conv2 input of SpectralTransform, summed in-kernel (no XLA add pass).
    t = (x3_ref[0].astype(f32) + fu_ref[0].astype(f32)
         + xs_ref[0].astype(f32)).astype(jnp.bfloat16)    # (c, blk) bf16

    yl = jnp.dot(wll_ref[...], xl, preferred_element_type=f32)
    yl = yl + jnp.dot(wgl_ref[...], xg, preferred_element_type=f32)
    yl = jnp.maximum(yl + bl_ref[...], 0.0)

    yg = jnp.dot(wlg_ref[...], xl, preferred_element_type=f32)
    yg = yg + jnp.dot(w2_ref[...], t, preferred_element_type=f32)
    yg = jnp.maximum(yg + bg_ref[...], 0.0)

    ol_ref[0] = yl.astype(ol_ref.dtype)
    og_ref[0] = yg.astype(og_ref.dtype)


def ffc_main(xl, xg, x3, fu, xs, p, *, out_dtype=jnp.float32, lane_block_max=2048):
    """One pallas_call producing both (out_l, out_g); see _ffc_main_kernel."""
    N, in_cl, HW = xl.shape
    in_cg = xg.shape[1]
    c = x3.shape[1]
    out_cl = p['w_ll'].shape[0]
    out_cg = p['w_lg'].shape[0]
    blk = _pick_lane_block(HW, lane_block_max)
    grid = (N, pl.cdiv(HW, blk))

    def act_spec(C):
        return pl.BlockSpec((1, C, blk), lambda n, j: (n, 0, j))

    def w_spec(Co, Ci):
        return pl.BlockSpec((Co, Ci), lambda n, j: (0, 0))

    return pl.pallas_call(
        _ffc_main_kernel,
        out_shape=(jax.ShapeDtypeStruct((N, out_cl, HW), out_dtype),
                   jax.ShapeDtypeStruct((N, out_cg, HW), out_dtype)),
        grid_spec=pltpu.PrefetchScalarGridSpec(
            num_scalar_prefetch=0,
            grid=grid,
            in_specs=[act_spec(in_cl), act_spec(in_cg),
                      act_spec(c), act_spec(c), act_spec(c),
                      w_spec(out_cl, in_cl), w_spec(out_cl, in_cg),
                      w_spec(out_cg, in_cl), w_spec(out_cg, c),
                      pl.BlockSpec((out_cl, 1), lambda n, j: (0, 0)),
                      pl.BlockSpec((out_cg, 1), lambda n, j: (0, 0))],
            out_specs=(pl.BlockSpec((1, out_cl, blk), lambda n, j: (n, 0, j)),
                       pl.BlockSpec((1, out_cg, blk), lambda n, j: (n, 0, j)))),
        compiler_params=pltpu.CompilerParams(
            dimension_semantics=("parallel", "parallel")),
    )(xl, xg, x3, fu, xs,
      p['w_ll'], p['w_gl'], p['w_lg'], p['w_2'], p['b_l'], p['b_g'])


# --------------------------- module forward logic ---------------------------

def fourier_unit(x4, w_t, shift):
    """FourierUnit.forward (no scaling / pos-enc / SE, fft_norm='ortho').

    The conv(+BN+ReLU) on the spectral plane is one lane-dense Pallas matmul
    with the batch folded onto the lane axis (lanes = N*H*Wf)."""
    # TODO(synk): rfft2/irfft2 have no Pallas equivalent; they stay in jnp.fft.
    N, C, H, W = x4.shape
    f = jnp.fft.rfft2(x4, norm='ortho')                    # (N, C, H, Wf) c64
    Wf = f.shape[-1]
    L = N * H * Wf
    # channel interleave [c0_re, c0_im, c1_re, ...] with batch on the lane axis
    fr = jnp.stack([jnp.real(f), jnp.imag(f)], axis=2)     # (N, C, 2, H, Wf)
    fr = jnp.transpose(fr, (1, 2, 0, 3, 4)).reshape(1, 2 * C, L)
    y = conv1x1(fr.astype(jnp.bfloat16), w_t, shift,
                relu=True, out_dtype=jnp.float32)          # (1, 2*Co, L) f32
    Co = y.shape[1] // 2
    y = y.reshape(Co, 2, N, H, Wf)
    yc = jax.lax.complex(y[:, 0], y[:, 1])                 # (Co, N, H, Wf)
    out = jnp.fft.irfft2(yc, s=(H, W), norm='ortho')       # (Co, N, H, W) f32
    return jnp.transpose(out, (1, 0, 2, 3))                # (N, Co, H, W)


def ffc_bn_act_forward(x_l, x_g, p):
    """FFC_BN_ACT.forward for the config documented in the header."""
    N, in_cl, H, W = x_l.shape
    in_cg = x_g.shape[1]
    HW = H * W
    xl_b = x_l.reshape(N, in_cl, HW).astype(jnp.bfloat16)
    xg_b = x_g.reshape(N, in_cg, HW).astype(jnp.bfloat16)

    # ---- SpectralTransform(x_g), stride=1 (identity downsample), LFU on ----
    # conv1 + BN + ReLU
    x3 = conv1x1(xg_b, p['conv1_wt'], p['conv1_b'], relu=True)   # (N,c,HW) bf16
    c = x3.shape[1]
    x4 = x3.reshape(N, c, H, W).astype(jnp.float32)

    # main FourierUnit
    fu = fourier_unit(x4, p['fu_wt'], p['fu_b'])                 # (N,c,H,W) f32

    # LFU: 2x2 spatial quadrants stacked on channels -> FourierUnit -> tile
    xs = x4[:, :c // 4]
    xs = jnp.concatenate(jnp.split(xs, 2, axis=2), axis=1)
    xs = jnp.concatenate(jnp.split(xs, 2, axis=3), axis=1)       # (N,c,H/2,W/2)
    xs = fourier_unit(xs, p['lfu_wt'], p['lfu_b'])
    xs = jnp.tile(xs, (1, 1, 2, 2))                              # (N,c,H,W) f32

    # ---- fused: conv2(x3+fu+xs), outer l2l/g2l/l2g, bn_l/bn_g, ReLU ----
    out_l, out_g = ffc_main(xl_b, xg_b, x3,
                            fu.reshape(N, c, HW), xs.reshape(N, c, HW), p)
    out_cl = out_l.shape[1]
    out_cg = out_g.shape[1]
    return (out_l.reshape(N, out_cl, H, W), out_g.reshape(N, out_cg, H, W))


# ----------------------- deterministic parameter init -----------------------

def init_conv_w(key, cin, cout):
    # (Cin, Cout) matmul layout of a PyTorch (Cout, Cin, 1, 1) 1x1-conv weight.
    return jax.random.normal(key, (cin, cout), jnp.float32) * (2.0 / cin) ** 0.5


def init_bn(key, c, eps=1e-5):
    # Inference-mode BatchNorm2d folded to per-channel scale / shift.
    k1, k2, k3, k4 = jax.random.split(key, 4)
    gamma = jax.random.uniform(k1, (c,), jnp.float32, 0.5, 1.5)
    beta = jax.random.normal(k2, (c,), jnp.float32) * 0.1
    mean = jax.random.normal(k3, (c,), jnp.float32) * 0.1
    var = jax.random.uniform(k4, (c,), jnp.float32, 0.5, 1.5)
    scale = gamma / jnp.sqrt(var + eps)
    shift = beta - mean * scale
    return scale, shift


def prepare_params(raw):
    """One-time prep: fold BN scales into transposed bf16 weights (bn_g's scale
    is folded into conv2 so no residual rescale is needed in-kernel); lay out
    per-channel shifts as (C, 1) f32 columns.  Only arrays in the dict — all
    static config is derived from shapes at trace time."""
    def fold(w, scale=None):                 # (Cin, Cout) f32 -> (Cout, Cin) bf16
        if scale is not None:
            w = w * scale[None, :]
        return jnp.asarray(w.T, jnp.bfloat16)

    def col(v):
        return jnp.asarray(v, jnp.float32).reshape(-1, 1)

    p = {}
    # SpectralTransform
    p['conv1_wt'] = fold(raw['conv1_w'], raw['conv1_s'])
    p['conv1_b'] = col(raw['conv1_b'])
    p['fu_wt'] = fold(raw['fu_w'], raw['fu_s'])
    p['fu_b'] = col(raw['fu_b'])
    p['lfu_wt'] = fold(raw['lfu_w'], raw['lfu_s'])
    p['lfu_b'] = col(raw['lfu_b'])
    # outer FFC convs with bn_l / bn_g scales folded; conv2 carries bn_g scale
    p['w_ll'] = fold(raw['w_l2l'], raw['bnl_s'])
    p['w_gl'] = fold(raw['w_g2l'], raw['bnl_s'])
    p['w_lg'] = fold(raw['w_l2g'], raw['bng_s'])
    p['w_2'] = fold(raw['conv2_w'], raw['bng_s'])
    p['b_l'] = col(raw['bnl_b'])
    p['b_g'] = col(raw['bng_b'])
    return p


if __name__ == "__main__":
    N, H, W = 2, 16, 16
    in_ch, out_ch = 16, 32
    ratio_gin = ratio_gout = 0.5
    in_cg = int(in_ch * ratio_gin); in_cl = in_ch - in_cg         # 8, 8
    out_cg = int(out_ch * ratio_gout); out_cl = out_ch - out_cg   # 16, 16
    cg_half = out_cg // 2                                         # 8

    key = jax.random.PRNGKey(0)
    keys = jax.random.split(key, 16)
    raw = {}
    # FFC 1x1 convs
    raw['w_l2l'] = init_conv_w(keys[0], in_cl, out_cl)
    raw['w_g2l'] = init_conv_w(keys[1], in_cg, out_cl)
    raw['w_l2g'] = init_conv_w(keys[2], in_cl, out_cg)
    # SpectralTransform(in_cg, out_cg, stride=1, groups=1, enable_lfu=True)
    raw['conv1_w'] = init_conv_w(keys[3], in_cg, cg_half)
    raw['conv1_s'], raw['conv1_b'] = init_bn(keys[4], cg_half)
    raw['fu_w'] = init_conv_w(keys[5], 2 * cg_half, 2 * cg_half)
    raw['fu_s'], raw['fu_b'] = init_bn(keys[6], 2 * cg_half)
    raw['lfu_w'] = init_conv_w(keys[7], 2 * cg_half, 2 * cg_half)
    raw['lfu_s'], raw['lfu_b'] = init_bn(keys[8], 2 * cg_half)
    raw['conv2_w'] = init_conv_w(keys[9], cg_half, out_cg)
    # outer bn_l / bn_g (inference-mode, folded)
    raw['bnl_s'], raw['bnl_b'] = init_bn(keys[10], out_cl)
    raw['bng_s'], raw['bng_b'] = init_bn(keys[11], out_cg)

    p = prepare_params(raw)

    x_l = jax.random.normal(keys[12], (N, in_cl, H, W), jnp.float32)
    x_g = jax.random.normal(keys[13], (N, in_cg, H, W), jnp.float32)

    fwd = jax.jit(ffc_bn_act_forward)
    out_l, out_g = fwd(x_l, x_g, p)
    jax.block_until_ready((out_l, out_g))
    assert out_l.shape == (N, out_cl, H, W), out_l.shape
    assert out_g.shape == (N, out_cg, H, W), out_g.shape
    assert jnp.all(jnp.isfinite(out_l)) and jnp.all(jnp.isfinite(out_g))
    print("KERNEL_OK")
</pallas_src>

<mosaic_0001>
module attributes {stable_mosaic.version = 11 : i64} {
  func.func @kernel(%arg0: i32, %arg1: i32, %arg2: memref<1x8x256xbf16, #tpu.memory_space<vmem>>, %arg3: memref<8x8xbf16, #tpu.memory_space<vmem>>, %arg4: memref<8x1xf32, #tpu.memory_space<vmem>>, %arg5: memref<1x8x256xbf16, #tpu.memory_space<vmem>>) attributes {dimension_semantics = [#tpu.dimension_semantics<parallel>, #tpu.dimension_semantics<parallel>], iteration_bounds = array<i64: 2, 1>, scalar_prefetch = 0 : i64, scratch_operands = 0 : i64, tpu.core_type = #tpu.core_type<tc>, window_params = [{transform_indices = @transform_0, window_bounds = array<i64: 1, 8, 256>}, {pipeline_mode = #tpu.pipeline_mode<synchronous>, transform_indices = @transform_1, window_bounds = array<i64: 8, 8>}, {pipeline_mode = #tpu.pipeline_mode<synchronous>, transform_indices = @transform_2, window_bounds = array<i64: 8, 1>}, {transform_indices = @transform_3, window_bounds = array<i64: 1, 8, 256>}]} {
    %c0 = arith.constant 0 : index
    %c0_0 = arith.constant 0 : index
    %c0_1 = arith.constant 0 : index
    %0 = vector.load %arg2[%c0, %c0_0, %c0_1] : memref<1x8x256xbf16, #tpu.memory_space<vmem>>, vector<1x8x256xbf16>
    %1 = vector.shape_cast %0 : vector<1x8x256xbf16> to vector<8x256xbf16>
    %c0_2 = arith.constant 0 : index
    %c0_3 = arith.constant 0 : index
    %2 = vector.load %arg3[%c0_2, %c0_3] : memref<8x8xbf16, #tpu.memory_space<vmem>>, vector<8x8xbf16>
    %cst = arith.constant dense<0.000000e+00> : vector<8x256xf32>
    %3 = tpu.matmul %2, %1, %cst {dimension_numbers = #tpu.dot_dimension_numbers<[1], [0], [0], [1], [0, 0, 1, 1], [], []>} : vector<8x8xbf16>, vector<8x256xbf16>, vector<8x256xf32> -> vector<8x256xf32>
    %c0_4 = arith.constant 0 : index
    %c0_5 = arith.constant 0 : index
    %4 = vector.load %arg4[%c0_4, %c0_5] : memref<8x1xf32, #tpu.memory_space<vmem>>, vector<8x1xf32>
    %5 = vector.broadcast %4 : vector<8x1xf32> to vector<8x256xf32>
    %6 = arith.addf %3, %5 : vector<8x256xf32>
    %cst_6 = arith.constant 0.000000e+00 : f32
    %7 = vector.broadcast %cst_6 : f32 to vector<8x256xf32>
    %8 = arith.maximumf %6, %7 : vector<8x256xf32>
    %9 = arith.truncf %8 : vector<8x256xf32> to vector<8x256xbf16>
    %c0_7 = arith.constant 0 : index
    %c0_8 = arith.constant 0 : index
    %c0_9 = arith.constant 0 : index
    %10 = vector.load %arg5[%c0_7, %c0_8, %c0_9] : memref<1x8x256xbf16, #tpu.memory_space<vmem>>, vector<1x8x256xbf16>
    %11 = vector.shape_cast %10 : vector<1x8x256xbf16> to vector<8x256xbf16>
    %12 = vector.shape_cast %9 : vector<8x256xbf16> to vector<1x8x256xbf16>
    tpu.vector_store %arg5[%c0_7, %c0_8, %c0_9], %12 {strides = array<i32>} : memref<1x8x256xbf16, #tpu.memory_space<vmem>>, vector<1x8x256xbf16>,
    return
  }
  func.func @transform_0(%arg0: i32, %arg1: i32) -> (i32, i32, i32) {
    %c0_i32 = arith.constant 0 : i32
    %c0_i32_0 = arith.constant 0 : i32
    return %arg0, %c0_i32, %arg1 : i32, i32, i32
  }
  func.func @transform_1(%arg0: i32, %arg1: i32) -> (i32, i32) {
    %c0_i32 = arith.constant 0 : i32
    %c0_i32_0 = arith.constant 0 : i32
    %c0_i32_1 = arith.constant 0 : i32
    return %c0_i32, %c0_i32_0 : i32, i32
  }
  func.func @transform_2(%arg0: i32, %arg1: i32) -> (i32, i32) {
    %c0_i32 = arith.constant 0 : i32
    %c0_i32_0 = arith.constant 0 : i32
    %c0_i32_1 = arith.constant 0 : i32
    return %c0_i32, %c0_i32_0 : i32, i32
  }
  func.func @transform_3(%arg0: i32, %arg1: i32) -> (i32, i32, i32) {
    %c0_i32 = arith.constant 0 : i32
    %c0_i32_0 = arith.constant 0 : i32
    return %arg0, %c0_i32, %arg1 : i32, i32, i32
  }
}

module attributes {stable_mosaic.version = 11 : i64} {
  func.func @kernel(%arg0: i32, %arg1: i32, %arg2: memref<1x16x80xbf16, #tpu.memory_space<vmem>>, %arg3: memref<16x16xbf16, #tpu.memory_space<vmem>>, %arg4: memref<16x1xf32, #tpu.memory_space<vmem>>, %arg5: memref<1x16x80xf32, #tpu.memory_space<vmem>>) attributes {dimension_semantics = [#tpu.dimension_semantics<parallel>, #tpu.dimension_semantics<parallel>], iteration_bounds = array<i64: 1, 1>, scalar_prefetch = 0 : i64, scratch_operands = 0 : i64, tpu.core_type = #tpu.core_type<tc>, window_params = [{transform_indices = @transform_0, window_bounds = array<i64: 1, 16, 80>}, {pipeline_mode = #tpu.pipeline_mode<synchronous>, transform_indices = @transform_1, window_bounds = array<i64: 16, 16>}, {pipeline_mode = #tpu.pipeline_mode<synchronous>, transform_indices = @transform_2, window_bounds = array<i64: 16, 1>}, {transform_indices = @transform_3, window_bounds = array<i64: 1, 16, 80>}]} {
    %c0 = arith.constant 0 : index
    %c0_0 = arith.constant 0 : index
    %c0_1 = arith.constant 0 : index
    %0 = vector.load %arg2[%c0, %c0_0, %c0_1] : memref<1x16x80xbf16, #tpu.memory_space<vmem>>, vector<1x16x80xbf16>
    %1 = vector.shape_cast %0 : vector<1x16x80xbf16> to vector<16x80xbf16>
    %c0_2 = arith.constant 0 : index
    %c0_3 = arith.constant 0 : index
    %2 = vector.load %arg3[%c0_2, %c0_3] : memref<16x16xbf16, #tpu.memory_space<vmem>>, vector<16x16xbf16>
    %cst = arith.constant dense<0.000000e+00> : vector<16x80xf32>
    %3 = tpu.matmul %2, %1, %cst {dimension_numbers = #tpu.dot_dimension_numbers<[1], [0], [0], [1], [0, 0, 1, 1], [], []>} : vector<16x16xbf16>, vector<16x80xbf16>, vector<16x80xf32> -> vector<16x80xf32>
    %c0_4 = arith.constant 0 : index
    %c0_5 = arith.constant 0 : index
    %4 = vector.load %arg4[%c0_4, %c0_5] : memref<16x1xf32, #tpu.memory_space<vmem>>, vector<16x1xf32>
    %5 = vector.broadcast %4 : vector<16x1xf32> to vector<16x80xf32>
    %6 = arith.addf %3, %5 : vector<16x80xf32>
    %cst_6 = arith.constant 0.000000e+00 : f32
    %7 = vector.broadcast %cst_6 : f32 to vector<16x80xf32>
    %8 = arith.maximumf %6, %7 : vector<16x80xf32>
    %c0_7 = arith.constant 0 : index
    %c0_8 = arith.constant 0 : index
    %c0_9 = arith.constant 0 : index
    %9 = vector.load %arg5[%c0_7, %c0_8, %c0_9] : memref<1x16x80xf32, #tpu.memory_space<vmem>>, vector<1x16x80xf32>
    %10 = vector.shape_cast %9 : vector<1x16x80xf32> to vector<16x80xf32>
    %11 = vector.shape_cast %8 : vector<16x80xf32> to vector<1x16x80xf32>
    tpu.vector_store %arg5[%c0_7, %c0_8, %c0_9], %11 {strides = array<i32>} : memref<1x16x80xf32, #tpu.memory_space<vmem>>, vector<1x16x80xf32>,
    return
  }
  func.func @transform_0(%arg0: i32, %arg1: i32) -> (i32, i32, i32) {
    %c0_i32 = arith.constant 0 : i32
    %c0_i32_0 = arith.constant 0 : i32
    return %arg0, %c0_i32, %arg1 : i32, i32, i32
  }
  func.func @transform_1(%arg0: i32, %arg1: i32) -> (i32, i32) {
    %c0_i32 = arith.constant 0 : i32
    %c0_i32_0 = arith.constant 0 : i32
    %c0_i32_1 = arith.constant 0 : i32
    return %c0_i32, %c0_i32_0 : i32, i32
  }
  func.func @transform_2(%arg0: i32, %arg1: i32) -> (i32, i32) {
    %c0_i32 = arith.constant 0 : i32
    %c0_i32_0 = arith.constant 0 : i32
    %c0_i32_1 = arith.constant 0 : i32
    return %c0_i32, %c0_i32_0 : i32, i32
  }
  func.func @transform_3(%arg0: i32, %arg1: i32) -> (i32, i32, i32) {
    %c0_i32 = arith.constant 0 : i32
    %c0_i32_0 = arith.constant 0 : i32
    return %arg0, %c0_i32, %arg1 : i32, i32, i32
  }
}

module attributes {stable_mosaic.version = 11 : i64} {
  func.func @kernel(%arg0: i32, %arg1: i32, %arg2: memref<1x16x288xbf16, #tpu.memory_space<vmem>>, %arg3: memref<16x16xbf16, #tpu.memory_space<vmem>>, %arg4: memref<16x1xf32, #tpu.memory_space<vmem>>, %arg5: memref<1x16x288xf32, #tpu.memory_space<vmem>>) attributes {dimension_semantics = [#tpu.dimension_semantics<parallel>, #tpu.dimension_semantics<parallel>], iteration_bounds = array<i64: 1, 1>, scalar_prefetch = 0 : i64, scratch_operands = 0 : i64, tpu.core_type = #tpu.core_type<tc>, window_params = [{transform_indices = @transform_0, window_bounds = array<i64: 1, 16, 288>}, {pipeline_mode = #tpu.pipeline_mode<synchronous>, transform_indices = @transform_1, window_bounds = array<i64: 16, 16>}, {pipeline_mode = #tpu.pipeline_mode<synchronous>, transform_indices = @transform_2, window_bounds = array<i64: 16, 1>}, {transform_indices = @transform_3, window_bounds = array<i64: 1, 16, 288>}]} {
    %c0 = arith.constant 0 : index
    %c0_0 = arith.constant 0 : index
    %c0_1 = arith.constant 0 : index
    %0 = vector.load %arg2[%c0, %c0_0, %c0_1] : memref<1x16x288xbf16, #tpu.memory_space<vmem>>, vector<1x16x288xbf16>
    %1 = vector.shape_cast %0 : vector<1x16x288xbf16> to vector<16x288xbf16>
    %c0_2 = arith.constant 0 : index
    %c0_3 = arith.constant 0 : index
    %2 = vector.load %arg3[%c0_2, %c0_3] : memref<16x16xbf16, #tpu.memory_space<vmem>>, vector<16x16xbf16>
    %cst = arith.constant dense<0.000000e+00> : vector<16x288xf32>
    %3 = tpu.matmul %2, %1, %cst {dimension_numbers = #tpu.dot_dimension_numbers<[1], [0], [0], [1], [0, 0, 1, 1], [], []>} : vector<16x16xbf16>, vector<16x288xbf16>, vector<16x288xf32> -> vector<16x288xf32>
    %c0_4 = arith.constant 0 : index
    %c0_5 = arith.constant 0 : index
    %4 = vector.load %arg4[%c0_4, %c0_5] : memref<16x1xf32, #tpu.memory_space<vmem>>, vector<16x1xf32>
    %5 = vector.broadcast %4 : vector<16x1xf32> to vector<16x288xf32>
    %6 = arith.addf %3, %5 : vector<16x288xf32>
    %cst_6 = arith.constant 0.000000e+00 : f32
    %7 = vector.broadcast %cst_6 : f32 to vector<16x288xf32>
    %8 = arith.maximumf %6, %7 : vector<16x288xf32>
    %c0_7 = arith.constant 0 : index
    %c0_8 = arith.constant 0 : index
    %c0_9 = arith.constant 0 : index
    %9 = vector.load %arg5[%c0_7, %c0_8, %c0_9] : memref<1x16x288xf32, #tpu.memory_space<vmem>>, vector<1x16x288xf32>
    %10 = vector.shape_cast %9 : vector<1x16x288xf32> to vector<16x288xf32>
    %11 = vector.shape_cast %8 : vector<16x288xf32> to vector<1x16x288xf32>
    tpu.vector_store %arg5[%c0_7, %c0_8, %c0_9], %11 {strides = array<i32>} : memref<1x16x288xf32, #tpu.memory_space<vmem>>, vector<1x16x288xf32>,
    return
  }
  func.func @transform_0(%arg0: i32, %arg1: i32) -> (i32, i32, i32) {
    %c0_i32 = arith.constant 0 : i32
    %c0_i32_0 = arith.constant 0 : i32
    return %arg0, %c0_i32, %arg1 : i32, i32, i32
  }
  func.func @transform_1(%arg0: i32, %arg1: i32) -> (i32, i32) {
    %c0_i32 = arith.constant 0 : i32
    %c0_i32_0 = arith.constant 0 : i32
    %c0_i32_1 = arith.constant 0 : i32
    return %c0_i32, %c0_i32_0 : i32, i32
  }
  func.func @transform_2(%arg0: i32, %arg1: i32) -> (i32, i32) {
    %c0_i32 = arith.constant 0 : i32
    %c0_i32_0 = arith.constant 0 : i32
    %c0_i32_1 = arith.constant 0 : i32
    return %c0_i32, %c0_i32_0 : i32, i32
  }
  func.func @transform_3(%arg0: i32, %arg1: i32) -> (i32, i32, i32) {
    %c0_i32 = arith.constant 0 : i32
    %c0_i32_0 = arith.constant 0 : i32
    return %arg0, %c0_i32, %arg1 : i32, i32, i32
  }
}

module attributes {stable_mosaic.version = 11 : i64} {
  func.func @_ffc_main_kernel(%arg0: i32, %arg1: i32, %arg2: memref<1x8x256xbf16, #tpu.memory_space<vmem>>, %arg3: memref<1x8x256xbf16, #tpu.memory_space<vmem>>, %arg4: memref<1x8x256xbf16, #tpu.memory_space<vmem>>, %arg5: memref<1x8x256xf32, #tpu.memory_space<vmem>>, %arg6: memref<1x8x256xf32, #tpu.memory_space<vmem>>, %arg7: memref<16x8xbf16, #tpu.memory_space<vmem>>, %arg8: memref<16x8xbf16, #tpu.memory_space<vmem>>, %arg9: memref<16x8xbf16, #tpu.memory_space<vmem>>, %arg10: memref<16x8xbf16, #tpu.memory_space<vmem>>, %arg11: memref<16x1xf32, #tpu.memory_space<vmem>>, %arg12: memref<16x1xf32, #tpu.memory_space<vmem>>, %arg13: memref<1x16x256xf32, #tpu.memory_space<vmem>>, %arg14: memref<1x16x256xf32, #tpu.memory_space<vmem>>) attributes {dimension_semantics = [#tpu.dimension_semantics<parallel>, #tpu.dimension_semantics<parallel>], iteration_bounds = array<i64: 2, 1>, scalar_prefetch = 0 : i64, scratch_operands = 0 : i64, tpu.core_type = #tpu.core_type<tc>, window_params = [{transform_indices = @transform_0, window_bounds = array<i64: 1, 8, 256>}, {transform_indices = @transform_1, window_bounds = array<i64: 1, 8, 256>}, {transform_indices = @transform_2, window_bounds = array<i64: 1, 8, 256>}, {transform_indices = @transform_3, window_bounds = array<i64: 1, 8, 256>}, {transform_indices = @transform_4, window_bounds = array<i64: 1, 8, 256>}, {pipeline_mode = #tpu.pipeline_mode<synchronous>, transform_indices = @transform_5, window_bounds = array<i64: 16, 8>}, {pipeline_mode = #tpu.pipeline_mode<synchronous>, transform_indices = @transform_6, window_bounds = array<i64: 16, 8>}, {pipeline_mode = #tpu.pipeline_mode<synchronous>, transform_indices = @transform_7, window_bounds = array<i64: 16, 8>}, {pipeline_mode = #tpu.pipeline_mode<synchronous>, transform_indices = @transform_8, window_bounds = array<i64: 16, 8>}, {pipeline_mode = #tpu.pipeline_mode<synchronous>, transform_indices = @transform_9, window_bounds = array<i64: 16, 1>}, {pipeline_mode = #tpu.pipeline_mode<synchronous>, transform_indices = @transform_10, window_bounds = array<i64: 16, 1>}, {transform_indices = @transform_11, window_bounds = array<i64: 1, 16, 256>}, {transform_indices = @transform_12, window_bounds = array<i64: 1, 16, 256>}]} {
    %c0 = arith.constant 0 : index
    %c0_0 = arith.constant 0 : index
    %c0_1 = arith.constant 0 : index
    %0 = vector.load %arg2[%c0, %c0_0, %c0_1] : memref<1x8x256xbf16, #tpu.memory_space<vmem>>, vector<1x8x256xbf16>
    %1 = vector.shape_cast %0 : vector<1x8x256xbf16> to vector<8x256xbf16>
    %c0_2 = arith.constant 0 : index
    %c0_3 = arith.constant 0 : index
    %c0_4 = arith.constant 0 : index
    %2 = vector.load %arg3[%c0_2, %c0_3, %c0_4] : memref<1x8x256xbf16, #tpu.memory_space<vmem>>, vector<1x8x256xbf16>
    %3 = vector.shape_cast %2 : vector<1x8x256xbf16> to vector<8x256xbf16>
    %c0_5 = arith.constant 0 : index
    %c0_6 = arith.constant 0 : index
    %c0_7 = arith.constant 0 : index
    %4 = vector.load %arg4[%c0_5, %c0_6, %c0_7] : memref<1x8x256xbf16, #tpu.memory_space<vmem>>, vector<1x8x256xbf16>
    %5 = vector.shape_cast %4 : vector<1x8x256xbf16> to vector<8x256xbf16>
    %6 = arith.extf %5 : vector<8x256xbf16> to vector<8x256xf32>
    %c0_8 = arith.constant 0 : index
    %c0_9 = arith.constant 0 : index
    %c0_10 = arith.constant 0 : index
    %7 = vector.load %arg5[%c0_8, %c0_9, %c0_10] : memref<1x8x256xf32, #tpu.memory_space<vmem>>, vector<1x8x256xf32>
    %8 = vector.shape_cast %7 : vector<1x8x256xf32> to vector<8x256xf32>
    %9 = arith.addf %6, %8 : vector<8x256xf32>
    %c0_11 = arith.constant 0 : index
    %c0_12 = arith.constant 0 : index
    %c0_13 = arith.constant 0 : index
    %10 = vector.load %arg6[%c0_11, %c0_12, %c0_13] : memref<1x8x256xf32, #tpu.memory_space<vmem>>, vector<1x8x256xf32>
    %11 = vector.shape_cast %10 : vector<1x8x256xf32> to vector<8x256xf32>
    %12 = arith.addf %9, %11 : vector<8x256xf32>
    %13 = arith.truncf %12 : vector<8x256xf32> to vector<8x256xbf16>
    %c0_14 = arith.constant 0 : index
    %c0_15 = arith.constant 0 : index
    %14 = vector.load %arg7[%c0_14, %c0_15] : memref<16x8xbf16, #tpu.memory_space<vmem>>, vector<16x8xbf16>
    %cst = arith.constant dense<0.000000e+00> : vector<16x256xf32>
    %15 = tpu.matmul %14, %1, %cst {dimension_numbers = #tpu.dot_dimension_numbers<[1], [0], [0], [1], [0, 0, 1, 1], [], []>} : vector<16x8xbf16>, vector<8x256xbf16>, vector<16x256xf32> -> vector<16x256xf32>
    %c0_16 = arith.constant 0 : index
    %c0_17 = arith.constant 0 : index
    %16 = vector.load %arg8[%c0_16, %c0_17] : memref<16x8xbf16, #tpu.memory_space<vmem>>, vector<16x8xbf16>
    %cst_18 = arith.constant dense<0.000000e+00> : vector<16x256xf32>
    %17 = tpu.matmul %16, %3, %cst_18 {dimension_numbers = #tpu.dot_dimension_numbers<[1], [0], [0], [1], [0, 0, 1, 1], [], []>} : vector<16x8xbf16>, vector<8x256xbf16>, vector<16x256xf32> -> vector<16x256xf32>
    %18 = arith.addf %15, %17 : vector<16x256xf32>
    %c0_19 = arith.constant 0 : index
    %c0_20 = arith.constant 0 : index
    %19 = vector.load %arg11[%c0_19, %c0_20] : memref<16x1xf32, #tpu.memory_space<vmem>>, vector<16x1xf32>
    %20 = vector.broadcast %19 : vector<16x1xf32> to vector<16x256xf32>
    %21 = arith.addf %18, %20 : vector<16x256xf32>
    %cst_21 = arith.constant 0.000000e+00 : f32
    %22 = vector.broadcast %cst_21 : f32 to vector<16x256xf32>
    %23 = arith.maximumf %21, %22 : vector<16x256xf32>
    %c0_22 = arith.constant 0 : index
    %c0_23 = arith.constant 0 : index
    %24 = vector.load %arg9[%c0_22, %c0_23] : memref<16x8xbf16, #tpu.memory_space<vmem>>, vector<16x8xbf16>
    %cst_24 = arith.constant dense<0.000000e+00> : vector<16x256xf32>
    %25 = tpu.matmul %24, %1, %cst_24 {dimension_numbers = #tpu.dot_dimension_numbers<[1], [0], [0], [1], [0, 0, 1, 1], [], []>} : vector<16x8xbf16>, vector<8x256xbf16>, vector<16x256xf32> -> vector<16x256xf32>
    %c0_25 = arith.constant 0 : index
    %c0_26 = arith.constant 0 : index
    %26 = vector.load %arg10[%c0_25, %c0_26] : memref<16x8xbf16, #tpu.memory_space<vmem>>, vector<16x8xbf16>
    %cst_27 = arith.constant dense<0.000000e+00> : vector<16x256xf32>
    %27 = tpu.matmul %26, %13, %cst_27 {dimension_numbers = #tpu.dot_dimension_numbers<[1], [0], [0], [1], [0, 0, 1, 1], [], []>} : vector<16x8xbf16>, vector<8x256xbf16>, vector<16x256xf32> -> vector<16x256xf32>
    %28 = arith.addf %25, %27 : vector<16x256xf32>
    %c0_28 = arith.constant 0 : index
    %c0_29 = arith.constant 0 : index
    %29 = vector.load %arg12[%c0_28, %c0_29] : memref<16x1xf32, #tpu.memory_space<vmem>>, vector<16x1xf32>
    %30 = vector.broadcast %29 : vector<16x1xf32> to vector<16x256xf32>
    %31 = arith.addf %28, %30 : vector<16x256xf32>
    %cst_30 = arith.constant 0.000000e+00 : f32
    %32 = vector.broadcast %cst_30 : f32 to vector<16x256xf32>
    %33 = arith.maximumf %31, %32 : vector<16x256xf32>
    %c0_31 = arith.constant 0 : index
    %c0_32 = arith.constant 0 : index
    %c0_33 = arith.constant 0 : index
    %34 = vector.load %arg13[%c0_31, %c0_32, %c0_33] : memref<1x16x256xf32, #tpu.memory_space<vmem>>, vector<1x16x256xf32>
    %35 = vector.shape_cast %34 : vector<1x16x256xf32> to vector<16x256xf32>
    %36 = vector.shape_cast %23 : vector<16x256xf32> to vector<1x16x256xf32>
    tpu.vector_store %arg13[%c0_31, %c0_32, %c0_33], %36 {strides = array<i32>} : memref<1x16x256xf32, #tpu.memory_space<vmem>>, vector<1x16x256xf32>,
    %c0_34 = arith.constant 0 : index
    %c0_35 = arith.constant 0 : index
    %c0_36 = arith.constant 0 : index
    %37 = vector.load %arg14[%c0_34, %c0_35, %c0_36] : memref<1x16x256xf32, #tpu.memory_space<vmem>>, vector<1x16x256xf32>
    %38 = vector.shape_cast %37 : vector<1x16x256xf32> to vector<16x256xf32>
    %39 = vector.shape_cast %33 : vector<16x256xf32> to vector<1x16x256xf32>
    tpu.vector_store %arg14[%c0_34, %c0_35, %c0_36], %39 {strides = array<i32>} : memref<1x16x256xf32, #tpu.memory_space<vmem>>, vector<1x16x256xf32>,
    return
  }
  func.func @transform_0(%arg0: i32, %arg1: i32) -> (i32, i32, i32) {
    %c0_i32 = arith.constant 0 : i32
    %c0_i32_0 = arith.constant 0 : i32
    return %arg0, %c0_i32, %arg1 : i32, i32, i32
  }
  func.func @transform_1(%arg0: i32, %arg1: i32) -> (i32, i32, i32) {
    %c0_i32 = arith.constant 0 : i32
    %c0_i32_0 = arith.constant 0 : i32
    return %arg0, %c0_i32, %arg1 : i32, i32, i32
  }
  func.func @transform_2(%arg0: i32, %arg1: i32) -> (i32, i32, i32) {
    %c0_i32 = arith.constant 0 : i32
    %c0_i32_0 = arith.constant 0 : i32
    return %arg0, %c0_i32, %arg1 : i32, i32, i32
  }
  func.func @transform_3(%arg0: i32, %arg1: i32) -> (i32, i32, i32) {
    %c0_i32 = arith.constant 0 : i32
    %c0_i32_0 = arith.constant 0 : i32
    return %arg0, %c0_i32, %arg1 : i32, i32, i32
  }
  func.func @transform_4(%arg0: i32, %arg1: i32) -> (i32, i32, i32) {
    %c0_i32 = arith.constant 0 : i32
    %c0_i32_0 = arith.constant 0 : i32
    return %arg0, %c0_i32, %arg1 : i32, i32, i32
  }
  func.func @transform_5(%arg0: i32, %arg1: i32) -> (i32, i32) {
    %c0_i32 = arith.constant 0 : i32
    %c0_i32_0 = arith.constant 0 : i32
    %c0_i32_1 = arith.constant 0 : i32
    return %c0_i32, %c0_i32_0 : i32, i32
  }
  func.func @transform_6(%arg0: i32, %arg1: i32) -> (i32, i32) {
    %c0_i32 = arith.constant 0 : i32
    %c0_i32_0 = arith.constant 0 : i32
    %c0_i32_1 = arith.constant 0 : i32
    return %c0_i32, %c0_i32_0 : i32, i32
  }
  func.func @transform_7(%arg0: i32, %arg1: i32) -> (i32, i32) {
    %c0_i32 = arith.constant 0 : i32
    %c0_i32_0 = arith.constant 0 : i32
    %c0_i32_1 = arith.constant 0 : i32
    return %c0_i32, %c0_i32_0 : i32, i32
  }
  func.func @transform_8(%arg0: i32, %arg1: i32) -> (i32, i32) {
    %c0_i32 = arith.constant 0 : i32
    %c0_i32_0 = arith.constant 0 : i32
    %c0_i32_1 = arith.constant 0 : i32
    return %c0_i32, %c0_i32_0 : i32, i32
  }
  func.func @transform_9(%arg0: i32, %arg1: i32) -> (i32, i32) {
    %c0_i32 = arith.constant 0 : i32
    %c0_i32_0 = arith.constant 0 : i32
    %c0_i32_1 = arith.constant 0 : i32
    return %c0_i32, %c0_i32_0 : i32, i32
  }
  func.func @transform_10(%arg0: i32, %arg1: i32) -> (i32, i32) {
    %c0_i32 = arith.constant 0 : i32
    %c0_i32_0 = arith.constant 0 : i32
    %c0_i32_1 = arith.constant 0 : i32
    return %c0_i32, %c0_i32_0 : i32, i32
  }
  func.func @transform_11(%arg0: i32, %arg1: i32) -> (i32, i32, i32) {
    %c0_i32 = arith.constant 0 : i32
    %c0_i32_0 = arith.constant 0 : i32
    return %arg0, %c0_i32, %arg1 : i32, i32, i32
  }
  func.func @transform_12(%arg0: i32, %arg1: i32) -> (i32, i32, i32) {
    %c0_i32 = arith.constant 0 : i32
    %c0_i32_0 = arith.constant 0 : i32
    return %arg0, %c0_i32, %arg1 : i32, i32, i32
  }
}

</mosaic_0001>

<llo_original>
// kernel: ffc_bn_act_forward.4
$region0: #{ffc_bn_act_forward.4}
  #allocation0 [shape = 'u32[]', space=smem, size = 0x4, offset = 0x4, fixed_abs, tag = 'smem constant byte address 0x4 - core index']
  #allocation1 [shape = 'u32[144,128]{1,0:T(1,128)}', space=vmem, size = 0x12000, scoped, tag = 'internal scratch']
  %s0 = inlined_call_operand.vmem [shape: bf16[2,8,256], index: 0, kind: input, shape index: {}]
  %s1 = inlined_call_operand.vmem [shape: bf16[8,8], index: 1, kind: input, shape index: {}]
  %s2 = inlined_call_operand.vmem [shape: f32[8,1], index: 2, kind: input, shape index: {}]
  %s3 = inlined_call_operand.vmem [shape: bf16[2,8,256], index: 3, kind: output, shape index: {}]
  %s4 = sld [smem:[#allocation0]]
  $region45: #{ffc_bn_act_forward.4} parent=0
    _
  %s6 = ssub.s32 1, %s4
  %s7 = scalar_select 0, %s6, %s4
  loop: start=0, step=1, limit=4
  $region2: #{ffc_bn_act_forward.4} parent=0 // loop_pre_header
    _
  $region3: #{ffc_bn_act_forward.4} parent=0 // loop_header
    %s9 = sphi 0, %s13
    %p10 = scmp.ge.s32.totalorder %s9, 4
    %s16 = sphi 0, %s28
    %s17 = sphi 0, %s24
    %s18 = sphi 0, %s16
    %s19 = sphi 0, %s17
    %s20 = sphi 0, %s18
    %s21 = sphi 0, %s19
    %s33 = sphi 0, %s35
    %s36 = sphi 0, %s33
    %s37 = sphi 0, %s36
    %s53 = sphi 0, %s37
    %s57 = sphi 0, %s57
    %s59 = sphi 0, %s57
    %s60 = sphi 0, %s59
    %s74 = sphi 0, %s60
    %s78 = sphi 0, %s78
    %s80 = sphi 0, %s78
    %s81 = sphi 0, %s80
    %s95 = sphi 0, %s81
    %s103 = sphi 0, %s105
    %s106 = sphi 0, %s103
    %s107 = sphi 0, %s106
    %s123 = sphi 0, %s107
  $region4: #{ffc_bn_act_forward.4} parent=0 // loop_header_branch
    %12 = sbr.rel (%p10) target = $region8
  $region5: #{ffc_bn_act_forward.4} parent=0 // loop_body
    %s14 = ssub.s32 %s9, 1
    %s15 = ssub.s32 %s9, 2
    %s22 = sadd.s32 1, %s17
    %p23 = scmp.ge.s32.totalorder %s22, 1
    %s24 = scalar_select %p23, 0, %s22
    %s25 = sadd.s32 1, %s16
    %s26 = scalar_select %p23, %s25, %s16
    %p27 = scmp.ge.s32.totalorder %s26, 2
    %s28 = scalar_select %p27, 0, %s26
    %s29 = ssub.s32 %s16, %s28
    %s30 = ssub.s32 %s17, %s24
    %s31 = sor.u32 %s29, %s30
    %p32 = scmp.eq.s32.totalorder %s31, 0
    %s34 = sadd.s32 %s33, 1
    %s35 = scalar_select %p32, %s33, %s34
    %p38 = pneg %p32
    %p39 = scmp.eq.s32.totalorder %s9, 1
    %p40 = por %p38, %p39
    %p41 = scmp.ne.s32.totalorder %s33, %s36
    %p42 = scmp.eq.s32.totalorder %s9, 0
    %p43 = por %p41, %p42
    %p44 = scmp.ne.s32.totalorder %s33, %s36
    %p45 = scmp.eq.s32.totalorder %s14, 1
    %p46 = por %p44, %p45
    %p47 = scmp.ne.s32.totalorder %s36, %s37
    %p48 = scmp.eq.s32.totalorder %s14, 0
    %p49 = por %p47, %p48
    %p50 = scmp.ne.s32.totalorder %s36, %s37
    %p51 = scmp.eq.s32.totalorder %s15, 1
    %p52 = por %p50, %p51
    %p54 = scmp.ne.s32.totalorder %s37, %s53
    %p55 = scmp.eq.s32.totalorder %s15, 0
    %p56 = por %p54, %p55
    %s58 = sadd.s32 %s57, 1
    %p61 = scmp.eq.s32.totalorder %s9, 1
    %p62 = scmp.ne.s32.totalorder %s57, %s59
    %p63 = scmp.eq.s32.totalorder %s9, 0
    %p64 = por %p62, %p63
    %p65 = scmp.ne.s32.totalorder %s57, %s59
    %p66 = scmp.eq.s32.totalorder %s14, 1
    %p67 = por %p65, %p66
    %p68 = scmp.ne.s32.totalorder %s59, %s60
    %p69 = scmp.eq.s32.totalorder %s14, 0
    %p70 = por %p68, %p69
    %p71 = scmp.ne.s32.totalorder %s59, %s60
    %p72 = scmp.eq.s32.totalorder %s15, 1
    %p73 = por %p71, %p72
    %p75 = scmp.ne.s32.totalorder %s60, %s74
    %p76 = scmp.eq.s32.totalorder %s15, 0
    %p77 = por %p75, %p76
    %s79 = sadd.s32 %s78, 1
    %p82 = scmp.eq.s32.totalorder %s9, 1
    %p83 = scmp.ne.s32.totalorder %s78, %s80
    %p84 = scmp.eq.s32.totalorder %s9, 0
    %p85 = por %p83, %p84
    %p86 = scmp.ne.s32.totalorder %s78, %s80
    %p87 = scmp.eq.s32.totalorder %s14, 1
    %p88 = por %p86, %p87
    %p89 = scmp.ne.s32.totalorder %s80, %s81
    %p90 = scmp.eq.s32.totalorder %s14, 0
    %p91 = por %p89, %p90
    %p92 = scmp.ne.s32.totalorder %s80, %s81
    %p93 = scmp.eq.s32.totalorder %s15, 1
    %p94 = por %p92, %p93
    %p96 = scmp.ne.s32.totalorder %s81, %s95
    %p97 = scmp.eq.s32.totalorder %s15, 0
    %p98 = por %p96, %p97
    %s99 = ssub.s32 %s16, %s28
    %s100 = ssub.s32 %s17, %s24
    %s101 = sor.u32 %s99, %s100
    %p102 = scmp.eq.s32.totalorder %s101, 0
    %s104 = sadd.s32 %s103, 1
    %s105 = scalar_select %p102, %s103, %s104
    %p108 = pneg %p102
    %p109 = scmp.eq.s32.totalorder %s9, 1
    %p110 = por %p108, %p109
    %p111 = scmp.ne.s32.totalorder %s103, %s106
    %p112 = scmp.eq.s32.totalorder %s9, 0
    %p113 = por %p111, %p112
    %p114 = scmp.ne.s32.totalorder %s103, %s106
    %p115 = scmp.eq.s32.totalorder %s14, 1
    %p116 = por %p114, %p115
    %p117 = scmp.ne.s32.totalorder %s106, %s107
    %p118 = scmp.eq.s32.totalorder %s14, 0
    %p119 = por %p117, %p118
    %p120 = scmp.ne.s32.totalorder %s106, %s107
    %p121 = scmp.eq.s32.totalorder %s15, 1
    %p122 = por %p120, %p121
    %p124 = scmp.ne.s32.totalorder %s107, %s123
    %p125 = scmp.eq.s32.totalorder %s15, 0
    %p126 = por %p124, %p125
    %p127 = scmp.le.s32.totalorder 1, %s9
    %p128 = scmp.lt.s32.totalorder %s9, 3
    %p129 = pnand %p127, %p128
    %p130 = pneg %p129
    // Predicated region
    $region9: #{ffc_bn_act_forward.4} parent=5 // pred_check
      _
    $region10: #{ffc_bn_act_forward.4} parent=5 // pred_check_branch
      %132 = sbr.rel (%p129) target = $region12
    $region11: #{ffc_bn_act_forward.4} parent=5 // pred_region
      %s133 = ssub.s32 %s9, 1
      // Predicated region
      $region13: #{ffc_bn_act_forward.4} parent=11 // pred_check
        %p134 = pneg %p70
      $region14: #{ffc_bn_act_forward.4} parent=11 // pred_check_branch
        %136 = sbr.rel (%p134) target = $region16
      $region15: #{ffc_bn_act_forward.4} parent=11 // pred_region
        _
      $region16: #{ffc_bn_act_forward.4} parent=11 // pred_fallthru
        _
      // Predicated region
      $region17: #{ffc_bn_act_forward.4} parent=11 // pred_check
        %p137 = pneg %p91
      $region18: #{ffc_bn_act_forward.4} parent=11 // pred_check_branch
        %139 = sbr.rel (%p137) target = $region20
      $region19: #{ffc_bn_act_forward.4} parent=11 // pred_region
        _
      $region20: #{ffc_bn_act_forward.4} parent=11 // pred_fallthru
        _
    $region12: #{ffc_bn_act_forward.4} parent=5 // pred_fallthru
      _
    %p140 = scmp.lt.s32.totalorder %s9, 2
    // Predicated region
    $region21: #{ffc_bn_act_forward.4} parent=5 // pred_check
      %p141 = pneg %p140
    $region22: #{ffc_bn_act_forward.4} parent=5 // pred_check_branch
      %143 = sbr.rel (%p141) target = $region24
    $region23: #{ffc_bn_act_forward.4} parent=5 // pred_region
      // Predicated region
      $region25: #{ffc_bn_act_forward.4} parent=23 // pred_check
        %p144 = pneg %p43
      $region26: #{ffc_bn_act_forward.4} parent=23 // pred_check_branch
        %146 = sbr.rel (%p144) target = $region28
      $region27: #{ffc_bn_act_forward.4} parent=23 // pred_region
        %s147 = smul.u32 2, %s17
        %p148 = scmp.lt.s32.totalorder %s16, 1
        %s149 = scalar_select %p148, %s16, 1
        %p150 = scmp.lt.s32.totalorder %s147, 1
        %s151 = scalar_select %p150, %s147, 1
        %s152 = smul.addr %s149, 2
        %s153 = sadd.s32 %s151, %s152
        %s154 = smul.addr %s153, 4
        %s155 = scalar_lea.vmem %s0, %s154
        %s156 = smul.u32 2, %s17
      $region28: #{ffc_bn_act_forward.4} parent=23 // pred_fallthru
        _
    $region24: #{ffc_bn_act_forward.4} parent=5 // pred_fallthru
      _
    %p157 = scmp.le.s32.totalorder 1, %s9
    %p158 = scmp.lt.s32.totalorder %s9, 3
    %p159 = pnand %p157, %p158
    %p160 = pneg %p159
    // Predicated region
    $region29: #{ffc_bn_act_forward.4} parent=5 // pred_check
      _
    $region30: #{ffc_bn_act_forward.4} parent=5 // pred_check_branch
      %162 = sbr.rel (%p159) target = $region32
    $region31: #{ffc_bn_act_forward.4} parent=5 // pred_region
      %s163 = ssub.s32 %s9, 1
      %s164 = smul.u32 2, %s19
      %p165 = scmp.lt.s32.totalorder %s18, 1
      %s166 = scalar_select %p165, %s18, 1
      %p167 = scmp.lt.s32.totalorder %s164, 1
      %s168 = scalar_select %p167, %s164, 1
      %s169 = smul.addr %s166, 2
      %s170 = sadd.s32 %s168, %s169
      %s171 = smul.addr %s170, 4
      %s172 = scalar_lea.vmem %s0, %s171
      %p173 = pneg %p49
      %p174 = pneg %p46
      %p175 = pneg %p70
      %p176 = pneg %p67
      %p177 = pneg %p91
      %p178 = pneg %p88
      %p179 = pneg %p119
      %p180 = pneg %p116
      %s181 = smul.u32 2, %s19
      %p182 = scmp.lt.s32.totalorder %s18, 1
      %s183 = scalar_select %p182, %s18, 1
      %p184 = scmp.lt.s32.totalorder %s181, 1
      %s185 = scalar_select %p184, %s181, 1
      %s186 = smul.addr %s183, 2
      %s187 = sadd.s32 %s185, %s186
      %s188 = smul.addr %s187, 4
      %s189 = scalar_lea.vmem %s3, %s188
      %s190 = smul.u32 2, %s19
      %p191 = scmp.lt.s32.totalorder %s18, 1
      %s192 = scalar_select %p191, %s18, 1
      %p193 = scmp.lt.s32.totalorder %s190, 1
      %s194 = scalar_select %p193, %s190, 1
      %s195 = smul.addr %s192, 2
      %s196 = sadd.s32 %s194, %s195
      %s197 = smul.addr %s196, 4
      %s198 = scalar_lea.vmem %s0, %s197
      %s199 = smul.u32 2, %s19
      %s200 = smul.u32 2, %s19
      %p201 = scmp.lt.s32.totalorder %s18, 1
      %s202 = scalar_select %p201, %s18, 1
      %p203 = scmp.lt.s32.totalorder %s200, 1
      %s204 = scalar_select %p203, %s200, 1
      %s205 = smul.addr %s202, 2
      %s206 = sadd.s32 %s204, %s205
      %s207 = smul.addr %s206, 4
      %s208 = scalar_lea.vmem %s3, %s207
      %s209 = smul.u32 2, %s19
      %v211 = vld [vmem:[%s198] sm:$0xff]
      %v212 = vld [vmem:[%s1] sm:$0xf]
      %v213 = vld [vmem:[%s2] sm:$0xff]
      %215 = vset.pattern.permute.xlu0 0
      %216 = vperm.xlu0 %215, %v213
      %v217 = vpop.permute.xlu0 %216
      %v220 = vunpack.c.l.b16 %v211
      %v221 = vunpack.c.h.b16 %v211
      %v222 = vpack.c.b16 %v220, %v220
      %v223 = vpack.c.b16 %v221, %v221
      %vm224 = vcmask 64512
      %v226 = vsel %vm224, %v212, 0
      %vm228 = vcmask 1043456
      %v230 = vsel %vm228, %v222, 0
      %v233 = vsel %vm228, %v223, 0
      %235 = vmatprep.subr.bf16.mxu0 0
      %236 = vmatpush1.bf16.msra.mxu0 0
      %237 = vmatprep.subr.bf16.mxu0 0
      %238 = vmatpush1.bf16.msra.mxu0 0
      %239 = vmatprep.subr.bf16.mxu0 0
      %240 = vmatpush1.bf16.msra.mxu0 0
      %241 = vmatprep.subr.bf16.mxu0 0
      %242 = vmatpush1.bf16.msra.mxu0 0
      %243 = vmatprep.subr.bf16.mxu0 0
      %244 = vmatpush1.bf16.msra.mxu0 0
      %245 = vmatprep.subr.bf16.mxu0 0
      %246 = vmatpush1.bf16.msra.mxu0 0
      %247 = vmatprep.subr.bf16.mxu0 0
      %248 = vmatpush1.bf16.msra.mxu0 0
      %249 = vmatprep.subr.bf16.mxu0 %v233
      %250 = vmatpush1.bf16.msra.mxu0 %v230
      %251 = vmatprep.subr.bf16.mxu0 0
      %252 = vmatpush2.bf16.msra.mxu0 0
      %253 = vmatprep.subr.bf16.mxu0 0
      %254 = vmatpush2.bf16.msra.mxu0 0
      %255 = vmatprep.subr.bf16.mxu0 0
      %256 = vmatpush2.bf16.msra.mxu0 0
      %257 = vmatprep.subr.bf16.mxu0 0
      %258 = vmatpush2.bf16.msra.mxu0 0
      %259 = vmatprep.subr.bf16.mxu0 0
      %260 = vmatpush2.bf16.msra.mxu0 0
      %261 = vmatprep.subr.bf16.mxu0 0
      %262 = vmatpush2.bf16.msra.mxu0 0
      %263 = vmatprep.subr.bf16.mxu0 0
      %264 = vmatpush2.bf16.msra.mxu0 0
      %265 = vmatprep.subr.bf16.mxu0 0
      %266 = vmatpush2.bf16.msra.mxu0 0
      %267 = vmatprep.mubr.bf16.mxu0 0
      %268 = vmatmul.mubr.bf16.gmra.mxu0 %v226
      %v269 = vpop.f32.mrf.mxu0
      %v270 = vadd.f32 %v217, %v269
      %v271 = vpop.f32.mrf.mxu0
      %v272 = vadd.f32 %v217, %v271
      %v273 = vpop.f32.mrf.mxu0
      %v274 = vpop.f32.mrf.mxu0
      %275 = vdwg.mxu0
      %v276 = vmax.f32 %v270, 0.0
      %v277 = vmax.f32 %v272, 0.0
      %v278 = vpack.c.bf16 %v276, %v276
      %v279 = vpack.c.bf16 %v277, %v277
      %v282 = vunpack.c.l.b16 %v278
      %v283 = vunpack.c.l.b16 %v279
      %v284 = vpack.c.b16 %v283, %v282
      %286 = vst [vmem:[%s208] sm:$0xff] %v284
      %s287 = smul.u32 2, %s19
      %p288 = scmp.lt.s32.totalorder %s18, 1
      %s289 = scalar_select %p288, %s18, 1
      %p290 = scmp.lt.s32.totalorder %s287, 1
      %s291 = scalar_select %p290, %s287, 1
      %s292 = smul.addr %s289, 2
      %s293 = sadd.s32 %s291, %s292
      %s294 = smul.addr %s293, 4
      %s295 = scalar_lea.vmem %s3, %s294
      // Predicated region
      $region33: #{ffc_bn_act_forward.4} parent=31 // pred_check
        %p296 = pneg %p116
      $region34: #{ffc_bn_act_forward.4} parent=31 // pred_check_branch
        %298 = sbr.rel (%p296) target = $region36
      $region35: #{ffc_bn_act_forward.4} parent=31 // pred_region
        %s299 = smul.u32 2, %s19
      $region36: #{ffc_bn_act_forward.4} parent=31 // pred_fallthru
        _
    $region32: #{ffc_bn_act_forward.4} parent=5 // pred_fallthru
      _
    %p300 = scmp.le.s32.totalorder 2, %s9
    // Predicated region
    $region37: #{ffc_bn_act_forward.4} parent=5 // pred_check
      %p301 = pneg %p300
    $region38: #{ffc_bn_act_forward.4} parent=5 // pred_check_branch
      %303 = sbr.rel (%p301) target = $region40
    $region39: #{ffc_bn_act_forward.4} parent=5 // pred_region
      %s304 = ssub.s32 %s9, 2
      // Predicated region
      $region41: #{ffc_bn_act_forward.4} parent=39 // pred_check
        %p305 = pneg %p122
      $region42: #{ffc_bn_act_forward.4} parent=39 // pred_check_branch
        %307 = sbr.rel (%p305) target = $region44
      $region43: #{ffc_bn_act_forward.4} parent=39 // pred_region
        %s308 = smul.u32 2, %s21
        %p309 = scmp.lt.s32.totalorder %s20, 1
        %s310 = scalar_select %p309, %s20, 1
        %p311 = scmp.lt.s32.totalorder %s308, 1
        %s312 = scalar_select %p311, %s308, 1
        %s313 = smul.addr %s310, 2
        %s314 = sadd.s32 %s312, %s313
        %s315 = smul.addr %s314, 4
        %s316 = scalar_lea.vmem %s3, %s315
      $region44: #{ffc_bn_act_forward.4} parent=39 // pred_fallthru
        _
    $region40: #{ffc_bn_act_forward.4} parent=5 // pred_fallthru
      _
  $region6: #{ffc_bn_act_forward.4} parent=0 // loop_footer
    %s13 = sadd.s32 1, %s9
  $region7: #{ffc_bn_act_forward.4} parent=0 // loop_footer_branch
    %8 = sbr.rel target = $region3
  $region8: #{ffc_bn_act_forward.4} parent=0 // loop_exit
    _

// kernel: reverse.3
$region0: #{reverse.3}
  #allocation0 [shape = 's32[1]{0}', space=sflag, size = 0x4, scoped, tag = 'scoped memory for reverse.3']
  %s0 = inlined_call_operand.vmem [shape: f32[8,2,8,3], index: 0, kind: input, shape index: {}]
  %s1 = inlined_call_operand.vmem [shape: f32[8,2,8,3], index: 1, kind: output, shape index: {}]
  %s2 = scalar_lea.vmem %s0, 16
  %v3 = vld [vmem:[%s2] sm:$0xff]
  %4 = vst [vmem:[%s1] sm:$0xff] %v3
  %s5 = scalar_lea.vmem %s0, 40
  %v6 = vld [vmem:[%s5] sm:$0xff]
  %s7 = scalar_lea.vmem %s1, 24
  %8 = vst [vmem:[%s7] sm:$0xff] %v6
  %s9 = scalar_lea.vmem %s0, 8
  %v10 = vld [vmem:[%s9] sm:$0xff]
  %s11 = scalar_lea.vmem %s1, 8
  %12 = vst [vmem:[%s11] sm:$0xff] %v10
  %s13 = scalar_lea.vmem %s0, 32
  %v14 = vld [vmem:[%s13] sm:$0xff]
  %s15 = scalar_lea.vmem %s1, 32
  %16 = vst [vmem:[%s15] sm:$0xff] %v14
  %v17 = vld [vmem:[%s0] sm:$0xff]
  %s18 = scalar_lea.vmem %s1, 16
  %19 = vst [vmem:[%s18] sm:$0xff] %v17
  %s20 = scalar_lea.vmem %s0, 24
  %v21 = vld [vmem:[%s20] sm:$0xff]
  %s22 = scalar_lea.vmem %s1, 40
  %23 = vst [vmem:[%s22] sm:$0xff] %v21

// kernel: ffc_bn_act_forward.6
$region0: #{ffc_bn_act_forward.6}
  #allocation0 [shape = 'u32[]', space=smem, size = 0x4, offset = 0x4, fixed_abs, tag = 'smem constant byte address 0x4 - core index']
  #allocation1 [shape = 'u32[144,128]{1,0:T(1,128)}', space=vmem, size = 0x12000, scoped, tag = 'internal scratch']
  %s0 = inlined_call_operand.vmem [shape: bf16[1,16,80], index: 0, kind: input, shape index: {}]
  %s1 = inlined_call_operand.vmem [shape: bf16[16,16], index: 1, kind: input, shape index: {}]
  %s2 = inlined_call_operand.vmem [shape: f32[16,1], index: 2, kind: input, shape index: {}]
  %s3 = inlined_call_operand.vmem [shape: f32[1,16,80], index: 3, kind: output, shape index: {}]
  %s4 = sld [smem:[#allocation0]]
  $region22: #{ffc_bn_act_forward.6} parent=0
    _
  %s6 = ssub.s32 1, %s4
  %s7 = scalar_select 0, %s6, %s4
  // Predicated region
  $region2: #{ffc_bn_act_forward.6} parent=0 // pred_check
    _
  $region3: #{ffc_bn_act_forward.6} parent=0 // pred_check_branch
    %9 = sbr.rel (0) target = $region5
  $region4: #{ffc_bn_act_forward.6} parent=0 // pred_region
    _
  $region5: #{ffc_bn_act_forward.6} parent=0 // pred_fallthru
    _
  // Predicated region
  $region6: #{ffc_bn_act_forward.6} parent=0 // pred_check
    _
  $region7: #{ffc_bn_act_forward.6} parent=0 // pred_check_branch
    %11 = sbr.rel (0) target = $region9
  $region8: #{ffc_bn_act_forward.6} parent=0 // pred_region
    _
  $region9: #{ffc_bn_act_forward.6} parent=0 // pred_fallthru
    _
  // Predicated region
  $region10: #{ffc_bn_act_forward.6} parent=0 // pred_check
    _
  $region11: #{ffc_bn_act_forward.6} parent=0 // pred_check_branch
    %13 = sbr.rel (0) target = $region13
  $region12: #{ffc_bn_act_forward.6} parent=0 // pred_region
    _
  $region13: #{ffc_bn_act_forward.6} parent=0 // pred_fallthru
    _
  %v15 = vld [vmem:[%s0] sm:$0xf]
  %v16 = vld [vmem:[%s0 + $0x4] sm:$0xf]
  %v17 = vld [vmem:[%s1] sm:$0xf]
  %v18 = vld [vmem:[%s1 + $0x4] sm:$0xf]
  %v19 = vld [vmem:[%s2] sm:$0xff]
  %v20 = vld [vmem:[%s2 + $0x8] sm:$0xff]
  %22 = vset.pattern.permute.xlu0 0
  %23 = vperm.xlu0 %22, %v19
  %v24 = vpop.permute.xlu0 %23
  %27 = vset.pattern.permute.xlu0 0
  %28 = vperm.xlu0 %27, %v20
  %v29 = vpop.permute.xlu0 %28
  %v33 = vunpack.c.l.b16 %v17
  %v34 = vunpack.c.l.b16 %v18
  %v35 = vpack.c.b16 %v34, %v33
  %v38 = vunpack.c.l.b16 %v15
  %v39 = vunpack.c.l.b16 %v16
  %v40 = vpack.c.b16 %v39, %v38
  %vm42 = vcmask 130048
  %v44 = vsel %vm42, %v35, 0
  %46 = vmatprep.subr.bf16.mxu0 0
  %47 = vmatpush1.bf16.msra.mxu0 0
  %48 = vmatprep.subr.bf16.mxu0 0
  %49 = vmatpush1.bf16.msra.mxu0 0
  %50 = vmatprep.subr.bf16.mxu0 0
  %51 = vmatpush1.bf16.msra.mxu0 0
  %52 = vmatprep.subr.bf16.mxu0 0
  %53 = vmatpush1.bf16.msra.mxu0 0
  %54 = vmatprep.subr.bf16.mxu0 0
  %55 = vmatpush1.bf16.msra.mxu0 0
  %56 = vmatprep.subr.bf16.mxu0 0
  %57 = vmatpush1.bf16.msra.mxu0 0
  %58 = vmatprep.subr.bf16.mxu0 0
  %59 = vmatpush1.bf16.msra.mxu0 0
  %60 = vmatprep.subr.bf16.mxu0 0
  %61 = vmatpush1.bf16.msra.mxu0 %v40
  %62 = vmatprep.subr.bf16.mxu0 0
  %63 = vmatpush2.bf16.msra.mxu0 0
  %64 = vmatprep.subr.bf16.mxu0 0
  %65 = vmatpush2.bf16.msra.mxu0 0
  %66 = vmatprep.subr.bf16.mxu0 0
  %67 = vmatpush2.bf16.msra.mxu0 0
  %68 = vmatprep.subr.bf16.mxu0 0
  %69 = vmatpush2.bf16.msra.mxu0 0
  %70 = vmatprep.subr.bf16.mxu0 0
  %71 = vmatpush2.bf16.msra.mxu0 0
  %72 = vmatprep.subr.bf16.mxu0 0
  %73 = vmatpush2.bf16.msra.mxu0 0
  %74 = vmatprep.subr.bf16.mxu0 0
  %75 = vmatpush2.bf16.msra.mxu0 0
  %76 = vmatprep.subr.bf16.mxu0 0
  %77 = vmatpush2.bf16.msra.mxu0 0
  %78 = vmatprep.mubr.bf16.mxu0 0
  %79 = vmatmul.mubr.bf16.gmra.mxu0 %v44
  %v80 = vpop.f32.mrf.mxu0
  %v81 = vadd.f32 %v24, %v80
  %v82 = vpop.f32.mrf.mxu0
  %v83 = vpop.f32.mrf.mxu0
  %v84 = vadd.f32 %v29, %v83
  %v85 = vpop.f32.mrf.mxu0
  %86 = vdwg.mxu0
  %v87 = vmax.f32 %v81, 0.0
  %v88 = vmax.f32 %v84, 0.0
  %vm89 = vcmask 654336
  %90 = vst.msk [vmem:[%s3] sm:$0xff] %vm89, %v87
  %91 = vst.msk [vmem:[%s3 + $0x8] sm:$0xff] %vm89, %v88
  // Predicated region
  $region14: #{ffc_bn_act_forward.6} parent=0 // pred_check
    _
  $region15: #{ffc_bn_act_forward.6} parent=0 // pred_check_branch
    %93 = sbr.rel (0) target = $region17
  $region16: #{ffc_bn_act_forward.6} parent=0 // pred_region
    _
  $region17: #{ffc_bn_act_forward.6} parent=0 // pred_fallthru
    _
  // Predicated region
  $region18: #{ffc_bn_act_forward.6} parent=0 // pred_check
    _
  $region19: #{ffc_bn_act_forward.6} parent=0 // pred_check_branch
    %95 = sbr.rel (0) target = $region21
  $region20: #{ffc_bn_act_forward.6} parent=0 // pred_region
    _
  $region21: #{ffc_bn_act_forward.6} parent=0 // pred_fallthru
    _

// kernel: tile.9
$region0: #{tile.9}
  %s0 = inlined_call_operand.vmem [shape: f32[2,8,2,8,2,8], index: 0, kind: input, shape index: {}]
  %s1 = inlined_call_operand.vmem [shape: f32[2,8,256], index: 1, kind: output, shape index: {}]
  $region1: #{tile.9} parent=0
    #allocation0 [shape = 'u8[1048576]{0}', space=vmem, size = 0x100000, scoped, tag = 'scoped mem for input reshape']
    %s3 = sshll.u32 1, 2
    %s4 = ssub.s32 %s3, 1
    %s5 = smul.addr 2, 255
    %s6 = scalar_lea.vmem %s0, %s5
    %v7 = vld [vmem:[%s6] sm:%s4]
    %s8 = scalar_lea.vmem [#allocation0], 2040
    %9 = vst [vmem:[%s8] sm:%s4] %v7
    %s10 = smul.addr 2, 254
    %s11 = scalar_lea.vmem %s0, %s10
    %v12 = vld [vmem:[%s11] sm:%s4]
    %s13 = scalar_lea.vmem [#allocation0], 2032
    %14 = vst [vmem:[%s13] sm:%s4] %v12
    %s15 = smul.addr 2, 253
    %s16 = scalar_lea.vmem %s0, %s15
    %v17 = vld [vmem:[%s16] sm:%s4]
    %s18 = scalar_lea.vmem [#allocation0], 2024
    %19 = vst [vmem:[%s18] sm:%s4] %v17
    %s20 = smul.addr 2, 252
    %s21 = scalar_lea.vmem %s0, %s20
    %v22 = vld [vmem:[%s21] sm:%s4]
    %s23 = scalar_lea.vmem [#allocation0], 2016
    %24 = vst [vmem:[%s23] sm:%s4] %v22
    %s25 = smul.addr 2, 251
    %s26 = scalar_lea.vmem %s0, %s25
    %v27 = vld [vmem:[%s26] sm:%s4]
    %s28 = scalar_lea.vmem [#allocation0], 2008
    %29 = vst [vmem:[%s28] sm:%s4] %v27
    %s30 = smul.addr 2, 250
    %s31 = scalar_lea.vmem %s0, %s30
    %v32 = vld [vmem:[%s31] sm:%s4]
    %s33 = scalar_lea.vmem [#allocation0], 2000
    %34 = vst [vmem:[%s33] sm:%s4] %v32
    %s35 = smul.addr 2, 249
    %s36 = scalar_lea.vmem %s0, %s35
    %v37 = vld [vmem:[%s36] sm:%s4]
    %s38 = scalar_lea.vmem [#allocation0], 1992
    %39 = vst [vmem:[%s38] sm:%s4] %v37
    %s40 = smul.addr 2, 248
    %s41 = scalar_lea.vmem %s0, %s40
    %v42 = vld [vmem:[%s41] sm:%s4]
    %s43 = scalar_lea.vmem [#allocation0], 1984
    %44 = vst [vmem:[%s43] sm:%s4] %v42
    %s45 = smul.addr 2, 247
    %s46 = scalar_lea.vmem %s0, %s45
    %v47 = vld [vmem:[%s46] sm:%s4]
    %s48 = scalar_lea.vmem [#allocation0], 1976
    %49 = vst [vmem:[%s48] sm:%s4] %v47
    %s50 = smul.addr 2, 246
    %s51 = scalar_lea.vmem %s0, %s50
    %v52 = vld [vmem:[%s51] sm:%s4]
    %s53 = scalar_lea.vmem [#allocation0], 1968
    %54 = vst [vmem:[%s53] sm:%s4] %v52
    %s55 = smul.addr 2, 245
    %s56 = scalar_lea.vmem %s0, %s55
    %v57 = vld [vmem:[%s56] sm:%s4]
    %s58 = scalar_lea.vmem [#allocation0], 1960
    %59 = vst [vmem:[%s58] sm:%s4] %v57
    %s60 = smul.addr 2, 244
    %s61 = scalar_lea.vmem %s0, %s60
    %v62 = vld [vmem:[%s61] sm:%s4]
    %s63 = scalar_lea.vmem [#allocation0], 1952
    %64 = vst [vmem:[%s63] sm:%s4] %v62
    %s65 = smul.addr 2, 243
    %s66 = scalar_lea.vmem %s0, %s65
    %v67 = vld [vmem:[%s66] sm:%s4]
    %s68 = scalar_lea.vmem [#allocation0], 1944
    %69 = vst [vmem:[%s68] sm:%s4] %v67
    %s70 = smul.addr 2, 242
    %s71 = scalar_lea.vmem %s0, %s70
    %v72 = vld [vmem:[%s71] sm:%s4]
    %s73 = scalar_lea.vmem [#allocation0], 1936
    %74 = vst [vmem:[%s73] sm:%s4] %v72
    %s75 = smul.addr 2, 241
    %s76 = scalar_lea.vmem %s0, %s75
    %v77 = vld [vmem:[%s76] sm:%s4]
    %s78 = scalar_lea.vmem [#allocation0], 1928
    %79 = vst [vmem:[%s78] sm:%s4] %v77
    %s80 = smul.addr 2, 240
    %s81 = scalar_lea.vmem %s0, %s80
    %v82 = vld [vmem:[%s81] sm:%s4]
    %s83 = scalar_lea.vmem [#allocation0], 1920
    %84 = vst [vmem:[%s83] sm:%s4] %v82
    %s85 = smul.addr 2, 239
    %s86 = scalar_lea.vmem %s0, %s85
    %v87 = vld [vmem:[%s86] sm:%s4]
    %s88 = scalar_lea.vmem [#allocation0], 1912
    %89 = vst [vmem:[%s88] sm:%s4] %v87
    %s90 = smul.addr 2, 238
    %s91 = scalar_lea.vmem %s0, %s90
    %v92 = vld [vmem:[%s91] sm:%s4]
    %s93 = scalar_lea.vmem [#allocation0], 1904
    %94 = vst [vmem:[%s93] sm:%s4] %v92
    %s95 = smul.addr 2, 237
    %s96 = scalar_lea.vmem %s0, %s95
    %v97 = vld [vmem:[%s96] sm:%s4]
    %s98 = scalar_lea.vmem [#allocation0], 1896
    %99 = vst [vmem:[%s98] sm:%s4] %v97
    %s100 = smul.addr 2, 236
    %s101 = scalar_lea.vmem %s0, %s100
    %v102 = vld [vmem:[%s101] sm:%s4]
    %s103 = scalar_lea.vmem [#allocation0], 1888
    %104 = vst [vmem:[%s103] sm:%s4] %v102
    %s105 = smul.addr 2, 235
    %s106 = scalar_lea.vmem %s0, %s105
    %v107 = vld [vmem:[%s106] sm:%s4]
    %s108 = scalar_lea.vmem [#allocation0], 1880
    %109 = vst [vmem:[%s108] sm:%s4] %v107
    %s110 = smul.addr 2, 234
    %s111 = scalar_lea.vmem %s0, %s110
    %v112 = vld [vmem:[%s111] sm:%s4]
    %s113 = scalar_lea.vmem [#allocation0], 1872
    %114 = vst [vmem:[%s113] sm:%s4] %v112
    %s115 = smul.addr 2, 233
    %s116 = scalar_lea.vmem %s0, %s115
    %v117 = vld [vmem:[%s116] sm:%s4]
    %s118 = scalar_lea.vmem [#allocation0], 1864
    %119 = vst [vmem:[%s118] sm:%s4] %v117
    %s120 = smul.addr 2, 232
    %s121 = scalar_lea.vmem %s0, %s120
    %v122 = vld [vmem:[%s121] sm:%s4]
    %s123 = scalar_lea.vmem [#allocation0], 1856
    %124 = vst [vmem:[%s123] sm:%s4] %v122
    %s125 = smul.addr 2, 231
    %s126 = scalar_lea.vmem %s0, %s125
    %v127 = vld [vmem:[%s126] sm:%s4]
    %s128 = scalar_lea.vmem [#allocation0], 1848
    %129 = vst [vmem:[%s128] sm:%s4] %v127
    %s130 = smul.addr 2, 230
    %s131 = scalar_lea.vmem %s0, %s130
    %v132 = vld [vmem:[%s131] sm:%s4]
    %s133 = scalar_lea.vmem [#allocation0], 1840
    %134 = vst [vmem:[%s133] sm:%s4] %v132
    %s135 = smul.addr 2, 229
    %s136 = scalar_lea.vmem %s0, %s135
    %v137 = vld [vmem:[%s136] sm:%s4]
    %s138 = scalar_lea.vmem [#allocation0], 1832
    %139 = vst [vmem:[%s138] sm:%s4] %v137
    %s140 = smul.addr 2, 228
    %s141 = scalar_lea.vmem %s0, %s140
    %v142 = vld [vmem:[%s141] sm:%s4]
    %s143 = scalar_lea.vmem [#allocation0], 1824
    %144 = vst [vmem:[%s143] sm:%s4] %v142
    %s145 = smul.addr 2, 227
    %s146 = scalar_lea.vmem %s0, %s145
    %v147 = vld [vmem:[%s146] sm:%s4]
    %s148 = scalar_lea.vmem [#allocation0], 1816
    %149 = vst [vmem:[%s148] sm:%s4] %v147
    %s150 = smul.addr 2, 226
    %s151 = scalar_lea.vmem %s0, %s150
    %v152 = vld [vmem:[%s151] sm:%s4]
    %s153 = scalar_lea.vmem [#allocation0], 1808
    %154 = vst [vmem:[%s153] sm:%s4] %v152
    %s155 = smul.addr 2, 225
    %s156 = scalar_lea.vmem %s0, %s155
    %v157 = vld [vmem:[%s156] sm:%s4]
    %s158 = scalar_lea.vmem [#allocation0], 1800
    %159 = vst [vmem:[%s158] sm:%s4] %v157
    %s160 = smul.addr 2, 224
    %s161 = scalar_lea.vmem %s0, %s160
    %v162 = vld [vmem:[%s161] sm:%s4]
    %s163 = scalar_lea.vmem [#allocation0], 1792
    %164 = vst [vmem:[%s163] sm:%s4] %v162
    %s165 = smul.addr 2, 223
    %s166 = scalar_lea.vmem %s0, %s165
    %v167 = vld [vmem:[%s166] sm:%s4]
    %s168 = scalar_lea.vmem [#allocation0], 1784
    %169 = vst [vmem:[%s168] sm:%s4] %v167
    %s170 = smul.addr 2, 222
    %s171 = scalar_lea.vmem %s0, %s170
    %v172 = vld [vmem:[%s171] sm:%s4]
    %s173 = scalar_lea.vmem [#allocation0], 1776
    %174 = vst [vmem:[%s173] sm:%s4] %v172
    %s175 = smul.addr 2, 221
    %s176 = scalar_lea.vmem %s0, %s175
    %v177 = vld [vmem:[%s176] sm:%s4]
    %s178 = scalar_lea.vmem [#allocation0], 1768
    %179 = vst [vmem:[%s178] sm:%s4] %v177
    %s180 = smul.addr 2, 220
    %s181 = scalar_lea.vmem %s0, %s180
    %v182 = vld [vmem:[%s181] sm:%s4]
    %s183 = scalar_lea.vmem [#allocation0], 1760
    %184 = vst [vmem:[%s183] sm:%s4] %v182
    %s185 = smul.addr 2, 219
    %s186 = scalar_lea.vmem %s0, %s185
    %v187 = vld [vmem:[%s186] sm:%s4]
    %s188 = scalar_lea.vmem [#allocation0], 1752
    %189 = vst [vmem:[%s188] sm:%s4] %v187
    %s190 = smul.addr 2, 218
    %s191 = scalar_lea.vmem %s0, %s190
    %v192 = vld [vmem:[%s191] sm:%s4]
    %s193 = scalar_lea.vmem [#allocation0], 1744
    %194 = vst [vmem:[%s193] sm:%s4] %v192
    %s195 = smul.addr 2, 217
    %s196 = scalar_lea.vmem %s0, %s195
    %v197 = vld [vmem:[%s196] sm:%s4]
    %s198 = scalar_lea.vmem [#allocation0], 1736
    %199 = vst [vmem:[%s198] sm:%s4] %v197
    %s200 = smul.addr 2, 216
    %s201 = scalar_lea.vmem %s0, %s200
    %v202 = vld [vmem:[%s201] sm:%s4]
    %s203 = scalar_lea.vmem [#allocation0], 1728
    %204 = vst [vmem:[%s203] sm:%s4] %v202
    %s205 = smul.addr 2, 215
    %s206 = scalar_lea.vmem %s0, %s205
    %v207 = vld [vmem:[%s206] sm:%s4]
    %s208 = scalar_lea.vmem [#allocation0], 1720
    %209 = vst [vmem:[%s208] sm:%s4] %v207
    %s210 = smul.addr 2, 214
    %s211 = scalar_lea.vmem %s0, %s210
    %v212 = vld [vmem:[%s211] sm:%s4]
    %s213 = scalar_lea.vmem [#allocation0], 1712
    %214 = vst [vmem:[%s213] sm:%s4] %v212
    %s215 = smul.addr 2, 213
    %s216 = scalar_lea.vmem %s0, %s215
    %v217 = vld [vmem:[%s216] sm:%s4]
    %s218 = scalar_lea.vmem [#allocation0], 1704
    %219 = vst [vmem:[%s218] sm:%s4] %v217
    %s220 = smul.addr 2, 212
    %s221 = scalar_lea.vmem %s0, %s220
    %v222 = vld [vmem:[%s221] sm:%s4]
    %s223 = scalar_lea.vmem [#allocation0], 1696
    %224 = vst [vmem:[%s223] sm:%s4] %v222
    %s225 = smul.addr 2, 211
    %s226 = scalar_lea.vmem %s0, %s225
    %v227 = vld [vmem:[%s226] sm:%s4]
    %s228 = scalar_lea.vmem [#allocation0], 1688
    %229 = vst [vmem:[%s228] sm:%s4] %v227
    %s230 = smul.addr 2, 210
    %s231 = scalar_lea.vmem %s0, %s230
    %v232 = vld [vmem:[%s231] sm:%s4]
    %s233 = scalar_lea.vmem [#allocation0], 1680
    %234 = vst [vmem:[%s233] sm:%s4] %v232
    %s235 = smul.addr 2, 209
    %s236 = scalar_lea.vmem %s0, %s235
    %v237 = vld [vmem:[%s236] sm:%s4]
    %s238 = scalar_lea.vmem [#allocation0], 1672
    %239 = vst [vmem:[%s238] sm:%s4] %v237
    %s240 = smul.addr 2, 208
    %s241 = scalar_lea.vmem %s0, %s240
    %v242 = vld [vmem:[%s241] sm:%s4]
    %s243 = scalar_lea.vmem [#allocation0], 1664
    %244 = vst [vmem:[%s243] sm:%s4] %v242
    %s245 = smul.addr 2, 207
    %s246 = scalar_lea.vmem %s0, %s245
    %v247 = vld [vmem:[%s246] sm:%s4]
    %s248 = scalar_lea.vmem [#allocation0], 1656
    %249 = vst [vmem:[%s248] sm:%s4] %v247
    %s250 = smul.addr 2, 206
    %s251 = scalar_lea.vmem %s0, %s250
    %v252 = vld [vmem:[%s251] sm:%s4]
    %s253 = scalar_lea.vmem [#allocation0], 1648
    %254 = vst [vmem:[%s253] sm:%s4] %v252
    %s255 = smul.addr 2, 205
    %s256 = scalar_lea.vmem %s0, %s255
    %v257 = vld [vmem:[%s256] sm:%s4]
    %s258 = scalar_lea.vmem [#allocation0], 1640
    %259 = vst [vmem:[%s258] sm:%s4] %v257
    %s260 = smul.addr 2, 204
    %s261 = scalar_lea.vmem %s0, %s260
    %v262 = vld [vmem:[%s261] sm:%s4]
    %s263 = scalar_lea.vmem [#allocation0], 1632
    %264 = vst [vmem:[%s263] sm:%s4] %v262
    %s265 = smul.addr 2, 203
    %s266 = scalar_lea.vmem %s0, %s265
    %v267 = vld [vmem:[%s266] sm:%s4]
    %s268 = scalar_lea.vmem [#allocation0], 1624
    %269 = vst [vmem:[%s268] sm:%s4] %v267
    %s270 = smul.addr 2, 202
    %s271 = scalar_lea.vmem %s0, %s270
    %v272 = vld [vmem:[%s271] sm:%s4]
    %s273 = scalar_lea.vmem [#allocation0], 1616
    %274 = vst [vmem:[%s273] sm:%s4] %v272
    %s275 = smul.addr 2, 201
    %s276 = scalar_lea.vmem %s0, %s275
    %v277 = vld [vmem:[%s276] sm:%s4]
    %s278 = scalar_lea.vmem [#allocation0], 1608
    %279 = vst [vmem:[%s278] sm:%s4] %v277
    %s280 = smul.addr 2, 200
    %s281 = scalar_lea.vmem %s0, %s280
    %v282 = vld [vmem:[%s281] sm:%s4]
    %s283 = scalar_lea.vmem [#allocation0], 1600
    %284 = vst [vmem:[%s283] sm:%s4] %v282
    %s285 = smul.addr 2, 199
    %s286 = scalar_lea.vmem %s0, %s285
    %v287 = vld [vmem:[%s286] sm:%s4]
    %s288 = scalar_lea.vmem [#allocation0], 1592
    %289 = vst [vmem:[%s288] sm:%s4] %v287
    %s290 = smul.addr 2, 198
    %s291 = scalar_lea.vmem %s0, %s290
    %v292 = vld [vmem:[%s291] sm:%s4]
    %s293 = scalar_lea.vmem [#allocation0], 1584
    %294 = vst [vmem:[%s293] sm:%s4] %v292
    %s295 = smul.addr 2, 197
    %s296 = scalar_lea.vmem %s0, %s295
    %v297 = vld [vmem:[%s296] sm:%s4]
    %s298 = scalar_lea.vmem [#allocation0], 1576
    %299 = vst [vmem:[%s298] sm:%s4] %v297
    %s300 = smul.addr 2, 196
    %s301 = scalar_lea.vmem %s0, %s300
    %v302 = vld [vmem:[%s301] sm:%s4]
    %s303 = scalar_lea.vmem [#allocation0], 1568
    %304 = vst [vmem:[%s303] sm:%s4] %v302
    %s305 = smul.addr 2, 195
    %s306 = scalar_lea.vmem %s0, %s305
    %v307 = vld [vmem:[%s306] sm:%s4]
    %s308 = scalar_lea.vmem [#allocation0], 1560
    %309 = vst [vmem:[%s308] sm:%s4] %v307
    %s310 = smul.addr 2, 194
    %s311 = scalar_lea.vmem %s0, %s310
    %v312 = vld [vmem:[%s311] sm:%s4]
    %s313 = scalar_lea.vmem [#allocation0], 1552
    %314 = vst [vmem:[%s313] sm:%s4] %v312
    %s315 = smul.addr 2, 193
    %s316 = scalar_lea.vmem %s0, %s315
    %v317 = vld [vmem:[%s316] sm:%s4]
    %s318 = scalar_lea.vmem [#allocation0], 1544
    %319 = vst [vmem:[%s318] sm:%s4] %v317
    %s320 = smul.addr 2, 192
    %s321 = scalar_lea.vmem %s0, %s320
    %v322 = vld [vmem:[%s321] sm:%s4]
    %s323 = scalar_lea.vmem [#allocation0], 1536
    %324 = vst [vmem:[%s323] sm:%s4] %v322
    %s325 = smul.addr 2, 191
    %s326 = scalar_lea.vmem %s0, %s325
    %v327 = vld [vmem:[%s326] sm:%s4]
    %s328 = scalar_lea.vmem [#allocation0], 1528
    %329 = vst [vmem:[%s328] sm:%s4] %v327
    %s330 = smul.addr 2, 190
    %s331 = scalar_lea.vmem %s0, %s330
    %v332 = vld [vmem:[%s331] sm:%s4]
    %s333 = scalar_lea.vmem [#allocation0], 1520
    %334 = vst [vmem:[%s333] sm:%s4] %v332
    %s335 = smul.addr 2, 189
    %s336 = scalar_lea.vmem %s0, %s335
    %v337 = vld [vmem:[%s336] sm:%s4]
    %s338 = scalar_lea.vmem [#allocation0], 1512
    %339 = vst [vmem:[%s338] sm:%s4] %v337
    %s340 = smul.addr 2, 188
    %s341 = scalar_lea.vmem %s0, %s340
    %v342 = vld [vmem:[%s341] sm:%s4]
    %s343 = scalar_lea.vmem [#allocation0], 1504
    %344 = vst [vmem:[%s343] sm:%s4] %v342
    %s345 = smul.addr 2, 187
    %s346 = scalar_lea.vmem %s0, %s345
    %v347 = vld [vmem:[%s346] sm:%s4]
    %s348 = scalar_lea.vmem [#allocation0], 1496
    %349 = vst [vmem:[%s348] sm:%s4] %v347
    %s350 = smul.addr 2, 186
    %s351 = scalar_lea.vmem %s0, %s350
    %v352 = vld [vmem:[%s351] sm:%s4]
    %s353 = scalar_lea.vmem [#allocation0], 1488
    %354 = vst [vmem:[%s353] sm:%s4] %v352
    %s355 = smul.addr 2, 185
    %s356 = scalar_lea.vmem %s0, %s355
    %v357 = vld [vmem:[%s356] sm:%s4]
    %s358 = scalar_lea.vmem [#allocation0], 1480
    %359 = vst [vmem:[%s358] sm:%s4] %v357
    %s360 = smul.addr 2, 184
    %s361 = scalar_lea.vmem %s0, %s360
    %v362 = vld [vmem:[%s361] sm:%s4]
    %s363 = scalar_lea.vmem [#allocation0], 1472
    %364 = vst [vmem:[%s363] sm:%s4] %v362
    %s365 = smul.addr 2, 183
    %s366 = scalar_lea.vmem %s0, %s365
    %v367 = vld [vmem:[%s366] sm:%s4]
    %s368 = scalar_lea.vmem [#allocation0], 1464
    %369 = vst [vmem:[%s368] sm:%s4] %v367
    %s370 = smul.addr 2, 182
    %s371 = scalar_lea.vmem %s0, %s370
    %v372 = vld [vmem:[%s371] sm:%s4]
    %s373 = scalar_lea.vmem [#allocation0], 1456
    %374 = vst [vmem:[%s373] sm:%s4] %v372
    %s375 = smul.addr 2, 181
    %s376 = scalar_lea.vmem %s0, %s375
    %v377 = vld [vmem:[%s376] sm:%s4]
    %s378 = scalar_lea.vmem [#allocation0], 1448
    %379 = vst [vmem:[%s378] sm:%s4] %v377
    %s380 = smul.addr 2, 180
    %s381 = scalar_lea.vmem %s0, %s380
    %v382 = vld [vmem:[%s381] sm:%s4]
    %s383 = scalar_lea.vmem [#allocation0], 1440
    %384 = vst [vmem:[%s383] sm:%s4] %v382
    %s385 = smul.addr 2, 179
    %s386 = scalar_lea.vmem %s0, %s385
    %v387 = vld [vmem:[%s386] sm:%s4]
    %s388 = scalar_lea.vmem [#allocation0], 1432
    %389 = vst [vmem:[%s388] sm:%s4] %v387
    %s390 = smul.addr 2, 178
    %s391 = scalar_lea.vmem %s0, %s390
    %v392 = vld [vmem:[%s391] sm:%s4]
    %s393 = scalar_lea.vmem [#allocation0], 1424
    %394 = vst [vmem:[%s393] sm:%s4] %v392
    %s395 = smul.addr 2, 177
    %s396 = scalar_lea.vmem %s0, %s395
    %v397 = vld [vmem:[%s396] sm:%s4]
    %s398 = scalar_lea.vmem [#allocation0], 1416
    %399 = vst [vmem:[%s398] sm:%s4] %v397
    %s400 = smul.addr 2, 176
    %s401 = scalar_lea.vmem %s0, %s400
    %v402 = vld [vmem:[%s401] sm:%s4]
    %s403 = scalar_lea.vmem [#allocation0], 1408
    %404 = vst [vmem:[%s403] sm:%s4] %v402
    %s405 = smul.addr 2, 175
    %s406 = scalar_lea.vmem %s0, %s405
    %v407 = vld [vmem:[%s406] sm:%s4]
    %s408 = scalar_lea.vmem [#allocation0], 1400
    %409 = vst [vmem:[%s408] sm:%s4] %v407
    %s410 = smul.addr 2, 174
    %s411 = scalar_lea.vmem %s0, %s410
    %v412 = vld [vmem:[%s411] sm:%s4]
    %s413 = scalar_lea.vmem [#allocation0], 1392
    %414 = vst [vmem:[%s413] sm:%s4] %v412
    %s415 = smul.addr 2, 173
    %s416 = scalar_lea.vmem %s0, %s415
    %v417 = vld [vmem:[%s416] sm:%s4]
    %s418 = scalar_lea.vmem [#allocation0], 1384
    %419 = vst [vmem:[%s418] sm:%s4] %v417
    %s420 = smul.addr 2, 172
    %s421 = scalar_lea.vmem %s0, %s420
    %v422 = vld [vmem:[%s421] sm:%s4]
    %s423 = scalar_lea.vmem [#allocation0], 1376
    %424 = vst [vmem:[%s423] sm:%s4] %v422
    %s425 = smul.addr 2, 171
    %s426 = scalar_lea.vmem %s0, %s425
    %v427 = vld [vmem:[%s426] sm:%s4]
    %s428 = scalar_lea.vmem [#allocation0], 1368
    %429 = vst [vmem:[%s428] sm:%s4] %v427
    %s430 = smul.addr 2, 170
    %s431 = scalar_lea.vmem %s0, %s430
    %v432 = vld [vmem:[%s431] sm:%s4]
    %s433 = scalar_lea.vmem [#allocation0], 1360
    %434 = vst [vmem:[%s433] sm:%s4] %v432
    %s435 = smul.addr 2, 169
    %s436 = scalar_lea.vmem %s0, %s435
    %v437 = vld [vmem:[%s436] sm:%s4]
    %s438 = scalar_lea.vmem [#allocation0], 1352
    %439 = vst [vmem:[%s438] sm:%s4] %v437
    %s440 = smul.addr 2, 168
    %s441 = scalar_lea.vmem %s0, %s440
    %v442 = vld [vmem:[%s441] sm:%s4]
    %s443 = scalar_lea.vmem [#allocation0], 1344
    %444 = vst [vmem:[%s443] sm:%s4] %v442
    %s445 = smul.addr 2, 167
    %s446 = scalar_lea.vmem %s0, %s445
    %v447 = vld [vmem:[%s446] sm:%s4]
    %s448 = scalar_lea.vmem [#allocation0], 1336
    %449 = vst [vmem:[%s448] sm:%s4] %v447
    %s450 = smul.addr 2, 166
    %s451 = scalar_lea.vmem %s0, %s450
    %v452 = vld [vmem:[%s451] sm:%s4]
    %s453 = scalar_lea.vmem [#allocation0], 1328
    %454 = vst [vmem:[%s453] sm:%s4] %v452
    %s455 = smul.addr 2, 165
    %s456 = scalar_lea.vmem %s0, %s455
    %v457 = vld [vmem:[%s456] sm:%s4]
    %s458 = scalar_lea.vmem [#allocation0], 1320
    %459 = vst [vmem:[%s458] sm:%s4] %v457
    %s460 = smul.addr 2, 164
    %s461 = scalar_lea.vmem %s0, %s460
    %v462 = vld [vmem:[%s461] sm:%s4]
    %s463 = scalar_lea.vmem [#allocation0], 1312
    %464 = vst [vmem:[%s463] sm:%s4] %v462
    %s465 = smul.addr 2, 163
    %s466 = scalar_lea.vmem %s0, %s465
    %v467 = vld [vmem:[%s466] sm:%s4]
    %s468 = scalar_lea.vmem [#allocation0], 1304
    %469 = vst [vmem:[%s468] sm:%s4] %v467
    %s470 = smul.addr 2, 162
    %s471 = scalar_lea.vmem %s0, %s470
    %v472 = vld [vmem:[%s471] sm:%s4]
    %s473 = scalar_lea.vmem [#allocation0], 1296
    %474 = vst [vmem:[%s473] sm:%s4] %v472
    %s475 = smul.addr 2, 161
    %s476 = scalar_lea.vmem %s0, %s475
    %v477 = vld [vmem:[%s476] sm:%s4]
    %s478 = scalar_lea.vmem [#allocation0], 1288
    %479 = vst [vmem:[%s478] sm:%s4] %v477
    %s480 = smul.addr 2, 160
    %s481 = scalar_lea.vmem %s0, %s480
    %v482 = vld [vmem:[%s481] sm:%s4]
    %s483 = scalar_lea.vmem [#allocation0], 1280
    %484 = vst [vmem:[%s483] sm:%s4] %v482
    %s485 = smul.addr 2, 159
    %s486 = scalar_lea.vmem %s0, %s485
    %v487 = vld [vmem:[%s486] sm:%s4]
    %s488 = scalar_lea.vmem [#allocation0], 1272
    %489 = vst [vmem:[%s488] sm:%s4] %v487
    %s490 = smul.addr 2, 158
    %s491 = scalar_lea.vmem %s0, %s490
    %v492 = vld [vmem:[%s491] sm:%s4]
    %s493 = scalar_lea.vmem [#allocation0], 1264
    %494 = vst [vmem:[%s493] sm:%s4] %v492
    %s495 = smul.addr 2, 157
    %s496 = scalar_lea.vmem %s0, %s495
    %v497 = vld [vmem:[%s496] sm:%s4]
    %s498 = scalar_lea.vmem [#allocation0], 1256
    %499 = vst [vmem:[%s498] sm:%s4] %v497
    %s500 = smul.addr 2, 156
    %s501 = scalar_lea.vmem %s0, %s500
    %v502 = vld [vmem:[%s501] sm:%s4]
    %s503 = scalar_lea.vmem [#allocation0], 1248
    %504 = vst [vmem:[%s503] sm:%s4] %v502
    %s505 = smul.addr 2, 155
    %s506 = scalar_lea.vmem %s0, %s505
    %v507 = vld [vmem:[%s506] sm:%s4]
    %s508 = scalar_lea.vmem [#allocation0], 1240
    %509 = vst [vmem:[%s508] sm:%s4] %v507
    %s510 = smul.addr 2, 154
    %s511 = scalar_lea.vmem %s0, %s510
    %v512 = vld [vmem:[%s511] sm:%s4]
    %s513 = scalar_lea.vmem [#allocation0], 1232
    %514 = vst [vmem:[%s513] sm:%s4] %v512
    %s515 = smul.addr 2, 153
    %s516 = scalar_lea.vmem %s0, %s515
    %v517 = vld [vmem:[%s516] sm:%s4]
    %s518 = scalar_lea.vmem [#allocation0], 1224
    %519 = vst [vmem:[%s518] sm:%s4] %v517
    %s520 = smul.addr 2, 152
    %s521 = scalar_lea.vmem %s0, %s520
    %v522 = vld [vmem:[%s521] sm:%s4]
    %s523 = scalar_lea.vmem [#allocation0], 1216
    %524 = vst [vmem:[%s523] sm:%s4] %v522
    %s525 = smul.addr 2, 151
    %s526 = scalar_lea.vmem %s0, %s525
    %v527 = vld [vmem:[%s526] sm:%s4]
    %s528 = scalar_lea.vmem [#allocation0], 1208
    %529 = vst [vmem:[%s528] sm:%s4] %v527
    %s530 = smul.addr 2, 150
    %s531 = scalar_lea.vmem %s0, %s530
    %v532 = vld [vmem:[%s531] sm:%s4]
    %s533 = scalar_lea.vmem [#allocation0], 1200
    %534 = vst [vmem:[%s533] sm:%s4] %v532
    %s535 = smul.addr 2, 149
    %s536 = scalar_lea.vmem %s0, %s535
    %v537 = vld [vmem:[%s536] sm:%s4]
    %s538 = scalar_lea.vmem [#allocation0], 1192
    %539 = vst [vmem:[%s538] sm:%s4] %v537
    %s540 = smul.addr 2, 148
    %s541 = scalar_lea.vmem %s0, %s540
    %v542 = vld [vmem:[%s541] sm:%s4]
    %s543 = scalar_lea.vmem [#allocation0], 1184
    %544 = vst [vmem:[%s543] sm:%s4] %v542
    %s545 = smul.addr 2, 147
    %s546 = scalar_lea.vmem %s0, %s545
    %v547 = vld [vmem:[%s546] sm:%s4]
    %s548 = scalar_lea.vmem [#allocation0], 1176
    %549 = vst [vmem:[%s548] sm:%s4] %v547
    %s550 = smul.addr 2, 146
    %s551 = scalar_lea.vmem %s0, %s550
    %v552 = vld [vmem:[%s551] sm:%s4]
    %s553 = scalar_lea.vmem [#allocation0], 1168
    %554 = vst [vmem:[%s553] sm:%s4] %v552
    %s555 = smul.addr 2, 145
    %s556 = scalar_lea.vmem %s0, %s555
    %v557 = vld [vmem:[%s556] sm:%s4]
    %s558 = scalar_lea.vmem [#allocation0], 1160
    %559 = vst [vmem:[%s558] sm:%s4] %v557
    %s560 = smul.addr 2, 144
    %s561 = scalar_lea.vmem %s0, %s560
    %v562 = vld [vmem:[%s561] sm:%s4]
    %s563 = scalar_lea.vmem [#allocation0], 1152
    %564 = vst [vmem:[%s563] sm:%s4] %v562
    %s565 = smul.addr 2, 143
    %s566 = scalar_lea.vmem %s0, %s565
    %v567 = vld [vmem:[%s566] sm:%s4]
    %s568 = scalar_lea.vmem [#allocation0], 1144
    %569 = vst [vmem:[%s568] sm:%s4] %v567
    %s570 = smul.addr 2, 142
    %s571 = scalar_lea.vmem %s0, %s570
    %v572 = vld [vmem:[%s571] sm:%s4]
    %s573 = scalar_lea.vmem [#allocation0], 1136
    %574 = vst [vmem:[%s573] sm:%s4] %v572
    %s575 = smul.addr 2, 141
    %s576 = scalar_lea.vmem %s0, %s575
    %v577 = vld [vmem:[%s576] sm:%s4]
    %s578 = scalar_lea.vmem [#allocation0], 1128
    %579 = vst [vmem:[%s578] sm:%s4] %v577
    %s580 = smul.addr 2, 140
    %s581 = scalar_lea.vmem %s0, %s580
    %v582 = vld [vmem:[%s581] sm:%s4]
    %s583 = scalar_lea.vmem [#allocation0], 1120
    %584 = vst [vmem:[%s583] sm:%s4] %v582
    %s585 = smul.addr 2, 139
    %s586 = scalar_lea.vmem %s0, %s585
    %v587 = vld [vmem:[%s586] sm:%s4]
    %s588 = scalar_lea.vmem [#allocation0], 1112
    %589 = vst [vmem:[%s588] sm:%s4] %v587
    %s590 = smul.addr 2, 138
    %s591 = scalar_lea.vmem %s0, %s590
    %v592 = vld [vmem:[%s591] sm:%s4]
    %s593 = scalar_lea.vmem [#allocation0], 1104
    %594 = vst [vmem:[%s593] sm:%s4] %v592
    %s595 = smul.addr 2, 137
    %s596 = scalar_lea.vmem %s0, %s595
    %v597 = vld [vmem:[%s596] sm:%s4]
    %s598 = scalar_lea.vmem [#allocation0], 1096
    %599 = vst [vmem:[%s598] sm:%s4] %v597
    %s600 = smul.addr 2, 136
    %s601 = scalar_lea.vmem %s0, %s600
    %v602 = vld [vmem:[%s601] sm:%s4]
    %s603 = scalar_lea.vmem [#allocation0], 1088
    %604 = vst [vmem:[%s603] sm:%s4] %v602
    %s605 = smul.addr 2, 135
    %s606 = scalar_lea.vmem %s0, %s605
    %v607 = vld [vmem:[%s606] sm:%s4]
    %s608 = scalar_lea.vmem [#allocation0], 1080
    %609 = vst [vmem:[%s608] sm:%s4] %v607
    %s610 = smul.addr 2, 134
    %s611 = scalar_lea.vmem %s0, %s610
    %v612 = vld [vmem:[%s611] sm:%s4]
    %s613 = scalar_lea.vmem [#allocation0], 1072
    %614 = vst [vmem:[%s613] sm:%s4] %v612
    %s615 = smul.addr 2, 133
    %s616 = scalar_lea.vmem %s0, %s615
    %v617 = vld [vmem:[%s616] sm:%s4]
    %s618 = scalar_lea.vmem [#allocation0], 1064
    %619 = vst [vmem:[%s618] sm:%s4] %v617
    %s620 = smul.addr 2, 132
    %s621 = scalar_lea.vmem %s0, %s620
    %v622 = vld [vmem:[%s621] sm:%s4]
    %s623 = scalar_lea.vmem [#allocation0], 1056
    %624 = vst [vmem:[%s623] sm:%s4] %v622
    %s625 = smul.addr 2, 131
    %s626 = scalar_lea.vmem %s0, %s625
    %v627 = vld [vmem:[%s626] sm:%s4]
    %s628 = scalar_lea.vmem [#allocation0], 1048
    %629 = vst [vmem:[%s628] sm:%s4] %v627
    %s630 = smul.addr 2, 130
    %s631 = scalar_lea.vmem %s0, %s630
    %v632 = vld [vmem:[%s631] sm:%s4]
    %s633 = scalar_lea.vmem [#allocation0], 1040
    %634 = vst [vmem:[%s633] sm:%s4] %v632
    %s635 = smul.addr 2, 129
    %s636 = scalar_lea.vmem %s0, %s635
    %v637 = vld [vmem:[%s636] sm:%s4]
    %s638 = scalar_lea.vmem [#allocation0], 1032
    %639 = vst [vmem:[%s638] sm:%s4] %v637
    %s640 = smul.addr 2, 128
    %s641 = scalar_lea.vmem %s0, %s640
    %v642 = vld [vmem:[%s641] sm:%s4]
    %s643 = scalar_lea.vmem [#allocation0], 1024
    %644 = vst [vmem:[%s643] sm:%s4] %v642
    %s645 = smul.addr 2, 127
    %s646 = scalar_lea.vmem %s0, %s645
    %v647 = vld [vmem:[%s646] sm:%s4]
    %s648 = scalar_lea.vmem [#allocation0], 1016
    %649 = vst [vmem:[%s648] sm:%s4] %v647
    %s650 = smul.addr 2, 126
    %s651 = scalar_lea.vmem %s0, %s650
    %v652 = vld [vmem:[%s651] sm:%s4]
    %s653 = scalar_lea.vmem [#allocation0], 1008
    %654 = vst [vmem:[%s653] sm:%s4] %v652
    %s655 = smul.addr 2, 125
    %s656 = scalar_lea.vmem %s0, %s655
    %v657 = vld [vmem:[%s656] sm:%s4]
    %s658 = scalar_lea.vmem [#allocation0], 1000
    %659 = vst [vmem:[%s658] sm:%s4] %v657
    %s660 = smul.addr 2, 124
    %s661 = scalar_lea.vmem %s0, %s660
    %v662 = vld [vmem:[%s661] sm:%s4]
    %s663 = scalar_lea.vmem [#allocation0], 992
    %664 = vst [vmem:[%s663] sm:%s4] %v662
    %s665 = smul.addr 2, 123
    %s666 = scalar_lea.vmem %s0, %s665
    %v667 = vld [vmem:[%s666] sm:%s4]
    %s668 = scalar_lea.vmem [#allocation0], 984
    %669 = vst [vmem:[%s668] sm:%s4] %v667
    %s670 = smul.addr 2, 122
    %s671 = scalar_lea.vmem %s0, %s670
    %v672 = vld [vmem:[%s671] sm:%s4]
    %s673 = scalar_lea.vmem [#allocation0], 976
    %674 = vst [vmem:[%s673] sm:%s4] %v672
    %s675 = smul.addr 2, 121
    %s676 = scalar_lea.vmem %s0, %s675
    %v677 = vld [vmem:[%s676] sm:%s4]
    %s678 = scalar_lea.vmem [#allocation0], 968
    %679 = vst [vmem:[%s678] sm:%s4] %v677
    %s680 = smul.addr 2, 120
    %s681 = scalar_lea.vmem %s0, %s680
    %v682 = vld [vmem:[%s681] sm:%s4]
    %s683 = scalar_lea.vmem [#allocation0], 960
    %684 = vst [vmem:[%s683] sm:%s4] %v682
    %s685 = smul.addr 2, 119
    %s686 = scalar_lea.vmem %s0, %s685
    %v687 = vld [vmem:[%s686] sm:%s4]
    %s688 = scalar_lea.vmem [#allocation0], 952
    %689 = vst [vmem:[%s688] sm:%s4] %v687
    %s690 = smul.addr 2, 118
    %s691 = scalar_lea.vmem %s0, %s690
    %v692 = vld [vmem:[%s691] sm:%s4]
    %s693 = scalar_lea.vmem [#allocation0], 944
    %694 = vst [vmem:[%s693] sm:%s4] %v692
    %s695 = smul.addr 2, 117
    %s696 = scalar_lea.vmem %s0, %s695
    %v697 = vld [vmem:[%s696] sm:%s4]
    %s698 = scalar_lea.vmem [#allocation0], 936
    %699 = vst [vmem:[%s698] sm:%s4] %v697
    %s700 = smul.addr 2, 116
    %s701 = scalar_lea.vmem %s0, %s700
    %v702 = vld [vmem:[%s701] sm:%s4]
    %s703 = scalar_lea.vmem [#allocation0], 928
    %704 = vst [vmem:[%s703] sm:%s4] %v702
    %s705 = smul.addr 2, 115
    %s706 = scalar_lea.vmem %s0, %s705
    %v707 = vld [vmem:[%s706] sm:%s4]
    %s708 = scalar_lea.vmem [#allocation0], 920
    %709 = vst [vmem:[%s708] sm:%s4] %v707
    %s710 = smul.addr 2, 114
    %s711 = scalar_lea.vmem %s0, %s710
    %v712 = vld [vmem:[%s711] sm:%s4]
    %s713 = scalar_lea.vmem [#allocation0], 912
    %714 = vst [vmem:[%s713] sm:%s4] %v712
    %s715 = smul.addr 2, 113
    %s716 = scalar_lea.vmem %s0, %s715
    %v717 = vld [vmem:[%s716] sm:%s4]
    %s718 = scalar_lea.vmem [#allocation0], 904
    %719 = vst [vmem:[%s718] sm:%s4] %v717
    %s720 = smul.addr 2, 112
    %s721 = scalar_lea.vmem %s0, %s720
    %v722 = vld [vmem:[%s721] sm:%s4]
    %s723 = scalar_lea.vmem [#allocation0], 896
    %724 = vst [vmem:[%s723] sm:%s4] %v722
    %s725 = smul.addr 2, 111
    %s726 = scalar_lea.vmem %s0, %s725
    %v727 = vld [vmem:[%s726] sm:%s4]
    %s728 = scalar_lea.vmem [#allocation0], 888
    %729 = vst [vmem:[%s728] sm:%s4] %v727
    %s730 = smul.addr 2, 110
    %s731 = scalar_lea.vmem %s0, %s730
    %v732 = vld [vmem:[%s731] sm:%s4]
    %s733 = scalar_lea.vmem [#allocation0], 880
    %734 = vst [vmem:[%s733] sm:%s4] %v732
    %s735 = smul.addr 2, 109
    %s736 = scalar_lea.vmem %s0, %s735
    %v737 = vld [vmem:[%s736] sm:%s4]
    %s738 = scalar_lea.vmem [#allocation0], 872
    %739 = vst [vmem:[%s738] sm:%s4] %v737
    %s740 = smul.addr 2, 108
    %s741 = scalar_lea.vmem %s0, %s740
    %v742 = vld [vmem:[%s741] sm:%s4]
    %s743 = scalar_lea.vmem [#allocation0], 864
    %744 = vst [vmem:[%s743] sm:%s4] %v742
    %s745 = smul.addr 2, 107
    %s746 = scalar_lea.vmem %s0, %s745
    %v747 = vld [vmem:[%s746] sm:%s4]
    %s748 = scalar_lea.vmem [#allocation0], 856
    %749 = vst [vmem:[%s748] sm:%s4] %v747
    %s750 = smul.addr 2, 106
    %s751 = scalar_lea.vmem %s0, %s750
    %v752 = vld [vmem:[%s751] sm:%s4]
    %s753 = scalar_lea.vmem [#allocation0], 848
    %754 = vst [vmem:[%s753] sm:%s4] %v752
    %s755 = smul.addr 2, 105
    %s756 = scalar_lea.vmem %s0, %s755
    %v757 = vld [vmem:[%s756] sm:%s4]
    %s758 = scalar_lea.vmem [#allocation0], 840
    %759 = vst [vmem:[%s758] sm:%s4] %v757
    %s760 = smul.addr 2, 104
    %s761 = scalar_lea.vmem %s0, %s760
    %v762 = vld [vmem:[%s761] sm:%s4]
    %s763 = scalar_lea.vmem [#allocation0], 832
    %764 = vst [vmem:[%s763] sm:%s4] %v762
    %s765 = smul.addr 2, 103
    %s766 = scalar_lea.vmem %s0, %s765
    %v767 = vld [vmem:[%s766] sm:%s4]
    %s768 = scalar_lea.vmem [#allocation0], 824
    %769 = vst [vmem:[%s768] sm:%s4] %v767
    %s770 = smul.addr 2, 102
    %s771 = scalar_lea.vmem %s0, %s770
    %v772 = vld [vmem:[%s771] sm:%s4]
    %s773 = scalar_lea.vmem [#allocation0], 816
    %774 = vst [vmem:[%s773] sm:%s4] %v772
    %s775 = smul.addr 2, 101
    %s776 = scalar_lea.vmem %s0, %s775
    %v777 = vld [vmem:[%s776] sm:%s4]
    %s778 = scalar_lea.vmem [#allocation0], 808
    %779 = vst [vmem:[%s778] sm:%s4] %v777
    %s780 = smul.addr 2, 100
    %s781 = scalar_lea.vmem %s0, %s780
    %v782 = vld [vmem:[%s781] sm:%s4]
    %s783 = scalar_lea.vmem [#allocation0], 800
    %784 = vst [vmem:[%s783] sm:%s4] %v782
    %s785 = smul.addr 2, 99
    %s786 = scalar_lea.vmem %s0, %s785
    %v787 = vld [vmem:[%s786] sm:%s4]
    %s788 = scalar_lea.vmem [#allocation0], 792
    %789 = vst [vmem:[%s788] sm:%s4] %v787
    %s790 = smul.addr 2, 98
    %s791 = scalar_lea.vmem %s0, %s790
    %v792 = vld [vmem:[%s791] sm:%s4]
    %s793 = scalar_lea.vmem [#allocation0], 784
    %794 = vst [vmem:[%s793] sm:%s4] %v792
    %s795 = smul.addr 2, 97
    %s796 = scalar_lea.vmem %s0, %s795
    %v797 = vld [vmem:[%s796] sm:%s4]
    %s798 = scalar_lea.vmem [#allocation0], 776
    %799 = vst [vmem:[%s798] sm:%s4] %v797
    %s800 = smul.addr 2, 96
    %s801 = scalar_lea.vmem %s0, %s800
    %v802 = vld [vmem:[%s801] sm:%s4]
    %s803 = scalar_lea.vmem [#allocation0], 768
    %804 = vst [vmem:[%s803] sm:%s4] %v802
    %s805 = smul.addr 2, 95
    %s806 = scalar_lea.vmem %s0, %s805
    %v807 = vld [vmem:[%s806] sm:%s4]
    %s808 = scalar_lea.vmem [#allocation0], 760
    %809 = vst [vmem:[%s808] sm:%s4] %v807
    %s810 = smul.addr 2, 94
    %s811 = scalar_lea.vmem %s0, %s810
    %v812 = vld [vmem:[%s811] sm:%s4]
    %s813 = scalar_lea.vmem [#allocation0], 752
    %814 = vst [vmem:[%s813] sm:%s4] %v812
    %s815 = smul.addr 2, 93
    %s816 = scalar_lea.vmem %s0, %s815
    %v817 = vld [vmem:[%s816] sm:%s4]
    %s818 = scalar_lea.vmem [#allocation0], 744
    %819 = vst [vmem:[%s818] sm:%s4] %v817
    %s820 = smul.addr 2, 92
    %s821 = scalar_lea.vmem %s0, %s820
    %v822 = vld [vmem:[%s821] sm:%s4]
    %s823 = scalar_lea.vmem [#allocation0], 736
    %824 = vst [vmem:[%s823] sm:%s4] %v822
    %s825 = smul.addr 2, 91
    %s826 = scalar_lea.vmem %s0, %s825
    %v827 = vld [vmem:[%s826] sm:%s4]
    %s828 = scalar_lea.vmem [#allocation0], 728
    %829 = vst [vmem:[%s828] sm:%s4] %v827
    %s830 = smul.addr 2, 90
    %s831 = scalar_lea.vmem %s0, %s830
    %v832 = vld [vmem:[%s831] sm:%s4]
    %s833 = scalar_lea.vmem [#allocation0], 720
    %834 = vst [vmem:[%s833] sm:%s4] %v832
    %s835 = smul.addr 2, 89
    %s836 = scalar_lea.vmem %s0, %s835
    %v837 = vld [vmem:[%s836] sm:%s4]
    %s838 = scalar_lea.vmem [#allocation0], 712
    %839 = vst [vmem:[%s838] sm:%s4] %v837
    %s840 = smul.addr 2, 88
    %s841 = scalar_lea.vmem %s0, %s840
    %v842 = vld [vmem:[%s841] sm:%s4]
    %s843 = scalar_lea.vmem [#allocation0], 704
    %844 = vst [vmem:[%s843] sm:%s4] %v842
    %s845 = smul.addr 2, 87
    %s846 = scalar_lea.vmem %s0, %s845
    %v847 = vld [vmem:[%s846] sm:%s4]
    %s848 = scalar_lea.vmem [#allocation0], 696
    %849 = vst [vmem:[%s848] sm:%s4] %v847
    %s850 = smul.addr 2, 86
    %s851 = scalar_lea.vmem %s0, %s850
    %v852 = vld [vmem:[%s851] sm:%s4]
    %s853 = scalar_lea.vmem [#allocation0], 688
    %854 = vst [vmem:[%s853] sm:%s4] %v852
    %s855 = smul.addr 2, 85
    %s856 = scalar_lea.vmem %s0, %s855
    %v857 = vld [vmem:[%s856] sm:%s4]
    %s858 = scalar_lea.vmem [#allocation0], 680
    %859 = vst [vmem:[%s858] sm:%s4] %v857
    %s860 = smul.addr 2, 84
    %s861 = scalar_lea.vmem %s0, %s860
    %v862 = vld [vmem:[%s861] sm:%s4]
    %s863 = scalar_lea.vmem [#allocation0], 672
    %864 = vst [vmem:[%s863] sm:%s4] %v862
    %s865 = smul.addr 2, 83
    %s866 = scalar_lea.vmem %s0, %s865
    %v867 = vld [vmem:[%s866] sm:%s4]
    %s868 = scalar_lea.vmem [#allocation0], 664
    %869 = vst [vmem:[%s868] sm:%s4] %v867
    %s870 = smul.addr 2, 82
    %s871 = scalar_lea.vmem %s0, %s870
    %v872 = vld [vmem:[%s871] sm:%s4]
    %s873 = scalar_lea.vmem [#allocation0], 656
    %874 = vst [vmem:[%s873] sm:%s4] %v872
    %s875 = smul.addr 2, 81
    %s876 = scalar_lea.vmem %s0, %s875
    %v877 = vld [vmem:[%s876] sm:%s4]
    %s878 = scalar_lea.vmem [#allocation0], 648
    %879 = vst [vmem:[%s878] sm:%s4] %v877
    %s880 = smul.addr 2, 80
    %s881 = scalar_lea.vmem %s0, %s880
    %v882 = vld [vmem:[%s881] sm:%s4]
    %s883 = scalar_lea.vmem [#allocation0], 640
    %884 = vst [vmem:[%s883] sm:%s4] %v882
    %s885 = smul.addr 2, 79
    %s886 = scalar_lea.vmem %s0, %s885
    %v887 = vld [vmem:[%s886] sm:%s4]
    %s888 = scalar_lea.vmem [#allocation0], 632
    %889 = vst [vmem:[%s888] sm:%s4] %v887
    %s890 = smul.addr 2, 78
    %s891 = scalar_lea.vmem %s0, %s890
    %v892 = vld [vmem:[%s891] sm:%s4]
    %s893 = scalar_lea.vmem [#allocation0], 624
    %894 = vst [vmem:[%s893] sm:%s4] %v892
    %s895 = smul.addr 2, 77
    %s896 = scalar_lea.vmem %s0, %s895
    %v897 = vld [vmem:[%s896] sm:%s4]
    %s898 = scalar_lea.vmem [#allocation0], 616
    %899 = vst [vmem:[%s898] sm:%s4] %v897
    %s900 = smul.addr 2, 76
    %s901 = scalar_lea.vmem %s0, %s900
    %v902 = vld [vmem:[%s901] sm:%s4]
    %s903 = scalar_lea.vmem [#allocation0], 608
    %904 = vst [vmem:[%s903] sm:%s4] %v902
    %s905 = smul.addr 2, 75
    %s906 = scalar_lea.vmem %s0, %s905
    %v907 = vld [vmem:[%s906] sm:%s4]
    %s908 = scalar_lea.vmem [#allocation0], 600
    %909 = vst [vmem:[%s908] sm:%s4] %v907
    %s910 = smul.addr 2, 74
    %s911 = scalar_lea.vmem %s0, %s910
    %v912 = vld [vmem:[%s911] sm:%s4]
    %s913 = scalar_lea.vmem [#allocation0], 592
    %914 = vst [vmem:[%s913] sm:%s4] %v912
    %s915 = smul.addr 2, 73
    %s916 = scalar_lea.vmem %s0, %s915
    %v917 = vld [vmem:[%s916] sm:%s4]
    %s918 = scalar_lea.vmem [#allocation0], 584
    %919 = vst [vmem:[%s918] sm:%s4] %v917
    %s920 = smul.addr 2, 72
    %s921 = scalar_lea.vmem %s0, %s920
    %v922 = vld [vmem:[%s921] sm:%s4]
    %s923 = scalar_lea.vmem [#allocation0], 576
    %924 = vst [vmem:[%s923] sm:%s4] %v922
    %s925 = smul.addr 2, 71
    %s926 = scalar_lea.vmem %s0, %s925
    %v927 = vld [vmem:[%s926] sm:%s4]
    %s928 = scalar_lea.vmem [#allocation0], 568
    %929 = vst [vmem:[%s928] sm:%s4] %v927
    %s930 = smul.addr 2, 70
    %s931 = scalar_lea.vmem %s0, %s930
    %v932 = vld [vmem:[%s931] sm:%s4]
    %s933 = scalar_lea.vmem [#allocation0], 560
    %934 = vst [vmem:[%s933] sm:%s4] %v932
    %s935 = smul.addr 2, 69
    %s936 = scalar_lea.vmem %s0, %s935
    %v937 = vld [vmem:[%s936] sm:%s4]
    %s938 = scalar_lea.vmem [#allocation0], 552
    %939 = vst [vmem:[%s938] sm:%s4] %v937
    %s940 = smul.addr 2, 68
    %s941 = scalar_lea.vmem %s0, %s940
    %v942 = vld [vmem:[%s941] sm:%s4]
    %s943 = scalar_lea.vmem [#allocation0], 544
    %944 = vst [vmem:[%s943] sm:%s4] %v942
    %s945 = smul.addr 2, 67
    %s946 = scalar_lea.vmem %s0, %s945
    %v947 = vld [vmem:[%s946] sm:%s4]
    %s948 = scalar_lea.vmem [#allocation0], 536
    %949 = vst [vmem:[%s948] sm:%s4] %v947
    %s950 = smul.addr 2, 66
    %s951 = scalar_lea.vmem %s0, %s950
    %v952 = vld [vmem:[%s951] sm:%s4]
    %s953 = scalar_lea.vmem [#allocation0], 528
    %954 = vst [vmem:[%s953] sm:%s4] %v952
    %s955 = smul.addr 2, 65
    %s956 = scalar_lea.vmem %s0, %s955
    %v957 = vld [vmem:[%s956] sm:%s4]
    %s958 = scalar_lea.vmem [#allocation0], 520
    %959 = vst [vmem:[%s958] sm:%s4] %v957
    %s960 = smul.addr 2, 64
    %s961 = scalar_lea.vmem %s0, %s960
    %v962 = vld [vmem:[%s961] sm:%s4]
    %s963 = scalar_lea.vmem [#allocation0], 512
    %964 = vst [vmem:[%s963] sm:%s4] %v962
    %s965 = smul.addr 2, 63
    %s966 = scalar_lea.vmem %s0, %s965
    %v967 = vld [vmem:[%s966] sm:%s4]
    %s968 = scalar_lea.vmem [#allocation0], 504
    %969 = vst [vmem:[%s968] sm:%s4] %v967
    %s970 = smul.addr 2, 62
    %s971 = scalar_lea.vmem %s0, %s970
    %v972 = vld [vmem:[%s971] sm:%s4]
    %s973 = scalar_lea.vmem [#allocation0], 496
    %974 = vst [vmem:[%s973] sm:%s4] %v972
    %s975 = smul.addr 2, 61
    %s976 = scalar_lea.vmem %s0, %s975
    %v977 = vld [vmem:[%s976] sm:%s4]
    %s978 = scalar_lea.vmem [#allocation0], 488
    %979 = vst [vmem:[%s978] sm:%s4] %v977
    %s980 = smul.addr 2, 60
    %s981 = scalar_lea.vmem %s0, %s980
    %v982 = vld [vmem:[%s981] sm:%s4]
    %s983 = scalar_lea.vmem [#allocation0], 480
    %984 = vst [vmem:[%s983] sm:%s4] %v982
    %s985 = smul.addr 2, 59
    %s986 = scalar_lea.vmem %s0, %s985
    %v987 = vld [vmem:[%s986] sm:%s4]
    %s988 = scalar_lea.vmem [#allocation0], 472
    %989 = vst [vmem:[%s988] sm:%s4] %v987
    %s990 = smul.addr 2, 58
    %s991 = scalar_lea.vmem %s0, %s990
    %v992 = vld [vmem:[%s991] sm:%s4]
    %s993 = scalar_lea.vmem [#allocation0], 464
    %994 = vst [vmem:[%s993] sm:%s4] %v992
    %s995 = smul.addr 2, 57
    %s996 = scalar_lea.vmem %s0, %s995
    %v997 = vld [vmem:[%s996] sm:%s4]
    %s998 = scalar_lea.vmem [#allocation0], 456
    %999 = vst [vmem:[%s998] sm:%s4] %v997
    %s1000 = smul.addr 2, 56
    %s1001 = scalar_lea.vmem %s0, %s1000
    %v1002 = vld [vmem:[%s1001] sm:%s4]
    %s1003 = scalar_lea.vmem [#allocation0], 448
    %1004 = vst [vmem:[%s1003] sm:%s4] %v1002
    %s1005 = smul.addr 2, 55
    %s1006 = scalar_lea.vmem %s0, %s1005
    %v1007 = vld [vmem:[%s1006] sm:%s4]
    %s1008 = scalar_lea.vmem [#allocation0], 440
    %1009 = vst [vmem:[%s1008] sm:%s4] %v1007
    %s1010 = smul.addr 2, 54
    %s1011 = scalar_lea.vmem %s0, %s1010
    %v1012 = vld [vmem:[%s1011] sm:%s4]
    %s1013 = scalar_lea.vmem [#allocation0], 432
    %1014 = vst [vmem:[%s1013] sm:%s4] %v1012
    %s1015 = smul.addr 2, 53
    %s1016 = scalar_lea.vmem %s0, %s1015
    %v1017 = vld [vmem:[%s1016] sm:%s4]
    %s1018 = scalar_lea.vmem [#allocation0], 424
    %1019 = vst [vmem:[%s1018] sm:%s4] %v1017
    %s1020 = smul.addr 2, 52
    %s1021 = scalar_lea.vmem %s0, %s1020
    %v1022 = vld [vmem:[%s1021] sm:%s4]
    %s1023 = scalar_lea.vmem [#allocation0], 416
    %1024 = vst [vmem:[%s1023] sm:%s4] %v1022
    %s1025 = smul.addr 2, 51
    %s1026 = scalar_lea.vmem %s0, %s1025
    %v1027 = vld [vmem:[%s1026] sm:%s4]
    %s1028 = scalar_lea.vmem [#allocation0], 408
    %1029 = vst [vmem:[%s1028] sm:%s4] %v1027
    %s1030 = smul.addr 2, 50
    %s1031 = scalar_lea.vmem %s0, %s1030
    %v1032 = vld [vmem:[%s1031] sm:%s4]
    %s1033 = scalar_lea.vmem [#allocation0], 400
    %1034 = vst [vmem:[%s1033] sm:%s4] %v1032
    %s1035 = smul.addr 2, 49
    %s1036 = scalar_lea.vmem %s0, %s1035
    %v1037 = vld [vmem:[%s1036] sm:%s4]
    %s1038 = scalar_lea.vmem [#allocation0], 392
    %1039 = vst [vmem:[%s1038] sm:%s4] %v1037
    %s1040 = smul.addr 2, 48
    %s1041 = scalar_lea.vmem %s0, %s1040
    %v1042 = vld [vmem:[%s1041] sm:%s4]
    %s1043 = scalar_lea.vmem [#allocation0], 384
    %1044 = vst [vmem:[%s1043] sm:%s4] %v1042
    %s1045 = smul.addr 2, 47
    %s1046 = scalar_lea.vmem %s0, %s1045
    %v1047 = vld [vmem:[%s1046] sm:%s4]
    %s1048 = scalar_lea.vmem [#allocation0], 376
    %1049 = vst [vmem:[%s1048] sm:%s4] %v1047
    %s1050 = smul.addr 2, 46
    %s1051 = scalar_lea.vmem %s0, %s1050
    %v1052 = vld [vmem:[%s1051] sm:%s4]
    %s1053 = scalar_lea.vmem [#allocation0], 368
    %1054 = vst [vmem:[%s1053] sm:%s4] %v1052
    %s1055 = smul.addr 2, 45
    %s1056 = scalar_lea.vmem %s0, %s1055
    %v1057 = vld [vmem:[%s1056] sm:%s4]
    %s1058 = scalar_lea.vmem [#allocation0], 360
    %1059 = vst [vmem:[%s1058] sm:%s4] %v1057
    %s1060 = smul.addr 2, 44
    %s1061 = scalar_lea.vmem %s0, %s1060
    %v1062 = vld [vmem:[%s1061] sm:%s4]
    %s1063 = scalar_lea.vmem [#allocation0], 352
    %1064 = vst [vmem:[%s1063] sm:%s4] %v1062
    %s1065 = smul.addr 2, 43
    %s1066 = scalar_lea.vmem %s0, %s1065
    %v1067 = vld [vmem:[%s1066] sm:%s4]
    %s1068 = scalar_lea.vmem [#allocation0], 344
    %1069 = vst [vmem:[%s1068] sm:%s4] %v1067
    %s1070 = smul.addr 2, 42
    %s1071 = scalar_lea.vmem %s0, %s1070
    %v1072 = vld [vmem:[%s1071] sm:%s4]
    %s1073 = scalar_lea.vmem [#allocation0], 336
    %1074 = vst [vmem:[%s1073] sm:%s4] %v1072
    %s1075 = smul.addr 2, 41
    %s1076 = scalar_lea.vmem %s0, %s1075
    %v1077 = vld [vmem:[%s1076] sm:%s4]
    %s1078 = scalar_lea.vmem [#allocation0], 328
    %1079 = vst [vmem:[%s1078] sm:%s4] %v1077
    %s1080 = smul.addr 2, 40
    %s1081 = scalar_lea.vmem %s0, %s1080
    %v1082 = vld [vmem:[%s1081] sm:%s4]
    %s1083 = scalar_lea.vmem [#allocation0], 320
    %1084 = vst [vmem:[%s1083] sm:%s4] %v1082
    %s1085 = smul.addr 2, 39
    %s1086 = scalar_lea.vmem %s0, %s1085
    %v1087 = vld [vmem:[%s1086] sm:%s4]
    %s1088 = scalar_lea.vmem [#allocation0], 312
    %1089 = vst [vmem:[%s1088] sm:%s4] %v1087
    %s1090 = smul.addr 2, 38
    %s1091 = scalar_lea.vmem %s0, %s1090
    %v1092 = vld [vmem:[%s1091] sm:%s4]
    %s1093 = scalar_lea.vmem [#allocation0], 304
    %1094 = vst [vmem:[%s1093] sm:%s4] %v1092
    %s1095 = smul.addr 2, 37
    %s1096 = scalar_lea.vmem %s0, %s1095
    %v1097 = vld [vmem:[%s1096] sm:%s4]
    %s1098 = scalar_lea.vmem [#allocation0], 296
    %1099 = vst [vmem:[%s1098] sm:%s4] %v1097
    %s1100 = smul.addr 2, 36
    %s1101 = scalar_lea.vmem %s0, %s1100
    %v1102 = vld [vmem:[%s1101] sm:%s4]
    %s1103 = scalar_lea.vmem [#allocation0], 288
    %1104 = vst [vmem:[%s1103] sm:%s4] %v1102
    %s1105 = smul.addr 2, 35
    %s1106 = scalar_lea.vmem %s0, %s1105
    %v1107 = vld [vmem:[%s1106] sm:%s4]
    %s1108 = scalar_lea.vmem [#allocation0], 280
    %1109 = vst [vmem:[%s1108] sm:%s4] %v1107
    %s1110 = smul.addr 2, 34
    %s1111 = scalar_lea.vmem %s0, %s1110
    %v1112 = vld [vmem:[%s1111] sm:%s4]
    %s1113 = scalar_lea.vmem [#allocation0], 272
    %1114 = vst [vmem:[%s1113] sm:%s4] %v1112
    %s1115 = smul.addr 2, 33
    %s1116 = scalar_lea.vmem %s0, %s1115
    %v1117 = vld [vmem:[%s1116] sm:%s4]
    %s1118 = scalar_lea.vmem [#allocation0], 264
    %1119 = vst [vmem:[%s1118] sm:%s4] %v1117
    %s1120 = smul.addr 2, 32
    %s1121 = scalar_lea.vmem %s0, %s1120
    %v1122 = vld [vmem:[%s1121] sm:%s4]
    %s1123 = scalar_lea.vmem [#allocation0], 256
    %1124 = vst [vmem:[%s1123] sm:%s4] %v1122
    %s1125 = smul.addr 2, 31
    %s1126 = scalar_lea.vmem %s0, %s1125
    %v1127 = vld [vmem:[%s1126] sm:%s4]
    %s1128 = scalar_lea.vmem [#allocation0], 248
    %1129 = vst [vmem:[%s1128] sm:%s4] %v1127
    %s1130 = smul.addr 2, 30
    %s1131 = scalar_lea.vmem %s0, %s1130
    %v1132 = vld [vmem:[%s1131] sm:%s4]
    %s1133 = scalar_lea.vmem [#allocation0], 240
    %1134 = vst [vmem:[%s1133] sm:%s4] %v1132
    %s1135 = smul.addr 2, 29
    %s1136 = scalar_lea.vmem %s0, %s1135
    %v1137 = vld [vmem:[%s1136] sm:%s4]
    %s1138 = scalar_lea.vmem [#allocation0], 232
    %1139 = vst [vmem:[%s1138] sm:%s4] %v1137
    %s1140 = smul.addr 2, 28
    %s1141 = scalar_lea.vmem %s0, %s1140
    %v1142 = vld [vmem:[%s1141] sm:%s4]
    %s1143 = scalar_lea.vmem [#allocation0], 224
    %1144 = vst [vmem:[%s1143] sm:%s4] %v1142
    %s1145 = smul.addr 2, 27
    %s1146 = scalar_lea.vmem %s0, %s1145
    %v1147 = vld [vmem:[%s1146] sm:%s4]
    %s1148 = scalar_lea.vmem [#allocation0], 216
    %1149 = vst [vmem:[%s1148] sm:%s4] %v1147
    %s1150 = smul.addr 2, 26
    %s1151 = scalar_lea.vmem %s0, %s1150
    %v1152 = vld [vmem:[%s1151] sm:%s4]
    %s1153 = scalar_lea.vmem [#allocation0], 208
    %1154 = vst [vmem:[%s1153] sm:%s4] %v1152
    %s1155 = smul.addr 2, 25
    %s1156 = scalar_lea.vmem %s0, %s1155
    %v1157 = vld [vmem:[%s1156] sm:%s4]
    %s1158 = scalar_lea.vmem [#allocation0], 200
    %1159 = vst [vmem:[%s1158] sm:%s4] %v1157
    %s1160 = smul.addr 2, 24
    %s1161 = scalar_lea.vmem %s0, %s1160
    %v1162 = vld [vmem:[%s1161] sm:%s4]
    %s1163 = scalar_lea.vmem [#allocation0], 192
    %1164 = vst [vmem:[%s1163] sm:%s4] %v1162
    %s1165 = smul.addr 2, 23
    %s1166 = scalar_lea.vmem %s0, %s1165
    %v1167 = vld [vmem:[%s1166] sm:%s4]
    %s1168 = scalar_lea.vmem [#allocation0], 184
    %1169 = vst [vmem:[%s1168] sm:%s4] %v1167
    %s1170 = smul.addr 2, 22
    %s1171 = scalar_lea.vmem %s0, %s1170
    %v1172 = vld [vmem:[%s1171] sm:%s4]
    %s1173 = scalar_lea.vmem [#allocation0], 176
    %1174 = vst [vmem:[%s1173] sm:%s4] %v1172
    %s1175 = smul.addr 2, 21
    %s1176 = scalar_lea.vmem %s0, %s1175
    %v1177 = vld [vmem:[%s1176] sm:%s4]
    %s1178 = scalar_lea.vmem [#allocation0], 168
    %1179 = vst [vmem:[%s1178] sm:%s4] %v1177
    %s1180 = smul.addr 2, 20
    %s1181 = scalar_lea.vmem %s0, %s1180
    %v1182 = vld [vmem:[%s1181] sm:%s4]
    %s1183 = scalar_lea.vmem [#allocation0], 160
    %1184 = vst [vmem:[%s1183] sm:%s4] %v1182
    %s1185 = smul.addr 2, 19
    %s1186 = scalar_lea.vmem %s0, %s1185
    %v1187 = vld [vmem:[%s1186] sm:%s4]
    %s1188 = scalar_lea.vmem [#allocation0], 152
    %1189 = vst [vmem:[%s1188] sm:%s4] %v1187
    %s1190 = smul.addr 2, 18
    %s1191 = scalar_lea.vmem %s0, %s1190
    %v1192 = vld [vmem:[%s1191] sm:%s4]
    %s1193 = scalar_lea.vmem [#allocation0], 144
    %1194 = vst [vmem:[%s1193] sm:%s4] %v1192
    %s1195 = smul.addr 2, 17
    %s1196 = scalar_lea.vmem %s0, %s1195
    %v1197 = vld [vmem:[%s1196] sm:%s4]
    %s1198 = scalar_lea.vmem [#allocation0], 136
    %1199 = vst [vmem:[%s1198] sm:%s4] %v1197
    %s1200 = smul.addr 2, 16
    %s1201 = scalar_lea.vmem %s0, %s1200
    %v1202 = vld [vmem:[%s1201] sm:%s4]
    %s1203 = scalar_lea.vmem [#allocation0], 128
    %1204 = vst [vmem:[%s1203] sm:%s4] %v1202
    %s1205 = smul.addr 2, 15
    %s1206 = scalar_lea.vmem %s0, %s1205
    %v1207 = vld [vmem:[%s1206] sm:%s4]
    %s1208 = scalar_lea.vmem [#allocation0], 120
    %1209 = vst [vmem:[%s1208] sm:%s4] %v1207
    %s1210 = smul.addr 2, 14
    %s1211 = scalar_lea.vmem %s0, %s1210
    %v1212 = vld [vmem:[%s1211] sm:%s4]
    %s1213 = scalar_lea.vmem [#allocation0], 112
    %1214 = vst [vmem:[%s1213] sm:%s4] %v1212
    %s1215 = smul.addr 2, 13
    %s1216 = scalar_lea.vmem %s0, %s1215
    %v1217 = vld [vmem:[%s1216] sm:%s4]
    %s1218 = scalar_lea.vmem [#allocation0], 104
    %1219 = vst [vmem:[%s1218] sm:%s4] %v1217
    %s1220 = smul.addr 2, 12
    %s1221 = scalar_lea.vmem %s0, %s1220
    %v1222 = vld [vmem:[%s1221] sm:%s4]
    %s1223 = scalar_lea.vmem [#allocation0], 96
    %1224 = vst [vmem:[%s1223] sm:%s4] %v1222
    %s1225 = smul.addr 2, 11
    %s1226 = scalar_lea.vmem %s0, %s1225
    %v1227 = vld [vmem:[%s1226] sm:%s4]
    %s1228 = scalar_lea.vmem [#allocation0], 88
    %1229 = vst [vmem:[%s1228] sm:%s4] %v1227
    %s1230 = smul.addr 2, 10
    %s1231 = scalar_lea.vmem %s0, %s1230
    %v1232 = vld [vmem:[%s1231] sm:%s4]
    %s1233 = scalar_lea.vmem [#allocation0], 80
    %1234 = vst [vmem:[%s1233] sm:%s4] %v1232
    %s1235 = smul.addr 2, 9
    %s1236 = scalar_lea.vmem %s0, %s1235
    %v1237 = vld [vmem:[%s1236] sm:%s4]
    %s1238 = scalar_lea.vmem [#allocation0], 72
    %1239 = vst [vmem:[%s1238] sm:%s4] %v1237
    %s1240 = smul.addr 2, 8
    %s1241 = scalar_lea.vmem %s0, %s1240
    %v1242 = vld [vmem:[%s1241] sm:%s4]
    %s1243 = scalar_lea.vmem [#allocation0], 64
    %1244 = vst [vmem:[%s1243] sm:%s4] %v1242
    %s1245 = smul.addr 2, 7
    %s1246 = scalar_lea.vmem %s0, %s1245
    %v1247 = vld [vmem:[%s1246] sm:%s4]
    %s1248 = scalar_lea.vmem [#allocation0], 56
    %1249 = vst [vmem:[%s1248] sm:%s4] %v1247
    %s1250 = smul.addr 2, 6
    %s1251 = scalar_lea.vmem %s0, %s1250
    %v1252 = vld [vmem:[%s1251] sm:%s4]
    %s1253 = scalar_lea.vmem [#allocation0], 48
    %1254 = vst [vmem:[%s1253] sm:%s4] %v1252
    %s1255 = smul.addr 2, 5
    %s1256 = scalar_lea.vmem %s0, %s1255
    %v1257 = vld [vmem:[%s1256] sm:%s4]
    %s1258 = scalar_lea.vmem [#allocation0], 40
    %1259 = vst [vmem:[%s1258] sm:%s4] %v1257
    %s1260 = smul.addr 2, 4
    %s1261 = scalar_lea.vmem %s0, %s1260
    %v1262 = vld [vmem:[%s1261] sm:%s4]
    %s1263 = scalar_lea.vmem [#allocation0], 32
    %1264 = vst [vmem:[%s1263] sm:%s4] %v1262
    %s1265 = smul.addr 2, 3
    %s1266 = scalar_lea.vmem %s0, %s1265
    %v1267 = vld [vmem:[%s1266] sm:%s4]
    %s1268 = scalar_lea.vmem [#allocation0], 24
    %1269 = vst [vmem:[%s1268] sm:%s4] %v1267
    %s1270 = smul.addr 2, 2
    %s1271 = scalar_lea.vmem %s0, %s1270
    %v1272 = vld [vmem:[%s1271] sm:%s4]
    %s1273 = scalar_lea.vmem [#allocation0], 16
    %1274 = vst [vmem:[%s1273] sm:%s4] %v1272
    %s1275 = scalar_lea.vmem %s0, 2
    %v1276 = vld [vmem:[%s1275] sm:%s4]
    %s1277 = scalar_lea.vmem [#allocation0], 8
    %1278 = vst [vmem:[%s1277] sm:%s4] %v1276
    %v1279 = vld [vmem:[%s0] sm:%s4]
    %1280 = vst [vmem:[#allocation0] sm:%s4] %v1279
    %v1281 = vld [vmem:[#allocation0] sm:$0x1]
    %s1282 = scalar_lea.vmem [#allocation0], 63
    %v1283 = vld [vmem:[%s1282] sm:$0x2]
    %vm1284 = vcmask 1041409
    %v1285 = vsel %vm1284, %v1283, %v1281
    %s1286 = scalar_lea.vmem [#allocation0], 126
    %v1287 = vld [vmem:[%s1286] sm:$0x4]
    %vm1288 = vcmask 1042434
    %v1289 = vsel %vm1288, %v1287, %v1285
    %s1290 = scalar_lea.vmem [#allocation0], 189
    %v1291 = vld [vmem:[%s1290] sm:$0x8]
    %vm1292 = vcmask 1043459
    %v1293 = vsel %vm1292, %v1291, %v1289
    %s1294 = scalar_lea.vmem [#allocation0], 252
    %v1295 = vld [vmem:[%s1294] sm:$0x10]
    %vm1296 = vcmask 1044484
    %v1297 = vsel %vm1296, %v1295, %v1293
    %s1298 = scalar_lea.vmem [#allocation0], 315
    %v1299 = vld [vmem:[%s1298] sm:$0x20]
    %vm1300 = vcmask 1045509
    %v1301 = vsel %vm1300, %v1299, %v1297
    %s1302 = scalar_lea.vmem [#allocation0], 378
    %v1303 = vld [vmem:[%s1302] sm:$0x40]
    %vm1304 = vcmask 1046534
    %v1305 = vsel %vm1304, %v1303, %v1301
    %s1306 = scalar_lea.vmem [#allocation0], 441
    %v1307 = vld [vmem:[%s1306] sm:$0x80]
    %vm1308 = vcmask 1047559
    %v1309 = vsel %vm1308, %v1307, %v1305
    %vm1310 = vcmask 64512
    %1311 = vst.msk [vmem:[%s1] ss:$8 sm:$0x3] %vm1310, %v1309
    %s1312 = scalar_lea.vmem %s1, 4294967281
    %1313 = vst.msk [vmem:[%s1312] ss:$8 sm:$0xc] %vm1310, %v1309
    %s1314 = scalar_lea.vmem %s1, 4294967266
    %1315 = vst.msk [vmem:[%s1314] ss:$8 sm:$0x30] %vm1310, %v1309
    %s1316 = scalar_lea.vmem %s1, 4294967251
    %1317 = vst.msk [vmem:[%s1316] ss:$8 sm:$0xc0] %vm1310, %v1309
    %s1318 = scalar_lea.vmem [#allocation0], 512
    %v1319 = vld [vmem:[%s1318] sm:$0x1]
    %s1320 = scalar_lea.vmem [#allocation0], 575
    %v1321 = vld [vmem:[%s1320] sm:$0x2]
    %vm1322 = vcmask 1041409
    %v1323 = vsel %vm1322, %v1321, %v1319
    %s1324 = scalar_lea.vmem [#allocation0], 638
    %v1325 = vld [vmem:[%s1324] sm:$0x4]
    %vm1326 = vcmask 1042434
    %v1327 = vsel %vm1326, %v1325, %v1323
    %s1328 = scalar_lea.vmem [#allocation0], 701
    %v1329 = vld [vmem:[%s1328] sm:$0x8]
    %vm1330 = vcmask 1043459
    %v1331 = vsel %vm1330, %v1329, %v1327
    %s1332 = scalar_lea.vmem [#allocation0], 764
    %v1333 = vld [vmem:[%s1332] sm:$0x10]
    %vm1334 = vcmask 1044484
    %v1335 = vsel %vm1334, %v1333, %v1331
    %s1336 = scalar_lea.vmem [#allocation0], 827
    %v1337 = vld [vmem:[%s1336] sm:$0x20]
    %vm1338 = vcmask 1045509
    %v1339 = vsel %vm1338, %v1337, %v1335
    %s1340 = scalar_lea.vmem [#allocation0], 890
    %v1341 = vld [vmem:[%s1340] sm:$0x40]
    %vm1342 = vcmask 1046534
    %v1343 = vsel %vm1342, %v1341, %v1339
    %s1344 = scalar_lea.vmem [#allocation0], 953
    %v1345 = vld [vmem:[%s1344] sm:$0x80]
    %vm1346 = vcmask 1047559
    %v1347 = vsel %vm1346, %v1345, %v1343
    %vm1348 = vcmask 64512
    %s1349 = scalar_lea.vmem %s1, 4
    %1350 = vst.msk [vmem:[%s1349] ss:$8 sm:$0x3] %vm1348, %v1347
    %s1351 = scalar_lea.vmem %s1, 4294967285
    %1352 = vst.msk [vmem:[%s1351] ss:$8 sm:$0xc] %vm1348, %v1347
    %s1353 = scalar_lea.vmem %s1, 4294967270
    %1354 = vst.msk [vmem:[%s1353] ss:$8 sm:$0x30] %vm1348, %v1347
    %s1355 = scalar_lea.vmem %s1, 4294967255
    %1356 = vst.msk [vmem:[%s1355] ss:$8 sm:$0xc0] %vm1348, %v1347
    %s1357 = scalar_lea.vmem [#allocation0], 1024
    %v1358 = vld [vmem:[%s1357] sm:$0x1]
    %s1359 = scalar_lea.vmem [#allocation0], 1087
    %v1360 = vld [vmem:[%s1359] sm:$0x2]
    %vm1361 = vcmask 1041409
    %v1362 = vsel %vm1361, %v1360, %v1358
    %s1363 = scalar_lea.vmem [#allocation0], 1150
    %v1364 = vld [vmem:[%s1363] sm:$0x4]
    %vm1365 = vcmask 1042434
    %v1366 = vsel %vm1365, %v1364, %v1362
    %s1367 = scalar_lea.vmem [#allocation0], 1213
    %v1368 = vld [vmem:[%s1367] sm:$0x8]
    %vm1369 = vcmask 1043459
    %v1370 = vsel %vm1369, %v1368, %v1366
    %s1371 = scalar_lea.vmem [#allocation0], 1276
    %v1372 = vld [vmem:[%s1371] sm:$0x10]
    %vm1373 = vcmask 1044484
    %v1374 = vsel %vm1373, %v1372, %v1370
    %s1375 = scalar_lea.vmem [#allocation0], 1339
    %v1376 = vld [vmem:[%s1375] sm:$0x20]
    %vm1377 = vcmask 1045509
    %v1378 = vsel %vm1377, %v1376, %v1374
    %s1379 = scalar_lea.vmem [#allocation0], 1402
    %v1380 = vld [vmem:[%s1379] sm:$0x40]
    %vm1381 = vcmask 1046534
    %v1382 = vsel %vm1381, %v1380, %v1378
    %s1383 = scalar_lea.vmem [#allocation0], 1465
    %v1384 = vld [vmem:[%s1383] sm:$0x80]
    %vm1385 = vcmask 1047559
    %v1386 = vsel %vm1385, %v1384, %v1382
    %vm1387 = vcmask 64512
    %s1388 = scalar_lea.vmem %s1, 16
    %1389 = vst.msk [vmem:[%s1388] ss:$8 sm:$0x3] %vm1387, %v1386
    %s1390 = scalar_lea.vmem %s1, 1
    %1391 = vst.msk [vmem:[%s1390] ss:$8 sm:$0xc] %vm1387, %v1386
    %s1392 = scalar_lea.vmem %s1, 4294967282
    %1393 = vst.msk [vmem:[%s1392] ss:$8 sm:$0x30] %vm1387, %v1386
    %s1394 = scalar_lea.vmem %s1, 4294967267
    %1395 = vst.msk [vmem:[%s1394] ss:$8 sm:$0xc0] %vm1387, %v1386
    %s1396 = scalar_lea.vmem [#allocation0], 1536
    %v1397 = vld [vmem:[%s1396] sm:$0x1]
    %s1398 = scalar_lea.vmem [#allocation0], 1599
    %v1399 = vld [vmem:[%s1398] sm:$0x2]
    %vm1400 = vcmask 1041409
    %v1401 = vsel %vm1400, %v1399, %v1397
    %s1402 = scalar_lea.vmem [#allocation0], 1662
    %v1403 = vld [vmem:[%s1402] sm:$0x4]
    %vm1404 = vcmask 1042434
    %v1405 = vsel %vm1404, %v1403, %v1401
    %s1406 = scalar_lea.vmem [#allocation0], 1725
    %v1407 = vld [vmem:[%s1406] sm:$0x8]
    %vm1408 = vcmask 1043459
    %v1409 = vsel %vm1408, %v1407, %v1405
    %s1410 = scalar_lea.vmem [#allocation0], 1788
    %v1411 = vld [vmem:[%s1410] sm:$0x10]
    %vm1412 = vcmask 1044484
    %v1413 = vsel %vm1412, %v1411, %v1409
    %s1414 = scalar_lea.vmem [#allocation0], 1851
    %v1415 = vld [vmem:[%s1414] sm:$0x20]
    %vm1416 = vcmask 1045509
    %v1417 = vsel %vm1416, %v1415, %v1413
    %s1418 = scalar_lea.vmem [#allocation0], 1914
    %v1419 = vld [vmem:[%s1418] sm:$0x40]
    %vm1420 = vcmask 1046534
    %v1421 = vsel %vm1420, %v1419, %v1417
    %s1422 = scalar_lea.vmem [#allocation0], 1977
    %v1423 = vld [vmem:[%s1422] sm:$0x80]
    %vm1424 = vcmask 1047559
    %v1425 = vsel %vm1424, %v1423, %v1421
    %vm1426 = vcmask 64512
    %s1427 = scalar_lea.vmem %s1, 20
    %1428 = vst.msk [vmem:[%s1427] ss:$8 sm:$0x3] %vm1426, %v1425
    %s1429 = scalar_lea.vmem %s1, 5
    %1430 = vst.msk [vmem:[%s1429] ss:$8 sm:$0xc] %vm1426, %v1425
    %s1431 = scalar_lea.vmem %s1, 4294967286
    %1432 = vst.msk [vmem:[%s1431] ss:$8 sm:$0x30] %vm1426, %v1425
    %s1433 = scalar_lea.vmem %s1, 4294967271
    %1434 = vst.msk [vmem:[%s1433] ss:$8 sm:$0xc0] %vm1426, %v1425
    %s1435 = scalar_lea.vmem [#allocation0], 57
    %v1436 = vld [vmem:[%s1435] sm:$0x1]
    %s1437 = scalar_lea.vmem [#allocation0], 184
    %v1438 = vld [vmem:[%s1437] sm:$0x2]
    %vm1439 = vcmask 1041409
    %v1440 = vsel %vm1439, %v1438, %v1436
    %s1441 = scalar_lea.vmem [#allocation0], 311
    %v1442 = vld [vmem:[%s1441] sm:$0x4]
    %vm1443 = vcmask 1042434
    %v1444 = vsel %vm1443, %v1442, %v1440
    %s1445 = scalar_lea.vmem [#allocation0], 438
    %v1446 = vld [vmem:[%s1445] sm:$0x8]
    %vm1447 = vcmask 1043459
    %v1448 = vsel %vm1447, %v1446, %v1444
    %s1449 = scalar_lea.vmem [#allocation0], 565
    %v1450 = vld [vmem:[%s1449] sm:$0x10]
    %vm1451 = vcmask 1044484
    %v1452 = vsel %vm1451, %v1450, %v1448
    %s1453 = scalar_lea.vmem [#allocation0], 692
    %v1454 = vld [vmem:[%s1453] sm:$0x20]
    %vm1455 = vcmask 1045509
    %v1456 = vsel %vm1455, %v1454, %v1452
    %s1457 = scalar_lea.vmem [#allocation0], 819
    %v1458 = vld [vmem:[%s1457] sm:$0x40]
    %vm1459 = vcmask 1046534
    %v1460 = vsel %vm1459, %v1458, %v1456
    %s1461 = scalar_lea.vmem [#allocation0], 946
    %v1462 = vld [vmem:[%s1461] sm:$0x80]
    %vm1463 = vcmask 1047559
    %v1464 = vsel %vm1463, %v1462, %v1460
    %1465 = vrot.lane.b32.xlu0 %v1464, 120
    %v1466 = vpop.permute.xlu0 %1465
    %vm1467 = vcmask 1048512
    %1468 = vst.msk [vmem:[%s1] sm:$0xff] %vm1467, %v1466
    %s1469 = scalar_lea.vmem [#allocation0], 121
    %v1470 = vld [vmem:[%s1469] sm:$0x1]
    %s1471 = scalar_lea.vmem [#allocation0], 248
    %v1472 = vld [vmem:[%s1471] sm:$0x2]
    %vm1473 = vcmask 1041409
    %v1474 = vsel %vm1473, %v1472, %v1470
    %s1475 = scalar_lea.vmem [#allocation0], 375
    %v1476 = vld [vmem:[%s1475] sm:$0x4]
    %vm1477 = vcmask 1042434
    %v1478 = vsel %vm1477, %v1476, %v1474
    %s1479 = scalar_lea.vmem [#allocation0], 502
    %v1480 = vld [vmem:[%s1479] sm:$0x8]
    %vm1481 = vcmask 1043459
    %v1482 = vsel %vm1481, %v1480, %v1478
    %s1483 = scalar_lea.vmem [#allocation0], 629
    %v1484 = vld [vmem:[%s1483] sm:$0x10]
    %vm1485 = vcmask 1044484
    %v1486 = vsel %vm1485, %v1484, %v1482
    %s1487 = scalar_lea.vmem [#allocation0], 756
    %v1488 = vld [vmem:[%s1487] sm:$0x20]
    %vm1489 = vcmask 1045509
    %v1490 = vsel %vm1489, %v1488, %v1486
    %s1491 = scalar_lea.vmem [#allocation0], 883
    %v1492 = vld [vmem:[%s1491] sm:$0x40]
    %vm1493 = vcmask 1046534
    %v1494 = vsel %vm1493, %v1492, %v1490
    %s1495 = scalar_lea.vmem [#allocation0], 1010
    %v1496 = vld [vmem:[%s1495] sm:$0x80]
    %vm1497 = vcmask 1047559
    %v1498 = vsel %vm1497, %v1496, %v1494
    %1499 = vrot.lane.b32.xlu0 %v1498, 120
    %v1500 = vpop.permute.xlu0 %1499
    %vm1501 = vcmask 1048512
    %s1502 = scalar_lea.vmem %s1, 8
    %1503 = vst.msk [vmem:[%s1502] sm:$0xff] %vm1501, %v1500
    %s1504 = scalar_lea.vmem [#allocation0], 1081
    %v1505 = vld [vmem:[%s1504] sm:$0x1]
    %s1506 = scalar_lea.vmem [#allocation0], 1208
    %v1507 = vld [vmem:[%s1506] sm:$0x2]
    %vm1508 = vcmask 1041409
    %v1509 = vsel %vm1508, %v1507, %v1505
    %s1510 = scalar_lea.vmem [#allocation0], 1335
    %v1511 = vld [vmem:[%s1510] sm:$0x4]
    %vm1512 = vcmask 1042434
    %v1513 = vsel %vm1512, %v1511, %v1509
    %s1514 = scalar_lea.vmem [#allocation0], 1462
    %v1515 = vld [vmem:[%s1514] sm:$0x8]
    %vm1516 = vcmask 1043459
    %v1517 = vsel %vm1516, %v1515, %v1513
    %s1518 = scalar_lea.vmem [#allocation0], 1589
    %v1519 = vld [vmem:[%s1518] sm:$0x10]
    %vm1520 = vcmask 1044484
    %v1521 = vsel %vm1520, %v1519, %v1517
    %s1522 = scalar_lea.vmem [#allocation0], 1716
    %v1523 = vld [vmem:[%s1522] sm:$0x20]
    %vm1524 = vcmask 1045509
    %v1525 = vsel %vm1524, %v1523, %v1521
    %s1526 = scalar_lea.vmem [#allocation0], 1843
    %v1527 = vld [vmem:[%s1526] sm:$0x40]
    %vm1528 = vcmask 1046534
    %v1529 = vsel %vm1528, %v1527, %v1525
    %s1530 = scalar_lea.vmem [#allocation0], 1970
    %v1531 = vld [vmem:[%s1530] sm:$0x80]
    %vm1532 = vcmask 1047559
    %v1533 = vsel %vm1532, %v1531, %v1529
    %1534 = vrot.lane.b32.xlu0 %v1533, 120
    %v1535 = vpop.permute.xlu0 %1534
    %vm1536 = vcmask 1048512
    %s1537 = scalar_lea.vmem %s1, 16
    %1538 = vst.msk [vmem:[%s1537] sm:$0xff] %vm1536, %v1535
    %s1539 = scalar_lea.vmem [#allocation0], 1145
    %v1540 = vld [vmem:[%s1539] sm:$0x1]
    %s1541 = scalar_lea.vmem [#allocation0], 1272
    %v1542 = vld [vmem:[%s1541] sm:$0x2]
    %vm1543 = vcmask 1041409
    %v1544 = vsel %vm1543, %v1542, %v1540
    %s1545 = scalar_lea.vmem [#allocation0], 1399
    %v1546 = vld [vmem:[%s1545] sm:$0x4]
    %vm1547 = vcmask 1042434
    %v1548 = vsel %vm1547, %v1546, %v1544
    %s1549 = scalar_lea.vmem [#allocation0], 1526
    %v1550 = vld [vmem:[%s1549] sm:$0x8]
    %vm1551 = vcmask 1043459
    %v1552 = vsel %vm1551, %v1550, %v1548
    %s1553 = scalar_lea.vmem [#allocation0], 1653
    %v1554 = vld [vmem:[%s1553] sm:$0x10]
    %vm1555 = vcmask 1044484
    %v1556 = vsel %vm1555, %v1554, %v1552
    %s1557 = scalar_lea.vmem [#allocation0], 1780
    %v1558 = vld [vmem:[%s1557] sm:$0x20]
    %vm1559 = vcmask 1045509
    %v1560 = vsel %vm1559, %v1558, %v1556
    %s1561 = scalar_lea.vmem [#allocation0], 1907
    %v1562 = vld [vmem:[%s1561] sm:$0x40]
    %vm1563 = vcmask 1046534
    %v1564 = vsel %vm1563, %v1562, %v1560
    %s1565 = scalar_lea.vmem [#allocation0], 2034
    %v1566 = vld [vmem:[%s1565] sm:$0x80]
    %vm1567 = vcmask 1047559
    %v1568 = vsel %vm1567, %v1566, %v1564
    %1569 = vrot.lane.b32.xlu0 %v1568, 120
    %v1570 = vpop.permute.xlu0 %1569
    %vm1571 = vcmask 1048512
    %s1572 = scalar_lea.vmem %s1, 24
    %1573 = vst.msk [vmem:[%s1572] sm:$0xff] %vm1571, %v1570
    %s1574 = scalar_lea.vmem [#allocation0], 56
    %v1575 = vld [vmem:[%s1574] sm:$0x1]
    %s1576 = scalar_lea.vmem [#allocation0], 183
    %v1577 = vld [vmem:[%s1576] sm:$0x2]
    %vm1578 = vcmask 1041409
    %v1579 = vsel %vm1578, %v1577, %v1575
    %s1580 = scalar_lea.vmem [#allocation0], 310
    %v1581 = vld [vmem:[%s1580] sm:$0x4]
    %vm1582 = vcmask 1042434
    %v1583 = vsel %vm1582, %v1581, %v1579
    %s1584 = scalar_lea.vmem [#allocation0], 437
    %v1585 = vld [vmem:[%s1584] sm:$0x8]
    %vm1586 = vcmask 1043459
    %v1587 = vsel %vm1586, %v1585, %v1583
    %s1588 = scalar_lea.vmem [#allocation0], 564
    %v1589 = vld [vmem:[%s1588] sm:$0x10]
    %vm1590 = vcmask 1044484
    %v1591 = vsel %vm1590, %v1589, %v1587
    %s1592 = scalar_lea.vmem [#allocation0], 691
    %v1593 = vld [vmem:[%s1592] sm:$0x20]
    %vm1594 = vcmask 1045509
    %v1595 = vsel %vm1594, %v1593, %v1591
    %s1596 = scalar_lea.vmem [#allocation0], 818
    %v1597 = vld [vmem:[%s1596] sm:$0x40]
    %vm1598 = vcmask 1046534
    %v1599 = vsel %vm1598, %v1597, %v1595
    %s1600 = scalar_lea.vmem [#allocation0], 945
    %v1601 = vld [vmem:[%s1600] sm:$0x80]
    %vm1602 = vcmask 1047559
    %v1603 = vsel %vm1602, %v1601, %v1599
    %1604 = vrot.lane.b32.xlu0 %v1603, 112
    %v1605 = vpop.permute.xlu0 %1604
    %vm1606 = vcmask 982912
    %1607 = vst.msk [vmem:[%s1] sm:$0xff] %vm1606, %v1605
    %s1608 = scalar_lea.vmem [#allocation0], 120
    %v1609 = vld [vmem:[%s1608] sm:$0x1]
    %s1610 = scalar_lea.vmem [#allocation0], 247
    %v1611 = vld [vmem:[%s1610] sm:$0x2]
    %vm1612 = vcmask 1041409
    %v1613 = vsel %vm1612, %v1611, %v1609
    %s1614 = scalar_lea.vmem [#allocation0], 374
    %v1615 = vld [vmem:[%s1614] sm:$0x4]
    %vm1616 = vcmask 1042434
    %v1617 = vsel %vm1616, %v1615, %v1613
    %s1618 = scalar_lea.vmem [#allocation0], 501
    %v1619 = vld [vmem:[%s1618] sm:$0x8]
    %vm1620 = vcmask 1043459
    %v1621 = vsel %vm1620, %v1619, %v1617
    %s1622 = scalar_lea.vmem [#allocation0], 628
    %v1623 = vld [vmem:[%s1622] sm:$0x10]
    %vm1624 = vcmask 1044484
    %v1625 = vsel %vm1624, %v1623, %v1621
    %s1626 = scalar_lea.vmem [#allocation0], 755
    %v1627 = vld [vmem:[%s1626] sm:$0x20]
    %vm1628 = vcmask 1045509
    %v1629 = vsel %vm1628, %v1627, %v1625
    %s1630 = scalar_lea.vmem [#allocation0], 882
    %v1631 = vld [vmem:[%s1630] sm:$0x40]
    %vm1632 = vcmask 1046534
    %v1633 = vsel %vm1632, %v1631, %v1629
    %s1634 = scalar_lea.vmem [#allocation0], 1009
    %v1635 = vld [vmem:[%s1634] sm:$0x80]
    %vm1636 = vcmask 1047559
    %v1637 = vsel %vm1636, %v1635, %v1633
    %1638 = vrot.lane.b32.xlu0 %v1637, 112
    %v1639 = vpop.permute.xlu0 %1638
    %vm1640 = vcmask 982912
    %s1641 = scalar_lea.vmem %s1, 8
    %1642 = vst.msk [vmem:[%s1641] sm:$0xff] %vm1640, %v1639
    %s1643 = scalar_lea.vmem [#allocation0], 1080
    %v1644 = vld [vmem:[%s1643] sm:$0x1]
    %s1645 = scalar_lea.vmem [#allocation0], 1207
    %v1646 = vld [vmem:[%s1645] sm:$0x2]
    %vm1647 = vcmask 1041409
    %v1648 = vsel %vm1647, %v1646, %v1644
    %s1649 = scalar_lea.vmem [#allocation0], 1334
    %v1650 = vld [vmem:[%s1649] sm:$0x4]
    %vm1651 = vcmask 1042434
    %v1652 = vsel %vm1651, %v1650, %v1648
    %s1653 = scalar_lea.vmem [#allocation0], 1461
    %v1654 = vld [vmem:[%s1653] sm:$0x8]
    %vm1655 = vcmask 1043459
    %v1656 = vsel %vm1655, %v1654, %v1652
    %s1657 = scalar_lea.vmem [#allocation0], 1588
    %v1658 = vld [vmem:[%s1657] sm:$0x10]
    %vm1659 = vcmask 1044484
    %v1660 = vsel %vm1659, %v1658, %v1656
    %s1661 = scalar_lea.vmem [#allocation0], 1715
    %v1662 = vld [vmem:[%s1661] sm:$0x20]
    %vm1663 = vcmask 1045509
    %v1664 = vsel %vm1663, %v1662, %v1660
    %s1665 = scalar_lea.vmem [#allocation0], 1842
    %v1666 = vld [vmem:[%s1665] sm:$0x40]
    %vm1667 = vcmask 1046534
    %v1668 = vsel %vm1667, %v1666, %v1664
    %s1669 = scalar_lea.vmem [#allocation0], 1969
    %v1670 = vld [vmem:[%s1669] sm:$0x80]
    %vm1671 = vcmask 1047559
    %v1672 = vsel %vm1671, %v1670, %v1668
    %1673 = vrot.lane.b32.xlu0 %v1672, 112
    %v1674 = vpop.permute.xlu0 %1673
    %vm1675 = vcmask 982912
    %s1676 = scalar_lea.vmem %s1, 16
    %1677 = vst.msk [vmem:[%s1676] sm:$0xff] %vm1675, %v1674
    %s1678 = scalar_lea.vmem [#allocation0], 1144
    %v1679 = vld [vmem:[%s1678] sm:$0x1]
    %s1680 = scalar_lea.vmem [#allocation0], 1271
    %v1681 = vld [vmem:[%s1680] sm:$0x2]
    %vm1682 = vcmask 1041409
    %v1683 = vsel %vm1682, %v1681, %v1679
    %s1684 = scalar_lea.vmem [#allocation0], 1398
    %v1685 = vld [vmem:[%s1684] sm:$0x4]
    %vm1686 = vcmask 1042434
    %v1687 = vsel %vm1686, %v1685, %v1683
    %s1688 = scalar_lea.vmem [#allocation0], 1525
    %v1689 = vld [vmem:[%s1688] sm:$0x8]
    %vm1690 = vcmask 1043459
    %v1691 = vsel %vm1690, %v1689, %v1687
    %s1692 = scalar_lea.vmem [#allocation0], 1652
    %v1693 = vld [vmem:[%s1692] sm:$0x10]
    %vm1694 = vcmask 1044484
    %v1695 = vsel %vm1694, %v1693, %v1691
    %s1696 = scalar_lea.vmem [#allocation0], 1779
    %v1697 = vld [vmem:[%s1696] sm:$0x20]
    %vm1698 = vcmask 1045509
    %v1699 = vsel %vm1698, %v1697, %v1695
    %s1700 = scalar_lea.vmem [#allocation0], 1906
    %v1701 = vld [vmem:[%s1700] sm:$0x40]
    %vm1702 = vcmask 1046534
    %v1703 = vsel %vm1702, %v1701, %v1699
    %s1704 = scalar_lea.vmem [#allocation0], 2033
    %v1705 = vld [vmem:[%s1704] sm:$0x80]
    %vm1706 = vcmask 1047559
    %v1707 = vsel %vm1706, %v1705, %v1703
    %1708 = vrot.lane.b32.xlu0 %v1707, 112
    %v1709 = vpop.permute.xlu0 %1708
    %vm1710 = vcmask 982912
    %s1711 = scalar_lea.vmem %s1, 24
    %1712 = vst.msk [vmem:[%s1711] sm:$0xff] %vm1710, %v1709
    %s1713 = scalar_lea.vmem [#allocation0], 49
    %v1714 = vld [vmem:[%s1713] sm:$0x1]
    %s1715 = scalar_lea.vmem [#allocation0], 176
    %v1716 = vld [vmem:[%s1715] sm:$0x2]
    %vm1717 = vcmask 1041409
    %v1718 = vsel %vm1717, %v1716, %v1714
    %s1719 = scalar_lea.vmem [#allocation0], 303
    %v1720 = vld [vmem:[%s1719] sm:$0x4]
    %vm1721 = vcmask 1042434
    %v1722 = vsel %vm1721, %v1720, %v1718
    %s1723 = scalar_lea.vmem [#allocation0], 430
    %v1724 = vld [vmem:[%s1723] sm:$0x8]
    %vm1725 = vcmask 1043459
    %v1726 = vsel %vm1725, %v1724, %v1722
    %s1727 = scalar_lea.vmem [#allocation0], 557
    %v1728 = vld [vmem:[%s1727] sm:$0x10]
    %vm1729 = vcmask 1044484
    %v1730 = vsel %vm1729, %v1728, %v1726
    %s1731 = scalar_lea.vmem [#allocation0], 684
    %v1732 = vld [vmem:[%s1731] sm:$0x20]
    %vm1733 = vcmask 1045509
    %v1734 = vsel %vm1733, %v1732, %v1730
    %s1735 = scalar_lea.vmem [#allocation0], 811
    %v1736 = vld [vmem:[%s1735] sm:$0x40]
    %vm1737 = vcmask 1046534
    %v1738 = vsel %vm1737, %v1736, %v1734
    %s1739 = scalar_lea.vmem [#allocation0], 938
    %v1740 = vld [vmem:[%s1739] sm:$0x80]
    %vm1741 = vcmask 1047559
    %v1742 = vsel %vm1741, %v1740, %v1738
    %1743 = vrot.lane.b32.xlu0 %v1742, 104
    %v1744 = vpop.permute.xlu0 %1743
    %vm1745 = vcmask 917312
    %1746 = vst.msk [vmem:[%s1] sm:$0xff] %vm1745, %v1744
    %s1747 = scalar_lea.vmem [#allocation0], 113
    %v1748 = vld [vmem:[%s1747] sm:$0x1]
    %s1749 = scalar_lea.vmem [#allocation0], 240
    %v1750 = vld [vmem:[%s1749] sm:$0x2]
    %vm1751 = vcmask 1041409
    %v1752 = vsel %vm1751, %v1750, %v1748
    %s1753 = scalar_lea.vmem [#allocation0], 367
    %v1754 = vld [vmem:[%s1753] sm:$0x4]
    %vm1755 = vcmask 1042434
    %v1756 = vsel %vm1755, %v1754, %v1752
    %s1757 = scalar_lea.vmem [#allocation0], 494
    %v1758 = vld [vmem:[%s1757] sm:$0x8]
    %vm1759 = vcmask 1043459
    %v1760 = vsel %vm1759, %v1758, %v1756
    %s1761 = scalar_lea.vmem [#allocation0], 621
    %v1762 = vld [vmem:[%s1761] sm:$0x10]
    %vm1763 = vcmask 1044484
    %v1764 = vsel %vm1763, %v1762, %v1760
    %s1765 = scalar_lea.vmem [#allocation0], 748
    %v1766 = vld [vmem:[%s1765] sm:$0x20]
    %vm1767 = vcmask 1045509
    %v1768 = vsel %vm1767, %v1766, %v1764
    %s1769 = scalar_lea.vmem [#allocation0], 875
    %v1770 = vld [vmem:[%s1769] sm:$0x40]
    %vm1771 = vcmask 1046534
    %v1772 = vsel %vm1771, %v1770, %v1768
    %s1773 = scalar_lea.vmem [#allocation0], 1002
    %v1774 = vld [vmem:[%s1773] sm:$0x80]
    %vm1775 = vcmask 1047559
    %v1776 = vsel %vm1775, %v1774, %v1772
    %1777 = vrot.lane.b32.xlu0 %v1776, 104
    %v1778 = vpop.permute.xlu0 %1777
    %vm1779 = vcmask 917312
    %s1780 = scalar_lea.vmem %s1, 8
    %1781 = vst.msk [vmem:[%s1780] sm:$0xff] %vm1779, %v1778
    %s1782 = scalar_lea.vmem [#allocation0], 1073
    %v1783 = vld [vmem:[%s1782] sm:$0x1]
    %s1784 = scalar_lea.vmem [#allocation0], 1200
    %v1785 = vld [vmem:[%s1784] sm:$0x2]
    %vm1786 = vcmask 1041409
    %v1787 = vsel %vm1786, %v1785, %v1783
    %s1788 = scalar_lea.vmem [#allocation0], 1327
    %v1789 = vld [vmem:[%s1788] sm:$0x4]
    %vm1790 = vcmask 1042434
    %v1791 = vsel %vm1790, %v1789, %v1787
    %s1792 = scalar_lea.vmem [#allocation0], 1454
    %v1793 = vld [vmem:[%s1792] sm:$0x8]
    %vm1794 = vcmask 1043459
    %v1795 = vsel %vm1794, %v1793, %v1791
    %s1796 = scalar_lea.vmem [#allocation0], 1581
    %v1797 = vld [vmem:[%s1796] sm:$0x10]
    %vm1798 = vcmask 1044484
    %v1799 = vsel %vm1798, %v1797, %v1795
    %s1800 = scalar_lea.vmem [#allocation0], 1708
    %v1801 = vld [vmem:[%s1800] sm:$0x20]
    %vm1802 = vcmask 1045509
    %v1803 = vsel %vm1802, %v1801, %v1799
    %s1804 = scalar_lea.vmem [#allocation0], 1835
    %v1805 = vld [vmem:[%s1804] sm:$0x40]
    %vm1806 = vcmask 1046534
    %v1807 = vsel %vm1806, %v1805, %v1803
    %s1808 = scalar_lea.vmem [#allocation0], 1962
    %v1809 = vld [vmem:[%s1808] sm:$0x80]
    %vm1810 = vcmask 1047559
    %v1811 = vsel %vm1810, %v1809, %v1807
    %1812 = vrot.lane.b32.xlu0 %v1811, 104
    %v1813 = vpop.permute.xlu0 %1812
    %vm1814 = vcmask 917312
    %s1815 = scalar_lea.vmem %s1, 16
    %1816 = vst.msk [vmem:[%s1815] sm:$0xff] %vm1814, %v1813
    %s1817 = scalar_lea.vmem [#allocation0], 1137
    %v1818 = vld [vmem:[%s1817] sm:$0x1]
    %s1819 = scalar_lea.vmem [#allocation0], 1264
    %v1820 = vld [vmem:[%s1819] sm:$0x2]
    %vm1821 = vcmask 1041409
    %v1822 = vsel %vm1821, %v1820, %v1818
    %s1823 = scalar_lea.vmem [#allocation0], 1391
    %v1824 = vld [vmem:[%s1823] sm:$0x4]
    %vm1825 = vcmask 1042434
    %v1826 = vsel %vm1825, %v1824, %v1822
    %s1827 = scalar_lea.vmem [#allocation0], 1518
    %v1828 = vld [vmem:[%s1827] sm:$0x8]
    %vm1829 = vcmask 1043459
    %v1830 = vsel %vm1829, %v1828, %v1826
    %s1831 = scalar_lea.vmem [#allocation0], 1645
    %v1832 = vld [vmem:[%s1831] sm:$0x10]
    %vm1833 = vcmask 1044484
    %v1834 = vsel %vm1833, %v1832, %v1830
    %s1835 = scalar_lea.vmem [#allocation0], 1772
    %v1836 = vld [vmem:[%s1835] sm:$0x20]
    %vm1837 = vcmask 1045509
    %v1838 = vsel %vm1837, %v1836, %v1834
    %s1839 = scalar_lea.vmem [#allocation0], 1899
    %v1840 = vld [vmem:[%s1839] sm:$0x40]
    %vm1841 = vcmask 1046534
    %v1842 = vsel %vm1841, %v1840, %v1838
    %s1843 = scalar_lea.vmem [#allocation0], 2026
    %v1844 = vld [vmem:[%s1843] sm:$0x80]
    %vm1845 = vcmask 1047559
    %v1846 = vsel %vm1845, %v1844, %v1842
    %1847 = vrot.lane.b32.xlu0 %v1846, 104
    %v1848 = vpop.permute.xlu0 %1847
    %vm1849 = vcmask 917312
    %s1850 = scalar_lea.vmem %s1, 24
    %1851 = vst.msk [vmem:[%s1850] sm:$0xff] %vm1849, %v1848
    %s1852 = scalar_lea.vmem [#allocation0], 48
    %v1853 = vld [vmem:[%s1852] sm:$0x1]
    %s1854 = scalar_lea.vmem [#allocation0], 175
    %v1855 = vld [vmem:[%s1854] sm:$0x2]
    %vm1856 = vcmask 1041409
    %v1857 = vsel %vm1856, %v1855, %v1853
    %s1858 = scalar_lea.vmem [#allocation0], 302
    %v1859 = vld [vmem:[%s1858] sm:$0x4]
    %vm1860 = vcmask 1042434
    %v1861 = vsel %vm1860, %v1859, %v1857
    %s1862 = scalar_lea.vmem [#allocation0], 429
    %v1863 = vld [vmem:[%s1862] sm:$0x8]
    %vm1864 = vcmask 1043459
    %v1865 = vsel %vm1864, %v1863, %v1861
    %s1866 = scalar_lea.vmem [#allocation0], 556
    %v1867 = vld [vmem:[%s1866] sm:$0x10]
    %vm1868 = vcmask 1044484
    %v1869 = vsel %vm1868, %v1867, %v1865
    %s1870 = scalar_lea.vmem [#allocation0], 683
    %v1871 = vld [vmem:[%s1870] sm:$0x20]
    %vm1872 = vcmask 1045509
    %v1873 = vsel %vm1872, %v1871, %v1869
    %s1874 = scalar_lea.vmem [#allocation0], 810
    %v1875 = vld [vmem:[%s1874] sm:$0x40]
    %vm1876 = vcmask 1046534
    %v1877 = vsel %vm1876, %v1875, %v1873
    %s1878 = scalar_lea.vmem [#allocation0], 937
    %v1879 = vld [vmem:[%s1878] sm:$0x80]
    %vm1880 = vcmask 1047559
    %v1881 = vsel %vm1880, %v1879, %v1877
    %1882 = vrot.lane.b32.xlu0 %v1881, 96
    %v1883 = vpop.permute.xlu0 %1882
    %vm1884 = vcmask 851712
    %1885 = vst.msk [vmem:[%s1] sm:$0xff] %vm1884, %v1883
    %s1886 = scalar_lea.vmem [#allocation0], 112
    %v1887 = vld [vmem:[%s1886] sm:$0x1]
    %s1888 = scalar_lea.vmem [#allocation0], 239
    %v1889 = vld [vmem:[%s1888] sm:$0x2]
    %vm1890 = vcmask 1041409
    %v1891 = vsel %vm1890, %v1889, %v1887
    %s1892 = scalar_lea.vmem [#allocation0], 366
    %v1893 = vld [vmem:[%s1892] sm:$0x4]
    %vm1894 = vcmask 1042434
    %v1895 = vsel %vm1894, %v1893, %v1891
    %s1896 = scalar_lea.vmem [#allocation0], 493
    %v1897 = vld [vmem:[%s1896] sm:$0x8]
    %vm1898 = vcmask 1043459
    %v1899 = vsel %vm1898, %v1897, %v1895
    %s1900 = scalar_lea.vmem [#allocation0], 620
    %v1901 = vld [vmem:[%s1900] sm:$0x10]
    %vm1902 = vcmask 1044484
    %v1903 = vsel %vm1902, %v1901, %v1899
    %s1904 = scalar_lea.vmem [#allocation0], 747
    %v1905 = vld [vmem:[%s1904] sm:$0x20]
    %vm1906 = vcmask 1045509
    %v1907 = vsel %vm1906, %v1905, %v1903
    %s1908 = scalar_lea.vmem [#allocation0], 874
    %v1909 = vld [vmem:[%s1908] sm:$0x40]
    %vm1910 = vcmask 1046534
    %v1911 = vsel %vm1910, %v1909, %v1907
    %s1912 = scalar_lea.vmem [#allocation0], 1001
    %v1913 = vld [vmem:[%s1912] sm:$0x80]
    %vm1914 = vcmask 1047559
    %v1915 = vsel %vm1914, %v1913, %v1911
    %1916 = vrot.lane.b32.xlu0 %v1915, 96
    %v1917 = vpop.permute.xlu0 %1916
    %vm1918 = vcmask 851712
    %s1919 = scalar_lea.vmem %s1, 8
    %1920 = vst.msk [vmem:[%s1919] sm:$0xff] %vm1918, %v1917
    %s1921 = scalar_lea.vmem [#allocation0], 1072
    %v1922 = vld [vmem:[%s1921] sm:$0x1]
    %s1923 = scalar_lea.vmem [#allocation0], 1199
    %v1924 = vld [vmem:[%s1923] sm:$0x2]
    %vm1925 = vcmask 1041409
    %v1926 = vsel %vm1925, %v1924, %v1922
    %s1927 = scalar_lea.vmem [#allocation0], 1326
    %v1928 = vld [vmem:[%s1927] sm:$0x4]
    %vm1929 = vcmask 1042434
    %v1930 = vsel %vm1929, %v1928, %v1926
    %s1931 = scalar_lea.vmem [#allocation0], 1453
    %v1932 = vld [vmem:[%s1931] sm:$0x8]
    %vm1933 = vcmask 1043459
    %v1934 = vsel %vm1933, %v1932, %v1930
    %s1935 = scalar_lea.vmem [#allocation0], 1580
    %v1936 = vld [vmem:[%s1935] sm:$0x10]
    %vm1937 = vcmask 1044484
    %v1938 = vsel %vm1937, %v1936, %v1934
    %s1939 = scalar_lea.vmem [#allocation0], 1707
    %v1940 = vld [vmem:[%s1939] sm:$0x20]
    %vm1941 = vcmask 1045509
    %v1942 = vsel %vm1941, %v1940, %v1938
    %s1943 = scalar_lea.vmem [#allocation0], 1834
    %v1944 = vld [vmem:[%s1943] sm:$0x40]
    %vm1945 = vcmask 1046534
    %v1946 = vsel %vm1945, %v1944, %v1942
    %s1947 = scalar_lea.vmem [#allocation0], 1961
    %v1948 = vld [vmem:[%s1947] sm:$0x80]
    %vm1949 = vcmask 1047559
    %v1950 = vsel %vm1949, %v1948, %v1946
    %1951 = vrot.lane.b32.xlu0 %v1950, 96
    %v1952 = vpop.permute.xlu0 %1951
    %vm1953 = vcmask 851712
    %s1954 = scalar_lea.vmem %s1, 16
    %1955 = vst.msk [vmem:[%s1954] sm:$0xff] %vm1953, %v1952
    %s1956 = scalar_lea.vmem [#allocation0], 1136
    %v1957 = vld [vmem:[%s1956] sm:$0x1]
    %s1958 = scalar_lea.vmem [#allocation0], 1263
    %v1959 = vld [vmem:[%s1958] sm:$0x2]
    %vm1960 = vcmask 1041409
    %v1961 = vsel %vm1960, %v1959, %v1957
    %s1962 = scalar_lea.vmem [#allocation0], 1390
    %v1963 = vld [vmem:[%s1962] sm:$0x4]
    %vm1964 = vcmask 1042434
    %v1965 = vsel %vm1964, %v1963, %v1961
    %s1966 = scalar_lea.vmem [#allocation0], 1517
    %v1967 = vld [vmem:[%s1966] sm:$0x8]
    %vm1968 = vcmask 1043459
    %v1969 = vsel %vm1968, %v1967, %v1965
    %s1970 = scalar_lea.vmem [#allocation0], 1644
    %v1971 = vld [vmem:[%s1970] sm:$0x10]
    %vm1972 = vcmask 1044484
    %v1973 = vsel %vm1972, %v1971, %v1969
    %s1974 = scalar_lea.vmem [#allocation0], 1771
    %v1975 = vld [vmem:[%s1974] sm:$0x20]
    %vm1976 = vcmask 1045509
    %v1977 = vsel %vm1976, %v1975, %v1973
    %s1978 = scalar_lea.vmem [#allocation0], 1898
    %v1979 = vld [vmem:[%s1978] sm:$0x40]
    %vm1980 = vcmask 1046534
    %v1981 = vsel %vm1980, %v1979, %v1977
    %s1982 = scalar_lea.vmem [#allocation0], 2025
    %v1983 = vld [vmem:[%s1982] sm:$0x80]
    %vm1984 = vcmask 1047559
    %v1985 = vsel %vm1984, %v1983, %v1981
    %1986 = vrot.lane.b32.xlu0 %v1985, 96
    %v1987 = vpop.permute.xlu0 %1986
    %vm1988 = vcmask 851712
    %s1989 = scalar_lea.vmem %s1, 24
    %1990 = vst.msk [vmem:[%s1989] sm:$0xff] %vm1988, %v1987
    %s1991 = scalar_lea.vmem [#allocation0], 41
    %v1992 = vld [vmem:[%s1991] sm:$0x1]
    %s1993 = scalar_lea.vmem [#allocation0], 168
    %v1994 = vld [vmem:[%s1993] sm:$0x2]
    %vm1995 = vcmask 1041409
    %v1996 = vsel %vm1995, %v1994, %v1992
    %s1997 = scalar_lea.vmem [#allocation0], 295
    %v1998 = vld [vmem:[%s1997] sm:$0x4]
    %vm1999 = vcmask 1042434
    %v2000 = vsel %vm1999, %v1998, %v1996
    %s2001 = scalar_lea.vmem [#allocation0], 422
    %v2002 = vld [vmem:[%s2001] sm:$0x8]
    %vm2003 = vcmask 1043459
    %v2004 = vsel %vm2003, %v2002, %v2000
    %s2005 = scalar_lea.vmem [#allocation0], 549
    %v2006 = vld [vmem:[%s2005] sm:$0x10]
    %vm2007 = vcmask 1044484
    %v2008 = vsel %vm2007, %v2006, %v2004
    %s2009 = scalar_lea.vmem [#allocation0], 676
    %v2010 = vld [vmem:[%s2009] sm:$0x20]
    %vm2011 = vcmask 1045509
    %v2012 = vsel %vm2011, %v2010, %v2008
    %s2013 = scalar_lea.vmem [#allocation0], 803
    %v2014 = vld [vmem:[%s2013] sm:$0x40]
    %vm2015 = vcmask 1046534
    %v2016 = vsel %vm2015, %v2014, %v2012
    %s2017 = scalar_lea.vmem [#allocation0], 930
    %v2018 = vld [vmem:[%s2017] sm:$0x80]
    %vm2019 = vcmask 1047559
    %v2020 = vsel %vm2019, %v2018, %v2016
    %2021 = vrot.lane.b32.xlu0 %v2020, 88
    %v2022 = vpop.permute.xlu0 %2021
    %vm2023 = vcmask 786112
    %2024 = vst.msk [vmem:[%s1] sm:$0xff] %vm2023, %v2022
    %s2025 = scalar_lea.vmem [#allocation0], 105
    %v2026 = vld [vmem:[%s2025] sm:$0x1]
    %s2027 = scalar_lea.vmem [#allocation0], 232
    %v2028 = vld [vmem:[%s2027] sm:$0x2]
    %vm2029 = vcmask 1041409
    %v2030 = vsel %vm2029, %v2028, %v2026
    %s2031 = scalar_lea.vmem [#allocation0], 359
    %v2032 = vld [vmem:[%s2031] sm:$0x4]
    %vm2033 = vcmask 1042434
    %v2034 = vsel %vm2033, %v2032, %v2030
    %s2035 = scalar_lea.vmem [#allocation0], 486
    %v2036 = vld [vmem:[%s2035] sm:$0x8]
    %vm2037 = vcmask 1043459
    %v2038 = vsel %vm2037, %v2036, %v2034
    %s2039 = scalar_lea.vmem [#allocation0], 613
    %v2040 = vld [vmem:[%s2039] sm:$0x10]
    %vm2041 = vcmask 1044484
    %v2042 = vsel %vm2041, %v2040, %v2038
    %s2043 = scalar_lea.vmem [#allocation0], 740
    %v2044 = vld [vmem:[%s2043] sm:$0x20]
    %vm2045 = vcmask 1045509
    %v2046 = vsel %vm2045, %v2044, %v2042
    %s2047 = scalar_lea.vmem [#allocation0], 867
    %v2048 = vld [vmem:[%s2047] sm:$0x40]
    %vm2049 = vcmask 1046534
    %v2050 = vsel %vm2049, %v2048, %v2046
    %s2051 = scalar_lea.vmem [#allocation0], 994
    %v2052 = vld [vmem:[%s2051] sm:$0x80]
    %vm2053 = vcmask 1047559
    %v2054 = vsel %vm2053, %v2052, %v2050
    %2055 = vrot.lane.b32.xlu0 %v2054, 88
    %v2056 = vpop.permute.xlu0 %2055
    %vm2057 = vcmask 786112
    %s2058 = scalar_lea.vmem %s1, 8
    %2059 = vst.msk [vmem:[%s2058] sm:$0xff] %vm2057, %v2056
    %s2060 = scalar_lea.vmem [#allocation0], 1065
    %v2061 = vld [vmem:[%s2060] sm:$0x1]
    %s2062 = scalar_lea.vmem [#allocation0], 1192
    %v2063 = vld [vmem:[%s2062] sm:$0x2]
    %vm2064 = vcmask 1041409
    %v2065 = vsel %vm2064, %v2063, %v2061
    %s2066 = scalar_lea.vmem [#allocation0], 1319
    %v2067 = vld [vmem:[%s2066] sm:$0x4]
    %vm2068 = vcmask 1042434
    %v2069 = vsel %vm2068, %v2067, %v2065
    %s2070 = scalar_lea.vmem [#allocation0], 1446
    %v2071 = vld [vmem:[%s2070] sm:$0x8]
    %vm2072 = vcmask 1043459
    %v2073 = vsel %vm2072, %v2071, %v2069
    %s2074 = scalar_lea.vmem [#allocation0], 1573
    %v2075 = vld [vmem:[%s2074] sm:$0x10]
    %vm2076 = vcmask 1044484
    %v2077 = vsel %vm2076, %v2075, %v2073
    %s2078 = scalar_lea.vmem [#allocation0], 1700
    %v2079 = vld [vmem:[%s2078] sm:$0x20]
    %vm2080 = vcmask 1045509
    %v2081 = vsel %vm2080, %v2079, %v2077
    %s2082 = scalar_lea.vmem [#allocation0], 1827
    %v2083 = vld [vmem:[%s2082] sm:$0x40]
    %vm2084 = vcmask 1046534
    %v2085 = vsel %vm2084, %v2083, %v2081
    %s2086 = scalar_lea.vmem [#allocation0], 1954
    %v2087 = vld [vmem:[%s2086] sm:$0x80]
    %vm2088 = vcmask 1047559
    %v2089 = vsel %vm2088, %v2087, %v2085
    %2090 = vrot.lane.b32.xlu0 %v2089, 88
    %v2091 = vpop.permute.xlu0 %2090
    %vm2092 = vcmask 786112
    %s2093 = scalar_lea.vmem %s1, 16
    %2094 = vst.msk [vmem:[%s2093] sm:$0xff] %vm2092, %v2091
    %s2095 = scalar_lea.vmem [#allocation0], 1129
    %v2096 = vld [vmem:[%s2095] sm:$0x1]
    %s2097 = scalar_lea.vmem [#allocation0], 1256
    %v2098 = vld [vmem:[%s2097] sm:$0x2]
    %vm2099 = vcmask 1041409
    %v2100 = vsel %vm2099, %v2098, %v2096
    %s2101 = scalar_lea.vmem [#allocation0], 1383
    %v2102 = vld [vmem:[%s2101] sm:$0x4]
    %vm2103 = vcmask 1042434
    %v2104 = vsel %vm2103, %v2102, %v2100
    %s2105 = scalar_lea.vmem [#allocation0], 1510
    %v2106 = vld [vmem:[%s2105] sm:$0x8]
    %vm2107 = vcmask 1043459
    %v2108 = vsel %vm2107, %v2106, %v2104
    %s2109 = scalar_lea.vmem [#allocation0], 1637
    %v2110 = vld [vmem:[%s2109] sm:$0x10]
    %vm2111 = vcmask 1044484
    %v2112 = vsel %vm2111, %v2110, %v2108
    %s2113 = scalar_lea.vmem [#allocation0], 1764
    %v2114 = vld [vmem:[%s2113] sm:$0x20]
    %vm2115 = vcmask 1045509
    %v2116 = vsel %vm2115, %v2114, %v2112
    %s2117 = scalar_lea.vmem [#allocation0], 1891
    %v2118 = vld [vmem:[%s2117] sm:$0x40]
    %vm2119 = vcmask 1046534
    %v2120 = vsel %vm2119, %v2118, %v2116
    %s2121 = scalar_lea.vmem [#allocation0], 2018
    %v2122 = vld [vmem:[%s2121] sm:$0x80]
    %vm2123 = vcmask 1047559
    %v2124 = vsel %vm2123, %v2122, %v2120
    %2125 = vrot.lane.b32.xlu0 %v2124, 88
    %v2126 = vpop.permute.xlu0 %2125
    %vm2127 = vcmask 786112
    %s2128 = scalar_lea.vmem %s1, 24
    %2129 = vst.msk [vmem:[%s2128] sm:$0xff] %vm2127, %v2126
    %s2130 = scalar_lea.vmem [#allocation0], 40
    %v2131 = vld [vmem:[%s2130] sm:$0x1]
    %s2132 = scalar_lea.vmem [#allocation0], 167
    %v2133 = vld [vmem:[%s2132] sm:$0x2]
    %vm2134 = vcmask 1041409
    %v2135 = vsel %vm2134, %v2133, %v2131
    %s2136 = scalar_lea.vmem [#allocation0], 294
    %v2137 = vld [vmem:[%s2136] sm:$0x4]
    %vm2138 = vcmask 1042434
    %v2139 = vsel %vm2138, %v2137, %v2135
    %s2140 = scalar_lea.vmem [#allocation0], 421
    %v2141 = vld [vmem:[%s2140] sm:$0x8]
    %vm2142 = vcmask 1043459
    %v2143 = vsel %vm2142, %v2141, %v2139
    %s2144 = scalar_lea.vmem [#allocation0], 548
    %v2145 = vld [vmem:[%s2144] sm:$0x10]
    %vm2146 = vcmask 1044484
    %v2147 = vsel %vm2146, %v2145, %v2143
    %s2148 = scalar_lea.vmem [#allocation0], 675
    %v2149 = vld [vmem:[%s2148] sm:$0x20]
    %vm2150 = vcmask 1045509
    %v2151 = vsel %vm2150, %v2149, %v2147
    %s2152 = scalar_lea.vmem [#allocation0], 802
    %v2153 = vld [vmem:[%s2152] sm:$0x40]
    %vm2154 = vcmask 1046534
    %v2155 = vsel %vm2154, %v2153, %v2151
    %s2156 = scalar_lea.vmem [#allocation0], 929
    %v2157 = vld [vmem:[%s2156] sm:$0x80]
    %vm2158 = vcmask 1047559
    %v2159 = vsel %vm2158, %v2157, %v2155
    %2160 = vrot.lane.b32.xlu0 %v2159, 80
    %v2161 = vpop.permute.xlu0 %2160
    %vm2162 = vcmask 720512
    %2163 = vst.msk [vmem:[%s1] sm:$0xff] %vm2162, %v2161
    %s2164 = scalar_lea.vmem [#allocation0], 104
    %v2165 = vld [vmem:[%s2164] sm:$0x1]
    %s2166 = scalar_lea.vmem [#allocation0], 231
    %v2167 = vld [vmem:[%s2166] sm:$0x2]
    %vm2168 = vcmask 1041409
    %v2169 = vsel %vm2168, %v2167, %v2165
    %s2170 = scalar_lea.vmem [#allocation0], 358
    %v2171 = vld [vmem:[%s2170] sm:$0x4]
    %vm2172 = vcmask 1042434
    %v2173 = vsel %vm2172, %v2171, %v2169
    %s2174 = scalar_lea.vmem [#allocation0], 485
    %v2175 = vld [vmem:[%s2174] sm:$0x8]
    %vm2176 = vcmask 1043459
    %v2177 = vsel %vm2176, %v2175, %v2173
    %s2178 = scalar_lea.vmem [#allocation0], 612
    %v2179 = vld [vmem:[%s2178] sm:$0x10]
    %vm2180 = vcmask 1044484
    %v2181 = vsel %vm2180, %v2179, %v2177
    %s2182 = scalar_lea.vmem [#allocation0], 739
    %v2183 = vld [vmem:[%s2182] sm:$0x20]
    %vm2184 = vcmask 1045509
    %v2185 = vsel %vm2184, %v2183, %v2181
    %s2186 = scalar_lea.vmem [#allocation0], 866
    %v2187 = vld [vmem:[%s2186] sm:$0x40]
    %vm2188 = vcmask 1046534
    %v2189 = vsel %vm2188, %v2187, %v2185
    %s2190 = scalar_lea.vmem [#allocation0], 993
    %v2191 = vld [vmem:[%s2190] sm:$0x80]
    %vm2192 = vcmask 1047559
    %v2193 = vsel %vm2192, %v2191, %v2189
    %2194 = vrot.lane.b32.xlu0 %v2193, 80
    %v2195 = vpop.permute.xlu0 %2194
    %vm2196 = vcmask 720512
    %s2197 = scalar_lea.vmem %s1, 8
    %2198 = vst.msk [vmem:[%s2197] sm:$0xff] %vm2196, %v2195
    %s2199 = scalar_lea.vmem [#allocation0], 1064
    %v2200 = vld [vmem:[%s2199] sm:$0x1]
    %s2201 = scalar_lea.vmem [#allocation0], 1191
    %v2202 = vld [vmem:[%s2201] sm:$0x2]
    %vm2203 = vcmask 1041409
    %v2204 = vsel %vm2203, %v2202, %v2200
    %s2205 = scalar_lea.vmem [#allocation0], 1318
    %v2206 = vld [vmem:[%s2205] sm:$0x4]
    %vm2207 = vcmask 1042434
    %v2208 = vsel %vm2207, %v2206, %v2204
    %s2209 = scalar_lea.vmem [#allocation0], 1445
    %v2210 = vld [vmem:[%s2209] sm:$0x8]
    %vm2211 = vcmask 1043459
    %v2212 = vsel %vm2211, %v2210, %v2208
    %s2213 = scalar_lea.vmem [#allocation0], 1572
    %v2214 = vld [vmem:[%s2213] sm:$0x10]
    %vm2215 = vcmask 1044484
    %v2216 = vsel %vm2215, %v2214, %v2212
    %s2217 = scalar_lea.vmem [#allocation0], 1699
    %v2218 = vld [vmem:[%s2217] sm:$0x20]
    %vm2219 = vcmask 1045509
    %v2220 = vsel %vm2219, %v2218, %v2216
    %s2221 = scalar_lea.vmem [#allocation0], 1826
    %v2222 = vld [vmem:[%s2221] sm:$0x40]
    %vm2223 = vcmask 1046534
    %v2224 = vsel %vm2223, %v2222, %v2220
    %s2225 = scalar_lea.vmem [#allocation0], 1953
    %v2226 = vld [vmem:[%s2225] sm:$0x80]
    %vm2227 = vcmask 1047559
    %v2228 = vsel %vm2227, %v2226, %v2224
    %2229 = vrot.lane.b32.xlu0 %v2228, 80
    %v2230 = vpop.permute.xlu0 %2229
    %vm2231 = vcmask 720512
    %s2232 = scalar_lea.vmem %s1, 16
    %2233 = vst.msk [vmem:[%s2232] sm:$0xff] %vm2231, %v2230
    %s2234 = scalar_lea.vmem [#allocation0], 1128
    %v2235 = vld [vmem:[%s2234] sm:$0x1]
    %s2236 = scalar_lea.vmem [#allocation0], 1255
    %v2237 = vld [vmem:[%s2236] sm:$0x2]
    %vm2238 = vcmask 1041409
    %v2239 = vsel %vm2238, %v2237, %v2235
    %s2240 = scalar_lea.vmem [#allocation0], 1382
    %v2241 = vld [vmem:[%s2240] sm:$0x4]
    %vm2242 = vcmask 1042434
    %v2243 = vsel %vm2242, %v2241, %v2239
    %s2244 = scalar_lea.vmem [#allocation0], 1509
    %v2245 = vld [vmem:[%s2244] sm:$0x8]
    %vm2246 = vcmask 1043459
    %v2247 = vsel %vm2246, %v2245, %v2243
    %s2248 = scalar_lea.vmem [#allocation0], 1636
    %v2249 = vld [vmem:[%s2248] sm:$0x10]
    %vm2250 = vcmask 1044484
    %v2251 = vsel %vm2250, %v2249, %v2247
    %s2252 = scalar_lea.vmem [#allocation0], 1763
    %v2253 = vld [vmem:[%s2252] sm:$0x20]
    %vm2254 = vcmask 1045509
    %v2255 = vsel %vm2254, %v2253, %v2251
    %s2256 = scalar_lea.vmem [#allocation0], 1890
    %v2257 = vld [vmem:[%s2256] sm:$0x40]
    %vm2258 = vcmask 1046534
    %v2259 = vsel %vm2258, %v2257, %v2255
    %s2260 = scalar_lea.vmem [#allocation0], 2017
    %v2261 = vld [vmem:[%s2260] sm:$0x80]
    %vm2262 = vcmask 1047559
    %v2263 = vsel %vm2262, %v2261, %v2259
    %2264 = vrot.lane.b32.xlu0 %v2263, 80
    %v2265 = vpop.permute.xlu0 %2264
    %vm2266 = vcmask 720512
    %s2267 = scalar_lea.vmem %s1, 24
    %2268 = vst.msk [vmem:[%s2267] sm:$0xff] %vm2266, %v2265
    %s2269 = scalar_lea.vmem [#allocation0], 33
    %v2270 = vld [vmem:[%s2269] sm:$0x1]
    %s2271 = scalar_lea.vmem [#allocation0], 160
    %v2272 = vld [vmem:[%s2271] sm:$0x2]
    %vm2273 = vcmask 1041409
    %v2274 = vsel %vm2273, %v2272, %v2270
    %s2275 = scalar_lea.vmem [#allocation0], 287
    %v2276 = vld [vmem:[%s2275] sm:$0x4]
    %vm2277 = vcmask 1042434
    %v2278 = vsel %vm2277, %v2276, %v2274
    %s2279 = scalar_lea.vmem [#allocation0], 414
    %v2280 = vld [vmem:[%s2279] sm:$0x8]
    %vm2281 = vcmask 1043459
    %v2282 = vsel %vm2281, %v2280, %v2278
    %s2283 = scalar_lea.vmem [#allocation0], 541
    %v2284 = vld [vmem:[%s2283] sm:$0x10]
    %vm2285 = vcmask 1044484
    %v2286 = vsel %vm2285, %v2284, %v2282
    %s2287 = scalar_lea.vmem [#allocation0], 668
    %v2288 = vld [vmem:[%s2287] sm:$0x20]
    %vm2289 = vcmask 1045509
    %v2290 = vsel %vm2289, %v2288, %v2286
    %s2291 = scalar_lea.vmem [#allocation0], 795
    %v2292 = vld [vmem:[%s2291] sm:$0x40]
    %vm2293 = vcmask 1046534
    %v2294 = vsel %vm2293, %v2292, %v2290
    %s2295 = scalar_lea.vmem [#allocation0], 922
    %v2296 = vld [vmem:[%s2295] sm:$0x80]
    %vm2297 = vcmask 1047559
    %v2298 = vsel %vm2297, %v2296, %v2294
    %2299 = vrot.lane.b32.xlu0 %v2298, 72
    %v2300 = vpop.permute.xlu0 %2299
    %vm2301 = vcmask 654912
    %2302 = vst.msk [vmem:[%s1] sm:$0xff] %vm2301, %v2300
    %s2303 = scalar_lea.vmem [#allocation0], 97
    %v2304 = vld [vmem:[%s2303] sm:$0x1]
    %s2305 = scalar_lea.vmem [#allocation0], 224
    %v2306 = vld [vmem:[%s2305] sm:$0x2]
    %vm2307 = vcmask 1041409
    %v2308 = vsel %vm2307, %v2306, %v2304
    %s2309 = scalar_lea.vmem [#allocation0], 351
    %v2310 = vld [vmem:[%s2309] sm:$0x4]
    %vm2311 = vcmask 1042434
    %v2312 = vsel %vm2311, %v2310, %v2308
    %s2313 = scalar_lea.vmem [#allocation0], 478
    %v2314 = vld [vmem:[%s2313] sm:$0x8]
    %vm2315 = vcmask 1043459
    %v2316 = vsel %vm2315, %v2314, %v2312
    %s2317 = scalar_lea.vmem [#allocation0], 605
    %v2318 = vld [vmem:[%s2317] sm:$0x10]
    %vm2319 = vcmask 1044484
    %v2320 = vsel %vm2319, %v2318, %v2316
    %s2321 = scalar_lea.vmem [#allocation0], 732
    %v2322 = vld [vmem:[%s2321] sm:$0x20]
    %vm2323 = vcmask 1045509
    %v2324 = vsel %vm2323, %v2322, %v2320
    %s2325 = scalar_lea.vmem [#allocation0], 859
    %v2326 = vld [vmem:[%s2325] sm:$0x40]
    %vm2327 = vcmask 1046534
    %v2328 = vsel %vm2327, %v2326, %v2324
    %s2329 = scalar_lea.vmem [#allocation0], 986
    %v2330 = vld [vmem:[%s2329] sm:$0x80]
    %vm2331 = vcmask 1047559
    %v2332 = vsel %vm2331, %v2330, %v2328
    %2333 = vrot.lane.b32.xlu0 %v2332, 72
    %v2334 = vpop.permute.xlu0 %2333
    %vm2335 = vcmask 654912
    %s2336 = scalar_lea.vmem %s1, 8
    %2337 = vst.msk [vmem:[%s2336] sm:$0xff] %vm2335, %v2334
    %s2338 = scalar_lea.vmem [#allocation0], 1057
    %v2339 = vld [vmem:[%s2338] sm:$0x1]
    %s2340 = scalar_lea.vmem [#allocation0], 1184
    %v2341 = vld [vmem:[%s2340] sm:$0x2]
    %vm2342 = vcmask 1041409
    %v2343 = vsel %vm2342, %v2341, %v2339
    %s2344 = scalar_lea.vmem [#allocation0], 1311
    %v2345 = vld [vmem:[%s2344] sm:$0x4]
    %vm2346 = vcmask 1042434
    %v2347 = vsel %vm2346, %v2345, %v2343
    %s2348 = scalar_lea.vmem [#allocation0], 1438
    %v2349 = vld [vmem:[%s2348] sm:$0x8]
    %vm2350 = vcmask 1043459
    %v2351 = vsel %vm2350, %v2349, %v2347
    %s2352 = scalar_lea.vmem [#allocation0], 1565
    %v2353 = vld [vmem:[%s2352] sm:$0x10]
    %vm2354 = vcmask 1044484
    %v2355 = vsel %vm2354, %v2353, %v2351
    %s2356 = scalar_lea.vmem [#allocation0], 1692
    %v2357 = vld [vmem:[%s2356] sm:$0x20]
    %vm2358 = vcmask 1045509
    %v2359 = vsel %vm2358, %v2357, %v2355
    %s2360 = scalar_lea.vmem [#allocation0], 1819
    %v2361 = vld [vmem:[%s2360] sm:$0x40]
    %vm2362 = vcmask 1046534
    %v2363 = vsel %vm2362, %v2361, %v2359
    %s2364 = scalar_lea.vmem [#allocation0], 1946
    %v2365 = vld [vmem:[%s2364] sm:$0x80]
    %vm2366 = vcmask 1047559
    %v2367 = vsel %vm2366, %v2365, %v2363
    %2368 = vrot.lane.b32.xlu0 %v2367, 72
    %v2369 = vpop.permute.xlu0 %2368
    %vm2370 = vcmask 654912
    %s2371 = scalar_lea.vmem %s1, 16
    %2372 = vst.msk [vmem:[%s2371] sm:$0xff] %vm2370, %v2369
    %s2373 = scalar_lea.vmem [#allocation0], 1121
    %v2374 = vld [vmem:[%s2373] sm:$0x1]
    %s2375 = scalar_lea.vmem [#allocation0], 1248
    %v2376 = vld [vmem:[%s2375] sm:$0x2]
    %vm2377 = vcmask 1041409
    %v2378 = vsel %vm2377, %v2376, %v2374
    %s2379 = scalar_lea.vmem [#allocation0], 1375
    %v2380 = vld [vmem:[%s2379] sm:$0x4]
    %vm2381 = vcmask 1042434
    %v2382 = vsel %vm2381, %v2380, %v2378
    %s2383 = scalar_lea.vmem [#allocation0], 1502
    %v2384 = vld [vmem:[%s2383] sm:$0x8]
    %vm2385 = vcmask 1043459
    %v2386 = vsel %vm2385, %v2384, %v2382
    %s2387 = scalar_lea.vmem [#allocation0], 1629
    %v2388 = vld [vmem:[%s2387] sm:$0x10]
    %vm2389 = vcmask 1044484
    %v2390 = vsel %vm2389, %v2388, %v2386
    %s2391 = scalar_lea.vmem [#allocation0], 1756
    %v2392 = vld [vmem:[%s2391] sm:$0x20]
    %vm2393 = vcmask 1045509
    %v2394 = vsel %vm2393, %v2392, %v2390
    %s2395 = scalar_lea.vmem [#allocation0], 1883
    %v2396 = vld [vmem:[%s2395] sm:$0x40]
    %vm2397 = vcmask 1046534
    %v2398 = vsel %vm2397, %v2396, %v2394
    %s2399 = scalar_lea.vmem [#allocation0], 2010
    %v2400 = vld [vmem:[%s2399] sm:$0x80]
    %vm2401 = vcmask 1047559
    %v2402 = vsel %vm2401, %v2400, %v2398
    %2403 = vrot.lane.b32.xlu0 %v2402, 72
    %v2404 = vpop.permute.xlu0 %2403
    %vm2405 = vcmask 654912
    %s2406 = scalar_lea.vmem %s1, 24
    %2407 = vst.msk [vmem:[%s2406] sm:$0xff] %vm2405, %v2404
    %s2408 = scalar_lea.vmem [#allocation0], 32
    %v2409 = vld [vmem:[%s2408] sm:$0x1]
    %s2410 = scalar_lea.vmem [#allocation0], 159
    %v2411 = vld [vmem:[%s2410] sm:$0x2]
    %vm2412 = vcmask 1041409
    %v2413 = vsel %vm2412, %v2411, %v2409
    %s2414 = scalar_lea.vmem [#allocation0], 286
    %v2415 = vld [vmem:[%s2414] sm:$0x4]
    %vm2416 = vcmask 1042434
    %v2417 = vsel %vm2416, %v2415, %v2413
    %s2418 = scalar_lea.vmem [#allocation0], 413
    %v2419 = vld [vmem:[%s2418] sm:$0x8]
    %vm2420 = vcmask 1043459
    %v2421 = vsel %vm2420, %v2419, %v2417
    %s2422 = scalar_lea.vmem [#allocation0], 540
    %v2423 = vld [vmem:[%s2422] sm:$0x10]
    %vm2424 = vcmask 1044484
    %v2425 = vsel %vm2424, %v2423, %v2421
    %s2426 = scalar_lea.vmem [#allocation0], 667
    %v2427 = vld [vmem:[%s2426] sm:$0x20]
    %vm2428 = vcmask 1045509
    %v2429 = vsel %vm2428, %v2427, %v2425
    %s2430 = scalar_lea.vmem [#allocation0], 794
    %v2431 = vld [vmem:[%s2430] sm:$0x40]
    %vm2432 = vcmask 1046534
    %v2433 = vsel %vm2432, %v2431, %v2429
    %s2434 = scalar_lea.vmem [#allocation0], 921
    %v2435 = vld [vmem:[%s2434] sm:$0x80]
    %vm2436 = vcmask 1047559
    %v2437 = vsel %vm2436, %v2435, %v2433
    %2438 = vrot.lane.b32.xlu0 %v2437, 64
    %v2439 = vpop.permute.xlu0 %2438
    %vm2440 = vcmask 589312
    %2441 = vst.msk [vmem:[%s1] sm:$0xff] %vm2440, %v2439
    %s2442 = scalar_lea.vmem [#allocation0], 96
    %v2443 = vld [vmem:[%s2442] sm:$0x1]
    %s2444 = scalar_lea.vmem [#allocation0], 223
    %v2445 = vld [vmem:[%s2444] sm:$0x2]
    %vm2446 = vcmask 1041409
    %v2447 = vsel %vm2446, %v2445, %v2443
    %s2448 = scalar_lea.vmem [#allocation0], 350
    %v2449 = vld [vmem:[%s2448] sm:$0x4]
    %vm2450 = vcmask 1042434
    %v2451 = vsel %vm2450, %v2449, %v2447
    %s2452 = scalar_lea.vmem [#allocation0], 477
    %v2453 = vld [vmem:[%s2452] sm:$0x8]
    %vm2454 = vcmask 1043459
    %v2455 = vsel %vm2454, %v2453, %v2451
    %s2456 = scalar_lea.vmem [#allocation0], 604
    %v2457 = vld [vmem:[%s2456] sm:$0x10]
    %vm2458 = vcmask 1044484
    %v2459 = vsel %vm2458, %v2457, %v2455
    %s2460 = scalar_lea.vmem [#allocation0], 731
    %v2461 = vld [vmem:[%s2460] sm:$0x20]
    %vm2462 = vcmask 1045509
    %v2463 = vsel %vm2462, %v2461, %v2459
    %s2464 = scalar_lea.vmem [#allocation0], 858
    %v2465 = vld [vmem:[%s2464] sm:$0x40]
    %vm2466 = vcmask 1046534
    %v2467 = vsel %vm2466, %v2465, %v2463
    %s2468 = scalar_lea.vmem [#allocation0], 985
    %v2469 = vld [vmem:[%s2468] sm:$0x80]
    %vm2470 = vcmask 1047559
    %v2471 = vsel %vm2470, %v2469, %v2467
    %2472 = vrot.lane.b32.xlu0 %v2471, 64
    %v2473 = vpop.permute.xlu0 %2472
    %vm2474 = vcmask 589312
    %s2475 = scalar_lea.vmem %s1, 8
    %2476 = vst.msk [vmem:[%s2475] sm:$0xff] %vm2474, %v2473
    %s2477 = scalar_lea.vmem [#allocation0], 1056
    %v2478 = vld [vmem:[%s2477] sm:$0x1]
    %s2479 = scalar_lea.vmem [#allocation0], 1183
    %v2480 = vld [vmem:[%s2479] sm:$0x2]
    %vm2481 = vcmask 1041409
    %v2482 = vsel %vm2481, %v2480, %v2478
    %s2483 = scalar_lea.vmem [#allocation0], 1310
    %v2484 = vld [vmem:[%s2483] sm:$0x4]
    %vm2485 = vcmask 1042434
    %v2486 = vsel %vm2485, %v2484, %v2482
    %s2487 = scalar_lea.vmem [#allocation0], 1437
    %v2488 = vld [vmem:[%s2487] sm:$0x8]
    %vm2489 = vcmask 1043459
    %v2490 = vsel %vm2489, %v2488, %v2486
    %s2491 = scalar_lea.vmem [#allocation0], 1564
    %v2492 = vld [vmem:[%s2491] sm:$0x10]
    %vm2493 = vcmask 1044484
    %v2494 = vsel %vm2493, %v2492, %v2490
    %s2495 = scalar_lea.vmem [#allocation0], 1691
    %v2496 = vld [vmem:[%s2495] sm:$0x20]
    %vm2497 = vcmask 1045509
    %v2498 = vsel %vm2497, %v2496, %v2494
    %s2499 = scalar_lea.vmem [#allocation0], 1818
    %v2500 = vld [vmem:[%s2499] sm:$0x40]
    %vm2501 = vcmask 1046534
    %v2502 = vsel %vm2501, %v2500, %v2498
    %s2503 = scalar_lea.vmem [#allocation0], 1945
    %v2504 = vld [vmem:[%s2503] sm:$0x80]
    %vm2505 = vcmask 1047559
    %v2506 = vsel %vm2505, %v2504, %v2502
    %2507 = vrot.lane.b32.xlu0 %v2506, 64
    %v2508 = vpop.permute.xlu0 %2507
    %vm2509 = vcmask 589312
    %s2510 = scalar_lea.vmem %s1, 16
    %2511 = vst.msk [vmem:[%s2510] sm:$0xff] %vm2509, %v2508
    %s2512 = scalar_lea.vmem [#allocation0], 1120
    %v2513 = vld [vmem:[%s2512] sm:$0x1]
    %s2514 = scalar_lea.vmem [#allocation0], 1247
    %v2515 = vld [vmem:[%s2514] sm:$0x2]
    %vm2516 = vcmask 1041409
    %v2517 = vsel %vm2516, %v2515, %v2513
    %s2518 = scalar_lea.vmem [#allocation0], 1374
    %v2519 = vld [vmem:[%s2518] sm:$0x4]
    %vm2520 = vcmask 1042434
    %v2521 = vsel %vm2520, %v2519, %v2517
    %s2522 = scalar_lea.vmem [#allocation0], 1501
    %v2523 = vld [vmem:[%s2522] sm:$0x8]
    %vm2524 = vcmask 1043459
    %v2525 = vsel %vm2524, %v2523, %v2521
    %s2526 = scalar_lea.vmem [#allocation0], 1628
    %v2527 = vld [vmem:[%s2526] sm:$0x10]
    %vm2528 = vcmask 1044484
    %v2529 = vsel %vm2528, %v2527, %v2525
    %s2530 = scalar_lea.vmem [#allocation0], 1755
    %v2531 = vld [vmem:[%s2530] sm:$0x20]
    %vm2532 = vcmask 1045509
    %v2533 = vsel %vm2532, %v2531, %v2529
    %s2534 = scalar_lea.vmem [#allocation0], 1882
    %v2535 = vld [vmem:[%s2534] sm:$0x40]
    %vm2536 = vcmask 1046534
    %v2537 = vsel %vm2536, %v2535, %v2533
    %s2538 = scalar_lea.vmem [#allocation0], 2009
    %v2539 = vld [vmem:[%s2538] sm:$0x80]
    %vm2540 = vcmask 1047559
    %v2541 = vsel %vm2540, %v2539, %v2537
    %2542 = vrot.lane.b32.xlu0 %v2541, 64
    %v2543 = vpop.permute.xlu0 %2542
    %vm2544 = vcmask 589312
    %s2545 = scalar_lea.vmem %s1, 24
    %2546 = vst.msk [vmem:[%s2545] sm:$0xff] %vm2544, %v2543
    %s2547 = scalar_lea.vmem [#allocation0], 25
    %v2548 = vld [vmem:[%s2547] sm:$0x1]
    %s2549 = scalar_lea.vmem [#allocation0], 152
    %v2550 = vld [vmem:[%s2549] sm:$0x2]
    %vm2551 = vcmask 1041409
    %v2552 = vsel %vm2551, %v2550, %v2548
    %s2553 = scalar_lea.vmem [#allocation0], 279
    %v2554 = vld [vmem:[%s2553] sm:$0x4]
    %vm2555 = vcmask 1042434
    %v2556 = vsel %vm2555, %v2554, %v2552
    %s2557 = scalar_lea.vmem [#allocation0], 406
    %v2558 = vld [vmem:[%s2557] sm:$0x8]
    %vm2559 = vcmask 1043459
    %v2560 = vsel %vm2559, %v2558, %v2556
    %s2561 = scalar_lea.vmem [#allocation0], 533
    %v2562 = vld [vmem:[%s2561] sm:$0x10]
    %vm2563 = vcmask 1044484
    %v2564 = vsel %vm2563, %v2562, %v2560
    %s2565 = scalar_lea.vmem [#allocation0], 660
    %v2566 = vld [vmem:[%s2565] sm:$0x20]
    %vm2567 = vcmask 1045509
    %v2568 = vsel %vm2567, %v2566, %v2564
    %s2569 = scalar_lea.vmem [#allocation0], 787
    %v2570 = vld [vmem:[%s2569] sm:$0x40]
    %vm2571 = vcmask 1046534
    %v2572 = vsel %vm2571, %v2570, %v2568
    %s2573 = scalar_lea.vmem [#allocation0], 914
    %v2574 = vld [vmem:[%s2573] sm:$0x80]
    %vm2575 = vcmask 1047559
    %v2576 = vsel %vm2575, %v2574, %v2572
    %2577 = vrot.lane.b32.xlu0 %v2576, 56
    %v2578 = vpop.permute.xlu0 %2577
    %vm2579 = vcmask 523712
    %2580 = vst.msk [vmem:[%s1] sm:$0xff] %vm2579, %v2578
    %s2581 = scalar_lea.vmem [#allocation0], 89
    %v2582 = vld [vmem:[%s2581] sm:$0x1]
    %s2583 = scalar_lea.vmem [#allocation0], 216
    %v2584 = vld [vmem:[%s2583] sm:$0x2]
    %vm2585 = vcmask 1041409
    %v2586 = vsel %vm2585, %v2584, %v2582
    %s2587 = scalar_lea.vmem [#allocation0], 343
    %v2588 = vld [vmem:[%s2587] sm:$0x4]
    %vm2589 = vcmask 1042434
    %v2590 = vsel %vm2589, %v2588, %v2586
    %s2591 = scalar_lea.vmem [#allocation0], 470
    %v2592 = vld [vmem:[%s2591] sm:$0x8]
    %vm2593 = vcmask 1043459
    %v2594 = vsel %vm2593, %v2592, %v2590
    %s2595 = scalar_lea.vmem [#allocation0], 597
    %v2596 = vld [vmem:[%s2595] sm:$0x10]
    %vm2597 = vcmask 1044484
    %v2598 = vsel %vm2597, %v2596, %v2594
    %s2599 = scalar_lea.vmem [#allocation0], 724
    %v2600 = vld [vmem:[%s2599] sm:$0x20]
    %vm2601 = vcmask 1045509
    %v2602 = vsel %vm2601, %v2600, %v2598
    %s2603 = scalar_lea.vmem [#allocation0], 851
    %v2604 = vld [vmem:[%s2603] sm:$0x40]
    %vm2605 = vcmask 1046534
    %v2606 = vsel %vm2605, %v2604, %v2602
    %s2607 = scalar_lea.vmem [#allocation0], 978
    %v2608 = vld [vmem:[%s2607] sm:$0x80]
    %vm2609 = vcmask 1047559
    %v2610 = vsel %vm2609, %v2608, %v2606
    %2611 = vrot.lane.b32.xlu0 %v2610, 56
    %v2612 = vpop.permute.xlu0 %2611
    %vm2613 = vcmask 523712
    %s2614 = scalar_lea.vmem %s1, 8
    %2615 = vst.msk [vmem:[%s2614] sm:$0xff] %vm2613, %v2612
    %s2616 = scalar_lea.vmem [#allocation0], 1049
    %v2617 = vld [vmem:[%s2616] sm:$0x1]
    %s2618 = scalar_lea.vmem [#allocation0], 1176
    %v2619 = vld [vmem:[%s2618] sm:$0x2]
    %vm2620 = vcmask 1041409
    %v2621 = vsel %vm2620, %v2619, %v2617
    %s2622 = scalar_lea.vmem [#allocation0], 1303
    %v2623 = vld [vmem:[%s2622] sm:$0x4]
    %vm2624 = vcmask 1042434
    %v2625 = vsel %vm2624, %v2623, %v2621
    %s2626 = scalar_lea.vmem [#allocation0], 1430
    %v2627 = vld [vmem:[%s2626] sm:$0x8]
    %vm2628 = vcmask 1043459
    %v2629 = vsel %vm2628, %v2627, %v2625
    %s2630 = scalar_lea.vmem [#allocation0], 1557
    %v2631 = vld [vmem:[%s2630] sm:$0x10]
    %vm2632 = vcmask 1044484
    %v2633 = vsel %vm2632, %v2631, %v2629
    %s2634 = scalar_lea.vmem [#allocation0], 1684
    %v2635 = vld [vmem:[%s2634] sm:$0x20]
    %vm2636 = vcmask 1045509
    %v2637 = vsel %vm2636, %v2635, %v2633
    %s2638 = scalar_lea.vmem [#allocation0], 1811
    %v2639 = vld [vmem:[%s2638] sm:$0x40]
    %vm2640 = vcmask 1046534
    %v2641 = vsel %vm2640, %v2639, %v2637
    %s2642 = scalar_lea.vmem [#allocation0], 1938
    %v2643 = vld [vmem:[%s2642] sm:$0x80]
    %vm2644 = vcmask 1047559
    %v2645 = vsel %vm2644, %v2643, %v2641
    %2646 = vrot.lane.b32.xlu0 %v2645, 56
    %v2647 = vpop.permute.xlu0 %2646
    %vm2648 = vcmask 523712
    %s2649 = scalar_lea.vmem %s1, 16
    %2650 = vst.msk [vmem:[%s2649] sm:$0xff] %vm2648, %v2647
    %s2651 = scalar_lea.vmem [#allocation0], 1113
    %v2652 = vld [vmem:[%s2651] sm:$0x1]
    %s2653 = scalar_lea.vmem [#allocation0], 1240
    %v2654 = vld [vmem:[%s2653] sm:$0x2]
    %vm2655 = vcmask 1041409
    %v2656 = vsel %vm2655, %v2654, %v2652
    %s2657 = scalar_lea.vmem [#allocation0], 1367
    %v2658 = vld [vmem:[%s2657] sm:$0x4]
    %vm2659 = vcmask 1042434
    %v2660 = vsel %vm2659, %v2658, %v2656
    %s2661 = scalar_lea.vmem [#allocation0], 1494
    %v2662 = vld [vmem:[%s2661] sm:$0x8]
    %vm2663 = vcmask 1043459
    %v2664 = vsel %vm2663, %v2662, %v2660
    %s2665 = scalar_lea.vmem [#allocation0], 1621
    %v2666 = vld [vmem:[%s2665] sm:$0x10]
    %vm2667 = vcmask 1044484
    %v2668 = vsel %vm2667, %v2666, %v2664
    %s2669 = scalar_lea.vmem [#allocation0], 1748
    %v2670 = vld [vmem:[%s2669] sm:$0x20]
    %vm2671 = vcmask 1045509
    %v2672 = vsel %vm2671, %v2670, %v2668
    %s2673 = scalar_lea.vmem [#allocation0], 1875
    %v2674 = vld [vmem:[%s2673] sm:$0x40]
    %vm2675 = vcmask 1046534
    %v2676 = vsel %vm2675, %v2674, %v2672
    %s2677 = scalar_lea.vmem [#allocation0], 2002
    %v2678 = vld [vmem:[%s2677] sm:$0x80]
    %vm2679 = vcmask 1047559
    %v2680 = vsel %vm2679, %v2678, %v2676
    %2681 = vrot.lane.b32.xlu0 %v2680, 56
    %v2682 = vpop.permute.xlu0 %2681
    %vm2683 = vcmask 523712
    %s2684 = scalar_lea.vmem %s1, 24
    %2685 = vst.msk [vmem:[%s2684] sm:$0xff] %vm2683, %v2682
    %s2686 = scalar_lea.vmem [#allocation0], 24
    %v2687 = vld [vmem:[%s2686] sm:$0x1]
    %s2688 = scalar_lea.vmem [#allocation0], 151
    %v2689 = vld [vmem:[%s2688] sm:$0x2]
    %vm2690 = vcmask 1041409
    %v2691 = vsel %vm2690, %v2689, %v2687
    %s2692 = scalar_lea.vmem [#allocation0], 278
    %v2693 = vld [vmem:[%s2692] sm:$0x4]
    %vm2694 = vcmask 1042434
    %v2695 = vsel %vm2694, %v2693, %v2691
    %s2696 = scalar_lea.vmem [#allocation0], 405
    %v2697 = vld [vmem:[%s2696] sm:$0x8]
    %vm2698 = vcmask 1043459
    %v2699 = vsel %vm2698, %v2697, %v2695
    %s2700 = scalar_lea.vmem [#allocation0], 532
    %v2701 = vld [vmem:[%s2700] sm:$0x10]
    %vm2702 = vcmask 1044484
    %v2703 = vsel %vm2702, %v2701, %v2699
    %s2704 = scalar_lea.vmem [#allocation0], 659
    %v2705 = vld [vmem:[%s2704] sm:$0x20]
    %vm2706 = vcmask 1045509
    %v2707 = vsel %vm2706, %v2705, %v2703
    %s2708 = scalar_lea.vmem [#allocation0], 786
    %v2709 = vld [vmem:[%s2708] sm:$0x40]
    %vm2710 = vcmask 1046534
    %v2711 = vsel %vm2710, %v2709, %v2707
    %s2712 = scalar_lea.vmem [#allocation0], 913
    %v2713 = vld [vmem:[%s2712] sm:$0x80]
    %vm2714 = vcmask 1047559
    %v2715 = vsel %vm2714, %v2713, %v2711
    %2716 = vrot.lane.b32.xlu0 %v2715, 48
    %v2717 = vpop.permute.xlu0 %2716
    %vm2718 = vcmask 458112
    %2719 = vst.msk [vmem:[%s1] sm:$0xff] %vm2718, %v2717
    %s2720 = scalar_lea.vmem [#allocation0], 88
    %v2721 = vld [vmem:[%s2720] sm:$0x1]
    %s2722 = scalar_lea.vmem [#allocation0], 215
    %v2723 = vld [vmem:[%s2722] sm:$0x2]
    %vm2724 = vcmask 1041409
    %v2725 = vsel %vm2724, %v2723, %v2721
    %s2726 = scalar_lea.vmem [#allocation0], 342
    %v2727 = vld [vmem:[%s2726] sm:$0x4]
    %vm2728 = vcmask 1042434
    %v2729 = vsel %vm2728, %v2727, %v2725
    %s2730 = scalar_lea.vmem [#allocation0], 469
    %v2731 = vld [vmem:[%s2730] sm:$0x8]
    %vm2732 = vcmask 1043459
    %v2733 = vsel %vm2732, %v2731, %v2729
    %s2734 = scalar_lea.vmem [#allocation0], 596
    %v2735 = vld [vmem:[%s2734] sm:$0x10]
    %vm2736 = vcmask 1044484
    %v2737 = vsel %vm2736, %v2735, %v2733
    %s2738 = scalar_lea.vmem [#allocation0], 723
    %v2739 = vld [vmem:[%s2738] sm:$0x20]
    %vm2740 = vcmask 1045509
    %v2741 = vsel %vm2740, %v2739, %v2737
    %s2742 = scalar_lea.vmem [#allocation0], 850
    %v2743 = vld [vmem:[%s2742] sm:$0x40]
    %vm2744 = vcmask 1046534
    %v2745 = vsel %vm2744, %v2743, %v2741
    %s2746 = scalar_lea.vmem [#allocation0], 977
    %v2747 = vld [vmem:[%s2746] sm:$0x80]
    %vm2748 = vcmask 1047559
    %v2749 = vsel %vm2748, %v2747, %v2745
    %2750 = vrot.lane.b32.xlu0 %v2749, 48
    %v2751 = vpop.permute.xlu0 %2750
    %vm2752 = vcmask 458112
    %s2753 = scalar_lea.vmem %s1, 8
    %2754 = vst.msk [vmem:[%s2753] sm:$0xff] %vm2752, %v2751
    %s2755 = scalar_lea.vmem [#allocation0], 1048
    %v2756 = vld [vmem:[%s2755] sm:$0x1]
    %s2757 = scalar_lea.vmem [#allocation0], 1175
    %v2758 = vld [vmem:[%s2757] sm:$0x2]
    %vm2759 = vcmask 1041409
    %v2760 = vsel %vm2759, %v2758, %v2756
    %s2761 = scalar_lea.vmem [#allocation0], 1302
    %v2762 = vld [vmem:[%s2761] sm:$0x4]
    %vm2763 = vcmask 1042434
    %v2764 = vsel %vm2763, %v2762, %v2760
    %s2765 = scalar_lea.vmem [#allocation0], 1429
    %v2766 = vld [vmem:[%s2765] sm:$0x8]
    %vm2767 = vcmask 1043459
    %v2768 = vsel %vm2767, %v2766, %v2764
    %s2769 = scalar_lea.vmem [#allocation0], 1556
    %v2770 = vld [vmem:[%s2769] sm:$0x10]
    %vm2771 = vcmask 1044484
    %v2772 = vsel %vm2771, %v2770, %v2768
    %s2773 = scalar_lea.vmem [#allocation0], 1683
    %v2774 = vld [vmem:[%s2773] sm:$0x20]
    %vm2775 = vcmask 1045509
    %v2776 = vsel %vm2775, %v2774, %v2772
    %s2777 = scalar_lea.vmem [#allocation0], 1810
    %v2778 = vld [vmem:[%s2777] sm:$0x40]
    %vm2779 = vcmask 1046534
    %v2780 = vsel %vm2779, %v2778, %v2776
    %s2781 = scalar_lea.vmem [#allocation0], 1937
    %v2782 = vld [vmem:[%s2781] sm:$0x80]
    %vm2783 = vcmask 1047559
    %v2784 = vsel %vm2783, %v2782, %v2780
    %2785 = vrot.lane.b32.xlu0 %v2784, 48
    %v2786 = vpop.permute.xlu0 %2785
    %vm2787 = vcmask 458112
    %s2788 = scalar_lea.vmem %s1, 16
    %2789 = vst.msk [vmem:[%s2788] sm:$0xff] %vm2787, %v2786
    %s2790 = scalar_lea.vmem [#allocation0], 1112
    %v2791 = vld [vmem:[%s2790] sm:$0x1]
    %s2792 = scalar_lea.vmem [#allocation0], 1239
    %v2793 = vld [vmem:[%s2792] sm:$0x2]
    %vm2794 = vcmask 1041409
    %v2795 = vsel %vm2794, %v2793, %v2791
    %s2796 = scalar_lea.vmem [#allocation0], 1366
    %v2797 = vld [vmem:[%s2796] sm:$0x4]
    %vm2798 = vcmask 1042434
    %v2799 = vsel %vm2798, %v2797, %v2795
    %s2800 = scalar_lea.vmem [#allocation0], 1493
    %v2801 = vld [vmem:[%s2800] sm:$0x8]
    %vm2802 = vcmask 1043459
    %v2803 = vsel %vm2802, %v2801, %v2799
    %s2804 = scalar_lea.vmem [#allocation0], 1620
    %v2805 = vld [vmem:[%s2804] sm:$0x10]
    %vm2806 = vcmask 1044484
    %v2807 = vsel %vm2806, %v2805, %v2803
    %s2808 = scalar_lea.vmem [#allocation0], 1747
    %v2809 = vld [vmem:[%s2808] sm:$0x20]
    %vm2810 = vcmask 1045509
    %v2811 = vsel %vm2810, %v2809, %v2807
    %s2812 = scalar_lea.vmem [#allocation0], 1874
    %v2813 = vld [vmem:[%s2812] sm:$0x40]
    %vm2814 = vcmask 1046534
    %v2815 = vsel %vm2814, %v2813, %v2811
    %s2816 = scalar_lea.vmem [#allocation0], 2001
    %v2817 = vld [vmem:[%s2816] sm:$0x80]
    %vm2818 = vcmask 1047559
    %v2819 = vsel %vm2818, %v2817, %v2815
    %2820 = vrot.lane.b32.xlu0 %v2819, 48
    %v2821 = vpop.permute.xlu0 %2820
    %vm2822 = vcmask 458112
    %s2823 = scalar_lea.vmem %s1, 24
    %2824 = vst.msk [vmem:[%s2823] sm:$0xff] %vm2822, %v2821
    %s2825 = scalar_lea.vmem [#allocation0], 17
    %v2826 = vld [vmem:[%s2825] sm:$0x1]
    %s2827 = scalar_lea.vmem [#allocation0], 144
    %v2828 = vld [vmem:[%s2827] sm:$0x2]
    %vm2829 = vcmask 1041409
    %v2830 = vsel %vm2829, %v2828, %v2826
    %s2831 = scalar_lea.vmem [#allocation0], 271
    %v2832 = vld [vmem:[%s2831] sm:$0x4]
    %vm2833 = vcmask 1042434
    %v2834 = vsel %vm2833, %v2832, %v2830
    %s2835 = scalar_lea.vmem [#allocation0], 398
    %v2836 = vld [vmem:[%s2835] sm:$0x8]
    %vm2837 = vcmask 1043459
    %v2838 = vsel %vm2837, %v2836, %v2834
    %s2839 = scalar_lea.vmem [#allocation0], 525
    %v2840 = vld [vmem:[%s2839] sm:$0x10]
    %vm2841 = vcmask 1044484
    %v2842 = vsel %vm2841, %v2840, %v2838
    %s2843 = scalar_lea.vmem [#allocation0], 652
    %v2844 = vld [vmem:[%s2843] sm:$0x20]
    %vm2845 = vcmask 1045509
    %v2846 = vsel %vm2845, %v2844, %v2842
    %s2847 = scalar_lea.vmem [#allocation0], 779
    %v2848 = vld [vmem:[%s2847] sm:$0x40]
    %vm2849 = vcmask 1046534
    %v2850 = vsel %vm2849, %v2848, %v2846
    %s2851 = scalar_lea.vmem [#allocation0], 906
    %v2852 = vld [vmem:[%s2851] sm:$0x80]
    %vm2853 = vcmask 1047559
    %v2854 = vsel %vm2853, %v2852, %v2850
    %2855 = vrot.lane.b32.xlu0 %v2854, 40
    %v2856 = vpop.permute.xlu0 %2855
    %vm2857 = vcmask 392512
    %2858 = vst.msk [vmem:[%s1] sm:$0xff] %vm2857, %v2856
    %s2859 = scalar_lea.vmem [#allocation0], 81
    %v2860 = vld [vmem:[%s2859] sm:$0x1]
    %s2861 = scalar_lea.vmem [#allocation0], 208
    %v2862 = vld [vmem:[%s2861] sm:$0x2]
    %vm2863 = vcmask 1041409
    %v2864 = vsel %vm2863, %v2862, %v2860
    %s2865 = scalar_lea.vmem [#allocation0], 335
    %v2866 = vld [vmem:[%s2865] sm:$0x4]
    %vm2867 = vcmask 1042434
    %v2868 = vsel %vm2867, %v2866, %v2864
    %s2869 = scalar_lea.vmem [#allocation0], 462
    %v2870 = vld [vmem:[%s2869] sm:$0x8]
    %vm2871 = vcmask 1043459
    %v2872 = vsel %vm2871, %v2870, %v2868
    %s2873 = scalar_lea.vmem [#allocation0], 589
    %v2874 = vld [vmem:[%s2873] sm:$0x10]
    %vm2875 = vcmask 1044484
    %v2876 = vsel %vm2875, %v2874, %v2872
    %s2877 = scalar_lea.vmem [#allocation0], 716
    %v2878 = vld [vmem:[%s2877] sm:$0x20]
    %vm2879 = vcmask 1045509
    %v2880 = vsel %vm2879, %v2878, %v2876
    %s2881 = scalar_lea.vmem [#allocation0], 843
    %v2882 = vld [vmem:[%s2881] sm:$0x40]
    %vm2883 = vcmask 1046534
    %v2884 = vsel %vm2883, %v2882, %v2880
    %s2885 = scalar_lea.vmem [#allocation0], 970
    %v2886 = vld [vmem:[%s2885] sm:$0x80]
    %vm2887 = vcmask 1047559
    %v2888 = vsel %vm2887, %v2886, %v2884
    %2889 = vrot.lane.b32.xlu0 %v2888, 40
    %v2890 = vpop.permute.xlu0 %2889
    %vm2891 = vcmask 392512
    %s2892 = scalar_lea.vmem %s1, 8
    %2893 = vst.msk [vmem:[%s2892] sm:$0xff] %vm2891, %v2890
    %s2894 = scalar_lea.vmem [#allocation0], 1041
    %v2895 = vld [vmem:[%s2894] sm:$0x1]
    %s2896 = scalar_lea.vmem [#allocation0], 1168
    %v2897 = vld [vmem:[%s2896] sm:$0x2]
    %vm2898 = vcmask 1041409
    %v2899 = vsel %vm2898, %v2897, %v2895
    %s2900 = scalar_lea.vmem [#allocation0], 1295
    %v2901 = vld [vmem:[%s2900] sm:$0x4]
    %vm2902 = vcmask 1042434
    %v2903 = vsel %vm2902, %v2901, %v2899
    %s2904 = scalar_lea.vmem [#allocation0], 1422
    %v2905 = vld [vmem:[%s2904] sm:$0x8]
    %vm2906 = vcmask 1043459
    %v2907 = vsel %vm2906, %v2905, %v2903
    %s2908 = scalar_lea.vmem [#allocation0], 1549
    %v2909 = vld [vmem:[%s2908] sm:$0x10]
    %vm2910 = vcmask 1044484
    %v2911 = vsel %vm2910, %v2909, %v2907
    %s2912 = scalar_lea.vmem [#allocation0], 1676
    %v2913 = vld [vmem:[%s2912] sm:$0x20]
    %vm2914 = vcmask 1045509
    %v2915 = vsel %vm2914, %v2913, %v2911
    %s2916 = scalar_lea.vmem [#allocation0], 1803
    %v2917 = vld [vmem:[%s2916] sm:$0x40]
    %vm2918 = vcmask 1046534
    %v2919 = vsel %vm2918, %v2917, %v2915
    %s2920 = scalar_lea.vmem [#allocation0], 1930
    %v2921 = vld [vmem:[%s2920] sm:$0x80]
    %vm2922 = vcmask 1047559
    %v2923 = vsel %vm2922, %v2921, %v2919
    %2924 = vrot.lane.b32.xlu0 %v2923, 40
    %v2925 = vpop.permute.xlu0 %2924
    %vm2926 = vcmask 392512
    %s2927 = scalar_lea.vmem %s1, 16
    %2928 = vst.msk [vmem:[%s2927] sm:$0xff] %vm2926, %v2925
    %s2929 = scalar_lea.vmem [#allocation0], 1105
    %v2930 = vld [vmem:[%s2929] sm:$0x1]
    %s2931 = scalar_lea.vmem [#allocation0], 1232
    %v2932 = vld [vmem:[%s2931] sm:$0x2]
    %vm2933 = vcmask 1041409
    %v2934 = vsel %vm2933, %v2932, %v2930
    %s2935 = scalar_lea.vmem [#allocation0], 1359
    %v2936 = vld [vmem:[%s2935] sm:$0x4]
    %vm2937 = vcmask 1042434
    %v2938 = vsel %vm2937, %v2936, %v2934
    %s2939 = scalar_lea.vmem [#allocation0], 1486
    %v2940 = vld [vmem:[%s2939] sm:$0x8]
    %vm2941 = vcmask 1043459
    %v2942 = vsel %vm2941, %v2940, %v2938
    %s2943 = scalar_lea.vmem [#allocation0], 1613
    %v2944 = vld [vmem:[%s2943] sm:$0x10]
    %vm2945 = vcmask 1044484
    %v2946 = vsel %vm2945, %v2944, %v2942
    %s2947 = scalar_lea.vmem [#allocation0], 1740
    %v2948 = vld [vmem:[%s2947] sm:$0x20]
    %vm2949 = vcmask 1045509
    %v2950 = vsel %vm2949, %v2948, %v2946
    %s2951 = scalar_lea.vmem [#allocation0], 1867
    %v2952 = vld [vmem:[%s2951] sm:$0x40]
    %vm2953 = vcmask 1046534
    %v2954 = vsel %vm2953, %v2952, %v2950
    %s2955 = scalar_lea.vmem [#allocation0], 1994
    %v2956 = vld [vmem:[%s2955] sm:$0x80]
    %vm2957 = vcmask 1047559
    %v2958 = vsel %vm2957, %v2956, %v2954
    %2959 = vrot.lane.b32.xlu0 %v2958, 40
    %v2960 = vpop.permute.xlu0 %2959
    %vm2961 = vcmask 392512
    %s2962 = scalar_lea.vmem %s1, 24
    %2963 = vst.msk [vmem:[%s2962] sm:$0xff] %vm2961, %v2960
    %s2964 = scalar_lea.vmem [#allocation0], 16
    %v2965 = vld [vmem:[%s2964] sm:$0x1]
    %s2966 = scalar_lea.vmem [#allocation0], 143
    %v2967 = vld [vmem:[%s2966] sm:$0x2]
    %vm2968 = vcmask 1041409
    %v2969 = vsel %vm2968, %v2967, %v2965
    %s2970 = scalar_lea.vmem [#allocation0], 270
    %v2971 = vld [vmem:[%s2970] sm:$0x4]
    %vm2972 = vcmask 1042434
    %v2973 = vsel %vm2972, %v2971, %v2969
    %s2974 = scalar_lea.vmem [#allocation0], 397
    %v2975 = vld [vmem:[%s2974] sm:$0x8]
    %vm2976 = vcmask 1043459
    %v2977 = vsel %vm2976, %v2975, %v2973
    %s2978 = scalar_lea.vmem [#allocation0], 524
    %v2979 = vld [vmem:[%s2978] sm:$0x10]
    %vm2980 = vcmask 1044484
    %v2981 = vsel %vm2980, %v2979, %v2977
    %s2982 = scalar_lea.vmem [#allocation0], 651
    %v2983 = vld [vmem:[%s2982] sm:$0x20]
    %vm2984 = vcmask 1045509
    %v2985 = vsel %vm2984, %v2983, %v2981
    %s2986 = scalar_lea.vmem [#allocation0], 778
    %v2987 = vld [vmem:[%s2986] sm:$0x40]
    %vm2988 = vcmask 1046534
    %v2989 = vsel %vm2988, %v2987, %v2985
    %s2990 = scalar_lea.vmem [#allocation0], 905
    %v2991 = vld [vmem:[%s2990] sm:$0x80]
    %vm2992 = vcmask 1047559
    %v2993 = vsel %vm2992, %v2991, %v2989
    %2994 = vrot.lane.b32.xlu0 %v2993, 32
    %v2995 = vpop.permute.xlu0 %2994
    %vm2996 = vcmask 326912
    %2997 = vst.msk [vmem:[%s1] sm:$0xff] %vm2996, %v2995
    %s2998 = scalar_lea.vmem [#allocation0], 80
    %v2999 = vld [vmem:[%s2998] sm:$0x1]
    %s3000 = scalar_lea.vmem [#allocation0], 207
    %v3001 = vld [vmem:[%s3000] sm:$0x2]
    %vm3002 = vcmask 1041409
    %v3003 = vsel %vm3002, %v3001, %v2999
    %s3004 = scalar_lea.vmem [#allocation0], 334
    %v3005 = vld [vmem:[%s3004] sm:$0x4]
    %vm3006 = vcmask 1042434
    %v3007 = vsel %vm3006, %v3005, %v3003
    %s3008 = scalar_lea.vmem [#allocation0], 461
    %v3009 = vld [vmem:[%s3008] sm:$0x8]
    %vm3010 = vcmask 1043459
    %v3011 = vsel %vm3010, %v3009, %v3007
    %s3012 = scalar_lea.vmem [#allocation0], 588
    %v3013 = vld [vmem:[%s3012] sm:$0x10]
    %vm3014 = vcmask 1044484
    %v3015 = vsel %vm3014, %v3013, %v3011
    %s3016 = scalar_lea.vmem [#allocation0], 715
    %v3017 = vld [vmem:[%s3016] sm:$0x20]
    %vm3018 = vcmask 1045509
    %v3019 = vsel %vm3018, %v3017, %v3015
    %s3020 = scalar_lea.vmem [#allocation0], 842
    %v3021 = vld [vmem:[%s3020] sm:$0x40]
    %vm3022 = vcmask 1046534
    %v3023 = vsel %vm3022, %v3021, %v3019
    %s3024 = scalar_lea.vmem [#allocation0], 969
    %v3025 = vld [vmem:[%s3024] sm:$0x80]
    %vm3026 = vcmask 1047559
    %v3027 = vsel %vm3026, %v3025, %v3023
    %3028 = vrot.lane.b32.xlu0 %v3027, 32
    %v3029 = vpop.permute.xlu0 %3028
    %vm3030 = vcmask 326912
    %s3031 = scalar_lea.vmem %s1, 8
    %3032 = vst.msk [vmem:[%s3031] sm:$0xff] %vm3030, %v3029
    %s3033 = scalar_lea.vmem [#allocation0], 1040
    %v3034 = vld [vmem:[%s3033] sm:$0x1]
    %s3035 = scalar_lea.vmem [#allocation0], 1167
    %v3036 = vld [vmem:[%s3035] sm:$0x2]
    %vm3037 = vcmask 1041409
    %v3038 = vsel %vm3037, %v3036, %v3034
    %s3039 = scalar_lea.vmem [#allocation0], 1294
    %v3040 = vld [vmem:[%s3039] sm:$0x4]
    %vm3041 = vcmask 1042434
    %v3042 = vsel %vm3041, %v3040, %v3038
    %s3043 = scalar_lea.vmem [#allocation0], 1421
    %v3044 = vld [vmem:[%s3043] sm:$0x8]
    %vm3045 = vcmask 1043459
    %v3046 = vsel %vm3045, %v3044, %v3042
    %s3047 = scalar_lea.vmem [#allocation0], 1548
    %v3048 = vld [vmem:[%s3047] sm:$0x10]
    %vm3049 = vcmask 1044484
    %v3050 = vsel %vm3049, %v3048, %v3046
    %s3051 = scalar_lea.vmem [#allocation0], 1675
    %v3052 = vld [vmem:[%s3051] sm:$0x20]
    %vm3053 = vcmask 1045509
    %v3054 = vsel %vm3053, %v3052, %v3050
    %s3055 = scalar_lea.vmem [#allocation0], 1802
    %v3056 = vld [vmem:[%s3055] sm:$0x40]
    %vm3057 = vcmask 1046534
    %v3058 = vsel %vm3057, %v3056, %v3054
    %s3059 = scalar_lea.vmem [#allocation0], 1929
    %v3060 = vld [vmem:[%s3059] sm:$0x80]
    %vm3061 = vcmask 1047559
    %v3062 = vsel %vm3061, %v3060, %v3058
    %3063 = vrot.lane.b32.xlu0 %v3062, 32
    %v3064 = vpop.permute.xlu0 %3063
    %vm3065 = vcmask 326912
    %s3066 = scalar_lea.vmem %s1, 16
    %3067 = vst.msk [vmem:[%s3066] sm:$0xff] %vm3065, %v3064
    %s3068 = scalar_lea.vmem [#allocation0], 1104
    %v3069 = vld [vmem:[%s3068] sm:$0x1]
    %s3070 = scalar_lea.vmem [#allocation0], 1231
    %v3071 = vld [vmem:[%s3070] sm:$0x2]
    %vm3072 = vcmask 1041409
    %v3073 = vsel %vm3072, %v3071, %v3069
    %s3074 = scalar_lea.vmem [#allocation0], 1358
    %v3075 = vld [vmem:[%s3074] sm:$0x4]
    %vm3076 = vcmask 1042434
    %v3077 = vsel %vm3076, %v3075, %v3073
    %s3078 = scalar_lea.vmem [#allocation0], 1485
    %v3079 = vld [vmem:[%s3078] sm:$0x8]
    %vm3080 = vcmask 1043459
    %v3081 = vsel %vm3080, %v3079, %v3077
    %s3082 = scalar_lea.vmem [#allocation0], 1612
    %v3083 = vld [vmem:[%s3082] sm:$0x10]
    %vm3084 = vcmask 1044484
    %v3085 = vsel %vm3084, %v3083, %v3081
    %s3086 = scalar_lea.vmem [#allocation0], 1739
    %v3087 = vld [vmem:[%s3086] sm:$0x20]
    %vm3088 = vcmask 1045509
    %v3089 = vsel %vm3088, %v3087, %v3085
    %s3090 = scalar_lea.vmem [#allocation0], 1866
    %v3091 = vld [vmem:[%s3090] sm:$0x40]
    %vm3092 = vcmask 1046534
    %v3093 = vsel %vm3092, %v3091, %v3089
    %s3094 = scalar_lea.vmem [#allocation0], 1993
    %v3095 = vld [vmem:[%s3094] sm:$0x80]
    %vm3096 = vcmask 1047559
    %v3097 = vsel %vm3096, %v3095, %v3093
    %3098 = vrot.lane.b32.xlu0 %v3097, 32
    %v3099 = vpop.permute.xlu0 %3098
    %vm3100 = vcmask 326912
    %s3101 = scalar_lea.vmem %s1, 24
    %3102 = vst.msk [vmem:[%s3101] sm:$0xff] %vm3100, %v3099
    %s3103 = scalar_lea.vmem [#allocation0], 9
    %v3104 = vld [vmem:[%s3103] sm:$0x1]
    %s3105 = scalar_lea.vmem [#allocation0], 136
    %v3106 = vld [vmem:[%s3105] sm:$0x2]
    %vm3107 = vcmask 1041409
    %v3108 = vsel %vm3107, %v3106, %v3104
    %s3109 = scalar_lea.vmem [#allocation0], 263
    %v3110 = vld [vmem:[%s3109] sm:$0x4]
    %vm3111 = vcmask 1042434
    %v3112 = vsel %vm3111, %v3110, %v3108
    %s3113 = scalar_lea.vmem [#allocation0], 390
    %v3114 = vld [vmem:[%s3113] sm:$0x8]
    %vm3115 = vcmask 1043459
    %v3116 = vsel %vm3115, %v3114, %v3112
    %s3117 = scalar_lea.vmem [#allocation0], 517
    %v3118 = vld [vmem:[%s3117] sm:$0x10]
    %vm3119 = vcmask 1044484
    %v3120 = vsel %vm3119, %v3118, %v3116
    %s3121 = scalar_lea.vmem [#allocation0], 644
    %v3122 = vld [vmem:[%s3121] sm:$0x20]
    %vm3123 = vcmask 1045509
    %v3124 = vsel %vm3123, %v3122, %v3120
    %s3125 = scalar_lea.vmem [#allocation0], 771
    %v3126 = vld [vmem:[%s3125] sm:$0x40]
    %vm3127 = vcmask 1046534
    %v3128 = vsel %vm3127, %v3126, %v3124
    %s3129 = scalar_lea.vmem [#allocation0], 898
    %v3130 = vld [vmem:[%s3129] sm:$0x80]
    %vm3131 = vcmask 1047559
    %v3132 = vsel %vm3131, %v3130, %v3128
    %3133 = vrot.lane.b32.xlu0 %v3132, 24
    %v3134 = vpop.permute.xlu0 %3133
    %vm3135 = vcmask 261312
    %3136 = vst.msk [vmem:[%s1] sm:$0xff] %vm3135, %v3134
    %s3137 = scalar_lea.vmem [#allocation0], 73
    %v3138 = vld [vmem:[%s3137] sm:$0x1]
    %s3139 = scalar_lea.vmem [#allocation0], 200
    %v3140 = vld [vmem:[%s3139] sm:$0x2]
    %vm3141 = vcmask 1041409
    %v3142 = vsel %vm3141, %v3140, %v3138
    %s3143 = scalar_lea.vmem [#allocation0], 327
    %v3144 = vld [vmem:[%s3143] sm:$0x4]
    %vm3145 = vcmask 1042434
    %v3146 = vsel %vm3145, %v3144, %v3142
    %s3147 = scalar_lea.vmem [#allocation0], 454
    %v3148 = vld [vmem:[%s3147] sm:$0x8]
    %vm3149 = vcmask 1043459
    %v3150 = vsel %vm3149, %v3148, %v3146
    %s3151 = scalar_lea.vmem [#allocation0], 581
    %v3152 = vld [vmem:[%s3151] sm:$0x10]
    %vm3153 = vcmask 1044484
    %v3154 = vsel %vm3153, %v3152, %v3150
    %s3155 = scalar_lea.vmem [#allocation0], 708
    %v3156 = vld [vmem:[%s3155] sm:$0x20]
    %vm3157 = vcmask 1045509
    %v3158 = vsel %vm3157, %v3156, %v3154
    %s3159 = scalar_lea.vmem [#allocation0], 835
    %v3160 = vld [vmem:[%s3159] sm:$0x40]
    %vm3161 = vcmask 1046534
    %v3162 = vsel %vm3161, %v3160, %v3158
    %s3163 = scalar_lea.vmem [#allocation0], 962
    %v3164 = vld [vmem:[%s3163] sm:$0x80]
    %vm3165 = vcmask 1047559
    %v3166 = vsel %vm3165, %v3164, %v3162
    %3167 = vrot.lane.b32.xlu0 %v3166, 24
    %v3168 = vpop.permute.xlu0 %3167
    %vm3169 = vcmask 261312
    %s3170 = scalar_lea.vmem %s1, 8
    %3171 = vst.msk [vmem:[%s3170] sm:$0xff] %vm3169, %v3168
    %s3172 = scalar_lea.vmem [#allocation0], 1033
    %v3173 = vld [vmem:[%s3172] sm:$0x1]
    %s3174 = scalar_lea.vmem [#allocation0], 1160
    %v3175 = vld [vmem:[%s3174] sm:$0x2]
    %vm3176 = vcmask 1041409
    %v3177 = vsel %vm3176, %v3175, %v3173
    %s3178 = scalar_lea.vmem [#allocation0], 1287
    %v3179 = vld [vmem:[%s3178] sm:$0x4]
    %vm3180 = vcmask 1042434
    %v3181 = vsel %vm3180, %v3179, %v3177
    %s3182 = scalar_lea.vmem [#allocation0], 1414
    %v3183 = vld [vmem:[%s3182] sm:$0x8]
    %vm3184 = vcmask 1043459
    %v3185 = vsel %vm3184, %v3183, %v3181
    %s3186 = scalar_lea.vmem [#allocation0], 1541
    %v3187 = vld [vmem:[%s3186] sm:$0x10]
    %vm3188 = vcmask 1044484
    %v3189 = vsel %vm3188, %v3187, %v3185
    %s3190 = scalar_lea.vmem [#allocation0], 1668
    %v3191 = vld [vmem:[%s3190] sm:$0x20]
    %vm3192 = vcmask 1045509
    %v3193 = vsel %vm3192, %v3191, %v3189
    %s3194 = scalar_lea.vmem [#allocation0], 1795
    %v3195 = vld [vmem:[%s3194] sm:$0x40]
    %vm3196 = vcmask 1046534
    %v3197 = vsel %vm3196, %v3195, %v3193
    %s3198 = scalar_lea.vmem [#allocation0], 1922
    %v3199 = vld [vmem:[%s3198] sm:$0x80]
    %vm3200 = vcmask 1047559
    %v3201 = vsel %vm3200, %v3199, %v3197
    %3202 = vrot.lane.b32.xlu0 %v3201, 24
    %v3203 = vpop.permute.xlu0 %3202
    %vm3204 = vcmask 261312
    %s3205 = scalar_lea.vmem %s1, 16
    %3206 = vst.msk [vmem:[%s3205] sm:$0xff] %vm3204, %v3203
    %s3207 = scalar_lea.vmem [#allocation0], 1097
    %v3208 = vld [vmem:[%s3207] sm:$0x1]
    %s3209 = scalar_lea.vmem [#allocation0], 1224
    %v3210 = vld [vmem:[%s3209] sm:$0x2]
    %vm3211 = vcmask 1041409
    %v3212 = vsel %vm3211, %v3210, %v3208
    %s3213 = scalar_lea.vmem [#allocation0], 1351
    %v3214 = vld [vmem:[%s3213] sm:$0x4]
    %vm3215 = vcmask 1042434
    %v3216 = vsel %vm3215, %v3214, %v3212
    %s3217 = scalar_lea.vmem [#allocation0], 1478
    %v3218 = vld [vmem:[%s3217] sm:$0x8]
    %vm3219 = vcmask 1043459
    %v3220 = vsel %vm3219, %v3218, %v3216
    %s3221 = scalar_lea.vmem [#allocation0], 1605
    %v3222 = vld [vmem:[%s3221] sm:$0x10]
    %vm3223 = vcmask 1044484
    %v3224 = vsel %vm3223, %v3222, %v3220
    %s3225 = scalar_lea.vmem [#allocation0], 1732
    %v3226 = vld [vmem:[%s3225] sm:$0x20]
    %vm3227 = vcmask 1045509
    %v3228 = vsel %vm3227, %v3226, %v3224
    %s3229 = scalar_lea.vmem [#allocation0], 1859
    %v3230 = vld [vmem:[%s3229] sm:$0x40]
    %vm3231 = vcmask 1046534
    %v3232 = vsel %vm3231, %v3230, %v3228
    %s3233 = scalar_lea.vmem [#allocation0], 1986
    %v3234 = vld [vmem:[%s3233] sm:$0x80]
    %vm3235 = vcmask 1047559
    %v3236 = vsel %vm3235, %v3234, %v3232
    %3237 = vrot.lane.b32.xlu0 %v3236, 24
    %v3238 = vpop.permute.xlu0 %3237
    %vm3239 = vcmask 261312
    %s3240 = scalar_lea.vmem %s1, 24
    %3241 = vst.msk [vmem:[%s3240] sm:$0xff] %vm3239, %v3238
    %s3242 = scalar_lea.vmem [#allocation0], 8
    %v3243 = vld [vmem:[%s3242] sm:$0x1]
    %s3244 = scalar_lea.vmem [#allocation0], 135
    %v3245 = vld [vmem:[%s3244] sm:$0x2]
    %vm3246 = vcmask 1041409
    %v3247 = vsel %vm3246, %v3245, %v3243
    %s3248 = scalar_lea.vmem [#allocation0], 262
    %v3249 = vld [vmem:[%s3248] sm:$0x4]
    %vm3250 = vcmask 1042434
    %v3251 = vsel %vm3250, %v3249, %v3247
    %s3252 = scalar_lea.vmem [#allocation0], 389
    %v3253 = vld [vmem:[%s3252] sm:$0x8]
    %vm3254 = vcmask 1043459
    %v3255 = vsel %vm3254, %v3253, %v3251
    %s3256 = scalar_lea.vmem [#allocation0], 516
    %v3257 = vld [vmem:[%s3256] sm:$0x10]
    %vm3258 = vcmask 1044484
    %v3259 = vsel %vm3258, %v3257, %v3255
    %s3260 = scalar_lea.vmem [#allocation0], 643
    %v3261 = vld [vmem:[%s3260] sm:$0x20]
    %vm3262 = vcmask 1045509
    %v3263 = vsel %vm3262, %v3261, %v3259
    %s3264 = scalar_lea.vmem [#allocation0], 770
    %v3265 = vld [vmem:[%s3264] sm:$0x40]
    %vm3266 = vcmask 1046534
    %v3267 = vsel %vm3266, %v3265, %v3263
    %s3268 = scalar_lea.vmem [#allocation0], 897
    %v3269 = vld [vmem:[%s3268] sm:$0x80]
    %vm3270 = vcmask 1047559
    %v3271 = vsel %vm3270, %v3269, %v3267
    %3272 = vrot.lane.b32.xlu0 %v3271, 16
    %v3273 = vpop.permute.xlu0 %3272
    %vm3274 = vcmask 195712
    %3275 = vst.msk [vmem:[%s1] sm:$0xff] %vm3274, %v3273
    %s3276 = scalar_lea.vmem [#allocation0], 72
    %v3277 = vld [vmem:[%s3276] sm:$0x1]
    %s3278 = scalar_lea.vmem [#allocation0], 199
    %v3279 = vld [vmem:[%s3278] sm:$0x2]
    %vm3280 = vcmask 1041409
    %v3281 = vsel %vm3280, %v3279, %v3277
    %s3282 = scalar_lea.vmem [#allocation0], 326
    %v3283 = vld [vmem:[%s3282] sm:$0x4]
    %vm3284 = vcmask 1042434
    %v3285 = vsel %vm3284, %v3283, %v3281
    %s3286 = scalar_lea.vmem [#allocation0], 453
    %v3287 = vld [vmem:[%s3286] sm:$0x8]
    %vm3288 = vcmask 1043459
    %v3289 = vsel %vm3288, %v3287, %v3285
    %s3290 = scalar_lea.vmem [#allocation0], 580
    %v3291 = vld [vmem:[%s3290] sm:$0x10]
    %vm3292 = vcmask 1044484
    %v3293 = vsel %vm3292, %v3291, %v3289
    %s3294 = scalar_lea.vmem [#allocation0], 707
    %v3295 = vld [vmem:[%s3294] sm:$0x20]
    %vm3296 = vcmask 1045509
    %v3297 = vsel %vm3296, %v3295, %v3293
    %s3298 = scalar_lea.vmem [#allocation0], 834
    %v3299 = vld [vmem:[%s3298] sm:$0x40]
    %vm3300 = vcmask 1046534
    %v3301 = vsel %vm3300, %v3299, %v3297
    %s3302 = scalar_lea.vmem [#allocation0], 961
    %v3303 = vld [vmem:[%s3302] sm:$0x80]
    %vm3304 = vcmask 1047559
    %v3305 = vsel %vm3304, %v3303, %v3301
    %3306 = vrot.lane.b32.xlu0 %v3305, 16
    %v3307 = vpop.permute.xlu0 %3306
    %vm3308 = vcmask 195712
    %s3309 = scalar_lea.vmem %s1, 8
    %3310 = vst.msk [vmem:[%s3309] sm:$0xff] %vm3308, %v3307
    %s3311 = scalar_lea.vmem [#allocation0], 1032
    %v3312 = vld [vmem:[%s3311] sm:$0x1]
    %s3313 = scalar_lea.vmem [#allocation0], 1159
    %v3314 = vld [vmem:[%s3313] sm:$0x2]
    %vm3315 = vcmask 1041409
    %v3316 = vsel %vm3315, %v3314, %v3312
    %s3317 = scalar_lea.vmem [#allocation0], 1286
    %v3318 = vld [vmem:[%s3317] sm:$0x4]
    %vm3319 = vcmask 1042434
    %v3320 = vsel %vm3319, %v3318, %v3316
    %s3321 = scalar_lea.vmem [#allocation0], 1413
    %v3322 = vld [vmem:[%s3321] sm:$0x8]
    %vm3323 = vcmask 1043459
    %v3324 = vsel %vm3323, %v3322, %v3320
    %s3325 = scalar_lea.vmem [#allocation0], 1540
    %v3326 = vld [vmem:[%s3325] sm:$0x10]
    %vm3327 = vcmask 1044484
    %v3328 = vsel %vm3327, %v3326, %v3324
    %s3329 = scalar_lea.vmem [#allocation0], 1667
    %v3330 = vld [vmem:[%s3329] sm:$0x20]
    %vm3331 = vcmask 1045509
    %v3332 = vsel %vm3331, %v3330, %v3328
    %s3333 = scalar_lea.vmem [#allocation0], 1794
    %v3334 = vld [vmem:[%s3333] sm:$0x40]
    %vm3335 = vcmask 1046534
    %v3336 = vsel %vm3335, %v3334, %v3332
    %s3337 = scalar_lea.vmem [#allocation0], 1921
    %v3338 = vld [vmem:[%s3337] sm:$0x80]
    %vm3339 = vcmask 1047559
    %v3340 = vsel %vm3339, %v3338, %v3336
    %3341 = vrot.lane.b32.xlu0 %v3340, 16
    %v3342 = vpop.permute.xlu0 %3341
    %vm3343 = vcmask 195712
    %s3344 = scalar_lea.vmem %s1, 16
    %3345 = vst.msk [vmem:[%s3344] sm:$0xff] %vm3343, %v3342
    %s3346 = scalar_lea.vmem [#allocation0], 1096
    %v3347 = vld [vmem:[%s3346] sm:$0x1]
    %s3348 = scalar_lea.vmem [#allocation0], 1223
    %v3349 = vld [vmem:[%s3348] sm:$0x2]
    %vm3350 = vcmask 1041409
    %v3351 = vsel %vm3350, %v3349, %v3347
    %s3352 = scalar_lea.vmem [#allocation0], 1350
    %v3353 = vld [vmem:[%s3352] sm:$0x4]
    %vm3354 = vcmask 1042434
    %v3355 = vsel %vm3354, %v3353, %v3351
    %s3356 = scalar_lea.vmem [#allocation0], 1477
    %v3357 = vld [vmem:[%s3356] sm:$0x8]
    %vm3358 = vcmask 1043459
    %v3359 = vsel %vm3358, %v3357, %v3355
    %s3360 = scalar_lea.vmem [#allocation0], 1604
    %v3361 = vld [vmem:[%s3360] sm:$0x10]
    %vm3362 = vcmask 1044484
    %v3363 = vsel %vm3362, %v3361, %v3359
    %s3364 = scalar_lea.vmem [#allocation0], 1731
    %v3365 = vld [vmem:[%s3364] sm:$0x20]
    %vm3366 = vcmask 1045509
    %v3367 = vsel %vm3366, %v3365, %v3363
    %s3368 = scalar_lea.vmem [#allocation0], 1858
    %v3369 = vld [vmem:[%s3368] sm:$0x40]
    %vm3370 = vcmask 1046534
    %v3371 = vsel %vm3370, %v3369, %v3367
    %s3372 = scalar_lea.vmem [#allocation0], 1985
    %v3373 = vld [vmem:[%s3372] sm:$0x80]
    %vm3374 = vcmask 1047559
    %v3375 = vsel %vm3374, %v3373, %v3371
    %3376 = vrot.lane.b32.xlu0 %v3375, 16
    %v3377 = vpop.permute.xlu0 %3376
    %vm3378 = vcmask 195712
    %s3379 = scalar_lea.vmem %s1, 24
    %3380 = vst.msk [vmem:[%s3379] sm:$0xff] %vm3378, %v3377
    %s3381 = scalar_lea.vmem [#allocation0], 1
    %v3382 = vld [vmem:[%s3381] sm:$0x1]
    %s3383 = scalar_lea.vmem [#allocation0], 128
    %v3384 = vld [vmem:[%s3383] sm:$0x2]
    %vm3385 = vcmask 1041409
    %v3386 = vsel %vm3385, %v3384, %v3382
    %s3387 = scalar_lea.vmem [#allocation0], 255
    %v3388 = vld [vmem:[%s3387] sm:$0x4]
    %vm3389 = vcmask 1042434
    %v3390 = vsel %vm3389, %v3388, %v3386
    %s3391 = scalar_lea.vmem [#allocation0], 382
    %v3392 = vld [vmem:[%s3391] sm:$0x8]
    %vm3393 = vcmask 1043459
    %v3394 = vsel %vm3393, %v3392, %v3390
    %s3395 = scalar_lea.vmem [#allocation0], 509
    %v3396 = vld [vmem:[%s3395] sm:$0x10]
    %vm3397 = vcmask 1044484
    %v3398 = vsel %vm3397, %v3396, %v3394
    %s3399 = scalar_lea.vmem [#allocation0], 636
    %v3400 = vld [vmem:[%s3399] sm:$0x20]
    %vm3401 = vcmask 1045509
    %v3402 = vsel %vm3401, %v3400, %v3398
    %s3403 = scalar_lea.vmem [#allocation0], 763
    %v3404 = vld [vmem:[%s3403] sm:$0x40]
    %vm3405 = vcmask 1046534
    %v3406 = vsel %vm3405, %v3404, %v3402
    %s3407 = scalar_lea.vmem [#allocation0], 890
    %v3408 = vld [vmem:[%s3407] sm:$0x80]
    %vm3409 = vcmask 1047559
    %v3410 = vsel %vm3409, %v3408, %v3406
    %3411 = vrot.lane.b32.xlu0 %v3410, 8
    %v3412 = vpop.permute.xlu0 %3411
    %vm3413 = vcmask 130112
    %3414 = vst.msk [vmem:[%s1] sm:$0xff] %vm3413, %v3412
    %s3415 = scalar_lea.vmem [#allocation0], 65
    %v3416 = vld [vmem:[%s3415] sm:$0x1]
    %s3417 = scalar_lea.vmem [#allocation0], 192
    %v3418 = vld [vmem:[%s3417] sm:$0x2]
    %vm3419 = vcmask 1041409
    %v3420 = vsel %vm3419, %v3418, %v3416
    %s3421 = scalar_lea.vmem [#allocation0], 319
    %v3422 = vld [vmem:[%s3421] sm:$0x4]
    %vm3423 = vcmask 1042434
    %v3424 = vsel %vm3423, %v3422, %v3420
    %s3425 = scalar_lea.vmem [#allocation0], 446
    %v3426 = vld [vmem:[%s3425] sm:$0x8]
    %vm3427 = vcmask 1043459
    %v3428 = vsel %vm3427, %v3426, %v3424
    %s3429 = scalar_lea.vmem [#allocation0], 573
    %v3430 = vld [vmem:[%s3429] sm:$0x10]
    %vm3431 = vcmask 1044484
    %v3432 = vsel %vm3431, %v3430, %v3428
    %s3433 = scalar_lea.vmem [#allocation0], 700
    %v3434 = vld [vmem:[%s3433] sm:$0x20]
    %vm3435 = vcmask 1045509
    %v3436 = vsel %vm3435, %v3434, %v3432
    %s3437 = scalar_lea.vmem [#allocation0], 827
    %v3438 = vld [vmem:[%s3437] sm:$0x40]
    %vm3439 = vcmask 1046534
    %v3440 = vsel %vm3439, %v3438, %v3436
    %s3441 = scalar_lea.vmem [#allocation0], 954
    %v3442 = vld [vmem:[%s3441] sm:$0x80]
    %vm3443 = vcmask 1047559
    %v3444 = vsel %vm3443, %v3442, %v3440
    %3445 = vrot.lane.b32.xlu0 %v3444, 8
    %v3446 = vpop.permute.xlu0 %3445
    %vm3447 = vcmask 130112
    %s3448 = scalar_lea.vmem %s1, 8
    %3449 = vst.msk [vmem:[%s3448] sm:$0xff] %vm3447, %v3446
    %s3450 = scalar_lea.vmem [#allocation0], 1025
    %v3451 = vld [vmem:[%s3450] sm:$0x1]
    %s3452 = scalar_lea.vmem [#allocation0], 1152
    %v3453 = vld [vmem:[%s3452] sm:$0x2]
    %vm3454 = vcmask 1041409
    %v3455 = vsel %vm3454, %v3453, %v3451
    %s3456 = scalar_lea.vmem [#allocation0], 1279
    %v3457 = vld [vmem:[%s3456] sm:$0x4]
    %vm3458 = vcmask 1042434
    %v3459 = vsel %vm3458, %v3457, %v3455
    %s3460 = scalar_lea.vmem [#allocation0], 1406
    %v3461 = vld [vmem:[%s3460] sm:$0x8]
    %vm3462 = vcmask 1043459
    %v3463 = vsel %vm3462, %v3461, %v3459
    %s3464 = scalar_lea.vmem [#allocation0], 1533
    %v3465 = vld [vmem:[%s3464] sm:$0x10]
    %vm3466 = vcmask 1044484
    %v3467 = vsel %vm3466, %v3465, %v3463
    %s3468 = scalar_lea.vmem [#allocation0], 1660
    %v3469 = vld [vmem:[%s3468] sm:$0x20]
    %vm3470 = vcmask 1045509
    %v3471 = vsel %vm3470, %v3469, %v3467
    %s3472 = scalar_lea.vmem [#allocation0], 1787
    %v3473 = vld [vmem:[%s3472] sm:$0x40]
    %vm3474 = vcmask 1046534
    %v3475 = vsel %vm3474, %v3473, %v3471
    %s3476 = scalar_lea.vmem [#allocation0], 1914
    %v3477 = vld [vmem:[%s3476] sm:$0x80]
    %vm3478 = vcmask 1047559
    %v3479 = vsel %vm3478, %v3477, %v3475
    %3480 = vrot.lane.b32.xlu0 %v3479, 8
    %v3481 = vpop.permute.xlu0 %3480
    %vm3482 = vcmask 130112
    %s3483 = scalar_lea.vmem %s1, 16
    %3484 = vst.msk [vmem:[%s3483] sm:$0xff] %vm3482, %v3481
    %s3485 = scalar_lea.vmem [#allocation0], 1089
    %v3486 = vld [vmem:[%s3485] sm:$0x1]
    %s3487 = scalar_lea.vmem [#allocation0], 1216
    %v3488 = vld [vmem:[%s3487] sm:$0x2]
    %vm3489 = vcmask 1041409
    %v3490 = vsel %vm3489, %v3488, %v3486
    %s3491 = scalar_lea.vmem [#allocation0], 1343
    %v3492 = vld [vmem:[%s3491] sm:$0x4]
    %vm3493 = vcmask 1042434
    %v3494 = vsel %vm3493, %v3492, %v3490
    %s3495 = scalar_lea.vmem [#allocation0], 1470
    %v3496 = vld [vmem:[%s3495] sm:$0x8]
    %vm3497 = vcmask 1043459
    %v3498 = vsel %vm3497, %v3496, %v3494
    %s3499 = scalar_lea.vmem [#allocation0], 1597
    %v3500 = vld [vmem:[%s3499] sm:$0x10]
    %vm3501 = vcmask 1044484
    %v3502 = vsel %vm3501, %v3500, %v3498
    %s3503 = scalar_lea.vmem [#allocation0], 1724
    %v3504 = vld [vmem:[%s3503] sm:$0x20]
    %vm3505 = vcmask 1045509
    %v3506 = vsel %vm3505, %v3504, %v3502
    %s3507 = scalar_lea.vmem [#allocation0], 1851
    %v3508 = vld [vmem:[%s3507] sm:$0x40]
    %vm3509 = vcmask 1046534
    %v3510 = vsel %vm3509, %v3508, %v3506
    %s3511 = scalar_lea.vmem [#allocation0], 1978
    %v3512 = vld [vmem:[%s3511] sm:$0x80]
    %vm3513 = vcmask 1047559
    %v3514 = vsel %vm3513, %v3512, %v3510
    %3515 = vrot.lane.b32.xlu0 %v3514, 8
    %v3516 = vpop.permute.xlu0 %3515
    %vm3517 = vcmask 130112
    %s3518 = scalar_lea.vmem %s1, 24
    %3519 = vst.msk [vmem:[%s3518] sm:$0xff] %vm3517, %v3516

// kernel: ffc_bn_act_forward.5
$region0: #{ffc_bn_act_forward.5}
  #allocation0 [shape = 'u32[]', space=smem, size = 0x4, offset = 0x4, fixed_abs, tag = 'smem constant byte address 0x4 - core index']
  #allocation1 [shape = 'u32[144,128]{1,0:T(1,128)}', space=vmem, size = 0x12000, scoped, tag = 'internal scratch']
  %s0 = inlined_call_operand.vmem [shape: bf16[1,16,288], index: 0, kind: input, shape index: {}]
  %s1 = inlined_call_operand.vmem [shape: bf16[16,16], index: 1, kind: input, shape index: {}]
  %s2 = inlined_call_operand.vmem [shape: f32[16,1], index: 2, kind: input, shape index: {}]
  %s3 = inlined_call_operand.vmem [shape: f32[1,16,288], index: 3, kind: output, shape index: {}]
  %s4 = sld [smem:[#allocation0]]
  $region22: #{ffc_bn_act_forward.5} parent=0
    _
  %s6 = ssub.s32 1, %s4
  %s7 = scalar_select 0, %s6, %s4
  // Predicated region
  $region2: #{ffc_bn_act_forward.5} parent=0 // pred_check
    _
  $region3: #{ffc_bn_act_forward.5} parent=0 // pred_check_branch
    %9 = sbr.rel (0) target = $region5
  $region4: #{ffc_bn_act_forward.5} parent=0 // pred_region
    _
  $region5: #{ffc_bn_act_forward.5} parent=0 // pred_fallthru
    _
  // Predicated region
  $region6: #{ffc_bn_act_forward.5} parent=0 // pred_check
    _
  $region7: #{ffc_bn_act_forward.5} parent=0 // pred_check_branch
    %11 = sbr.rel (0) target = $region9
  $region8: #{ffc_bn_act_forward.5} parent=0 // pred_region
    _
  $region9: #{ffc_bn_act_forward.5} parent=0 // pred_fallthru
    _
  // Predicated region
  $region10: #{ffc_bn_act_forward.5} parent=0 // pred_check
    _
  $region11: #{ffc_bn_act_forward.5} parent=0 // pred_check_branch
    %13 = sbr.rel (0) target = $region13
  $region12: #{ffc_bn_act_forward.5} parent=0 // pred_region
    _
  $region13: #{ffc_bn_act_forward.5} parent=0 // pred_fallthru
    _
  %v15 = vld [vmem:[%s0] sm:$0xff]
  %v16 = vld [vmem:[%s0 + $0x8] sm:$0xf]
  %v17 = vld [vmem:[%s0 + $0xc] sm:$0xff]
  %v18 = vld [vmem:[%s0 + $0x14] sm:$0xf]
  %v19 = vld [vmem:[%s1] sm:$0xf]
  %v20 = vld [vmem:[%s1 + $0x4] sm:$0xf]
  %v21 = vld [vmem:[%s2] sm:$0xff]
  %v22 = vld [vmem:[%s2 + $0x8] sm:$0xff]
  %24 = vset.pattern.permute.xlu0 0
  %25 = vperm.xlu0 %24, %v21
  %v26 = vpop.permute.xlu0 %25
  %29 = vset.pattern.permute.xlu0 0
  %30 = vperm.xlu0 %29, %v22
  %v31 = vpop.permute.xlu0 %30
  %v35 = vunpack.c.l.b16 %v19
  %v36 = vunpack.c.l.b16 %v20
  %v37 = vpack.c.b16 %v36, %v35
  %v42 = vunpack.c.l.b16 %v15
  %v43 = vunpack.c.h.b16 %v15
  %v44 = vunpack.c.l.b16 %v16
  %v45 = vunpack.c.l.b16 %v17
  %v46 = vunpack.c.h.b16 %v17
  %v47 = vunpack.c.l.b16 %v18
  %v48 = vpack.c.b16 %v45, %v42
  %v49 = vpack.c.b16 %v46, %v43
  %v50 = vpack.c.b16 %v47, %v44
  %vm54 = vcmask 130048
  %v56 = vsel %vm54, %v37, 0
  %58 = vmatprep.subr.bf16.mxu0 0
  %59 = vmatpush1.bf16.msra.mxu0 0
  %60 = vmatprep.subr.bf16.mxu0 0
  %61 = vmatpush1.bf16.msra.mxu0 0
  %62 = vmatprep.subr.bf16.mxu0 0
  %63 = vmatpush1.bf16.msra.mxu0 0
  %64 = vmatprep.subr.bf16.mxu0 0
  %65 = vmatpush1.bf16.msra.mxu0 0
  %66 = vmatprep.subr.bf16.mxu0 0
  %67 = vmatpush1.bf16.msra.mxu0 0
  %68 = vmatprep.subr.bf16.mxu0 0
  %69 = vmatpush1.bf16.msra.mxu0 0
  %70 = vmatprep.subr.bf16.mxu0 0
  %71 = vmatpush1.bf16.msra.mxu0 0
  %72 = vmatprep.subr.bf16.mxu0 %v49
  %73 = vmatpush1.bf16.msra.mxu0 %v48
  %74 = vmatprep.subr.bf16.mxu0 0
  %75 = vmatpush2.bf16.msra.mxu0 0
  %76 = vmatprep.subr.bf16.mxu0 0
  %77 = vmatpush2.bf16.msra.mxu0 0
  %78 = vmatprep.subr.bf16.mxu0 0
  %79 = vmatpush2.bf16.msra.mxu0 0
  %80 = vmatprep.subr.bf16.mxu0 0
  %81 = vmatpush2.bf16.msra.mxu0 0
  %82 = vmatprep.subr.bf16.mxu0 0
  %83 = vmatpush2.bf16.msra.mxu0 0
  %84 = vmatprep.subr.bf16.mxu0 0
  %85 = vmatpush2.bf16.msra.mxu0 0
  %86 = vmatprep.subr.bf16.mxu0 0
  %87 = vmatpush2.bf16.msra.mxu0 0
  %88 = vmatprep.subr.bf16.mxu0 0
  %89 = vmatpush2.bf16.msra.mxu0 0
  %90 = vmatprep.mubr.bf16.mxu0 0
  %91 = vmatmul.mubr.bf16.gmra.mxu0 %v56
  %v92 = vpop.f32.mrf.mxu0
  %v93 = vadd.f32 %v26, %v92
  %v94 = vpop.f32.mrf.mxu0
  %v95 = vadd.f32 %v26, %v94
  %v96 = vpop.f32.mrf.mxu0
  %v97 = vadd.f32 %v31, %v96
  %v98 = vpop.f32.mrf.mxu0
  %v99 = vadd.f32 %v31, %v98
  %100 = vdwg.mxu0
  %101 = vmatprep.subr.bf16.mxu0 0
  %102 = vmatpush1.bf16.msra.mxu0 0
  %103 = vmatprep.subr.bf16.mxu0 0
  %104 = vmatpush1.bf16.msra.mxu0 0
  %105 = vmatprep.subr.bf16.mxu0 0
  %106 = vmatpush1.bf16.msra.mxu0 0
  %107 = vmatprep.subr.bf16.mxu0 0
  %108 = vmatpush1.bf16.msra.mxu0 0
  %109 = vmatprep.subr.bf16.mxu0 0
  %110 = vmatpush1.bf16.msra.mxu0 0
  %111 = vmatprep.subr.bf16.mxu0 0
  %112 = vmatpush1.bf16.msra.mxu0 0
  %113 = vmatprep.subr.bf16.mxu0 0
  %114 = vmatpush1.bf16.msra.mxu0 0
  %115 = vmatprep.subr.bf16.mxu0 0
  %116 = vmatpush1.bf16.msra.mxu0 %v50
  %117 = vmatprep.subr.bf16.mxu0 0
  %118 = vmatpush2.bf16.msra.mxu0 0
  %119 = vmatprep.subr.bf16.mxu0 0
  %120 = vmatpush2.bf16.msra.mxu0 0
  %121 = vmatprep.subr.bf16.mxu0 0
  %122 = vmatpush2.bf16.msra.mxu0 0
  %123 = vmatprep.subr.bf16.mxu0 0
  %124 = vmatpush2.bf16.msra.mxu0 0
  %125 = vmatprep.subr.bf16.mxu0 0
  %126 = vmatpush2.bf16.msra.mxu0 0
  %127 = vmatprep.subr.bf16.mxu0 0
  %128 = vmatpush2.bf16.msra.mxu0 0
  %129 = vmatprep.subr.bf16.mxu0 0
  %130 = vmatpush2.bf16.msra.mxu0 0
  %131 = vmatprep.subr.bf16.mxu0 0
  %132 = vmatpush2.bf16.msra.mxu0 0
  %133 = vmatprep.mubr.bf16.mxu0 0
  %134 = vmatmul.mubr.bf16.gmra.mxu0 %v56
  %v135 = vpop.f32.mrf.mxu0
  %v136 = vadd.f32 %v26, %v135
  %v137 = vpop.f32.mrf.mxu0
  %v138 = vpop.f32.mrf.mxu0
  %v139 = vadd.f32 %v31, %v138
  %v140 = vpop.f32.mrf.mxu0
  %141 = vdwg.mxu0
  %v142 = vmax.f32 %v93, 0.0
  %v143 = vmax.f32 %v95, 0.0
  %v144 = vmax.f32 %v136, 0.0
  %v145 = vmax.f32 %v97, 0.0
  %v146 = vmax.f32 %v99, 0.0
  %v147 = vmax.f32 %v139, 0.0
  %148 = vst [vmem:[%s3] sm:$0xff] %v142
  %149 = vst [vmem:[%s3 + $0x8] sm:$0xff] %v143
  %vm150 = vcmask 261120
  %151 = vst.msk [vmem:[%s3 + $0x10] sm:$0xff] %vm150, %v144
  %152 = vst [vmem:[%s3 + $0x18] sm:$0xff] %v145
  %153 = vst [vmem:[%s3 + $0x20] sm:$0xff] %v146
  %154 = vst.msk [vmem:[%s3 + $0x28] sm:$0xff] %vm150, %v147
  // Predicated region
  $region14: #{ffc_bn_act_forward.5} parent=0 // pred_check
    _
  $region15: #{ffc_bn_act_forward.5} parent=0 // pred_check_branch
    %156 = sbr.rel (0) target = $region17
  $region16: #{ffc_bn_act_forward.5} parent=0 // pred_region
    _
  $region17: #{ffc_bn_act_forward.5} parent=0 // pred_fallthru
    _
  // Predicated region
  $region18: #{ffc_bn_act_forward.5} parent=0 // pred_check
    _
  $region19: #{ffc_bn_act_forward.5} parent=0 // pred_check_branch
    %158 = sbr.rel (0) target = $region21
  $region20: #{ffc_bn_act_forward.5} parent=0 // pred_region
    _
  $region21: #{ffc_bn_act_forward.5} parent=0 // pred_fallthru
    _

// kernel: reverse.0
$region0: #{reverse.0}
  %s0 = inlined_call_operand.vmem [shape: f32[8,2,16,7], index: 0, kind: input, shape index: {}]
  %s1 = inlined_call_operand.vmem [shape: f32[8,2,16,7], index: 1, kind: output, shape index: {}]
  $region1: #{reverse.0} parent=0
    #allocation0 [shape = 'u8[131072]{0}', space=vmem, size = 0x20000, scoped, tag = 'operand span for operand 0']
    #allocation1 [shape = 'u8[65536]{0}', space=vmem, size = 0x10000, scoped, tag = 'operand span for operand 1']
    %s2 = scalar_lea.vmem [#allocation0], 8
    // Predicated region
    $region2: #{reverse.0} parent=1 // pred_check
      _
    $region3: #{reverse.0} parent=1 // pred_check_branch
      %4 = sbr.rel (0) target = $region5
    $region4: #{reverse.0} parent=1 // pred_region
      // Predicated region
      $region6: #{reverse.0} parent=4 // pred_check
        _
      $region7: #{reverse.0} parent=4 // pred_check_branch
        %6 = sbr.rel (0) target = $region9
      $region8: #{reverse.0} parent=4 // pred_region
        // Predicated region
        $region21: #{reverse.0} parent=8 // pred_check
          _
        $region22: #{reverse.0} parent=8 // pred_check_branch
          %52 = sbr.rel (0) target = $region24
        $region23: #{reverse.0} parent=8 // pred_region
          loop: start=0, step=1, limit=1
          $region25: #{reverse.0} parent=23 // loop_pre_header
            _
          $region26: #{reverse.0} parent=23 // loop_header
            %s54 = sphi 0, %s58
            %p55 = scmp.ge.s32.totalorder %s54, 1
            %s59 = sphi %s0, %s0
            %s60 = sphi %s2, %s2
          $region27: #{reverse.0} parent=23 // loop_header_branch
            %57 = sbr.rel (%p55) target = $region31
          $region28: #{reverse.0} parent=23 // loop_body
            %v61 = vld [vmem:[%s59] sm:$0xff]
            %62 = vst [vmem:[%s60] sm:$0xff] %v61
            %v63 = vld [vmem:[%s59 + $0x8] sm:$0xff]
            %64 = vst [vmem:[%s60 + $0x10] sm:$0xff] %v63
            %v65 = vld [vmem:[%s59 + $0x10] sm:$0xff]
            %66 = vst [vmem:[%s60 + $0x20] sm:$0xff] %v65
            %v67 = vld [vmem:[%s59 + $0x18] sm:$0xff]
            %68 = vst [vmem:[%s60 + $0x30] sm:$0xff] %v67
            %v69 = vld [vmem:[%s59 + $0x20] sm:$0xff]
            %70 = vst [vmem:[%s60 + $0x40] sm:$0xff] %v69
            %v71 = vld [vmem:[%s59 + $0x28] sm:$0xff]
            %72 = vst [vmem:[%s60 + $0x50] sm:$0xff] %v71
            %v73 = vld [vmem:[%s59 + $0x30] sm:$0xff]
            %74 = vst [vmem:[%s60 + $0x60] sm:$0xff] %v73
            %v75 = vld [vmem:[%s59 + $0x38] sm:$0xff]
            %76 = vst [vmem:[%s60 + $0x70] sm:$0xff] %v75
            %v77 = vld [vmem:[%s59 + $0x40] sm:$0xff]
            %78 = vst [vmem:[%s60 + $0x80] sm:$0xff] %v77
            %v79 = vld [vmem:[%s59 + $0x48] sm:$0xff]
            %80 = vst [vmem:[%s60 + $0x90] sm:$0xff] %v79
            %v81 = vld [vmem:[%s59 + $0x50] sm:$0xff]
            %82 = vst [vmem:[%s60 + $0xa0] sm:$0xff] %v81
            %v83 = vld [vmem:[%s59 + $0x58] sm:$0xff]
            %84 = vst [vmem:[%s60 + $0xb0] sm:$0xff] %v83
            %v85 = vld [vmem:[%s59 + $0x60] sm:$0xff]
            %86 = vst [vmem:[%s60 + $0xc0] sm:$0xff] %v85
            %v87 = vld [vmem:[%s59 + $0x68] sm:$0xff]
            %88 = vst [vmem:[%s60 + $0xd0] sm:$0xff] %v87
            %v89 = vld [vmem:[%s59 + $0x70] sm:$0xff]
            %90 = vst [vmem:[%s60 + $0xe0] sm:$0xff] %v89
            %v91 = vld [vmem:[%s59 + $0x78] sm:$0xff]
            %92 = vst [vmem:[%s60 + $0xf0] sm:$0xff] %v91
          $region29: #{reverse.0} parent=23 // loop_footer
            %s58 = sadd.s32 1, %s54
          $region30: #{reverse.0} parent=23 // loop_footer_branch
            %53 = sbr.rel target = $region26
          $region31: #{reverse.0} parent=23 // loop_exit
            _
        $region24: #{reverse.0} parent=8 // pred_fallthru
          _
        // Predicated region
        $region32: #{reverse.0} parent=8 // pred_check
          _
        $region33: #{reverse.0} parent=8 // pred_check_branch
          %94 = sbr.rel target = $region35
        $region34: #{reverse.0} parent=8 // pred_region
          _
        $region35: #{reverse.0} parent=8 // pred_fallthru
          _
      $region9: #{reverse.0} parent=4 // pred_fallthru
        _
      // Predicated region
      $region10: #{reverse.0} parent=4 // pred_check
        _
      $region11: #{reverse.0} parent=4 // pred_check_branch
        %8 = sbr.rel target = $region13
      $region12: #{reverse.0} parent=4 // pred_region
        %s10 = ssub.s32 256, 1
        loop: start=0, step=1, limit=1
        $region14: #{reverse.0} parent=12 // loop_pre_header
          _
        $region15: #{reverse.0} parent=12 // loop_header
          %s12 = sphi 0, %s16
          %p13 = scmp.ge.s32.totalorder %s12, 1
          %s17 = sphi %s0, %s0
          %s18 = sphi %s2, %s2
        $region16: #{reverse.0} parent=12 // loop_header_branch
          %15 = sbr.rel (%p13) target = $region20
        $region17: #{reverse.0} parent=12 // loop_body
          %v19 = vld [vmem:[%s17] sm:%s10]
          %20 = vst [vmem:[%s18] sm:%s10] %v19
          %v21 = vld [vmem:[%s17 + $0x8] sm:%s10]
          %22 = vst [vmem:[%s18 + $0x10] sm:%s10] %v21
          %v23 = vld [vmem:[%s17 + $0x10] sm:%s10]
          %24 = vst [vmem:[%s18 + $0x20] sm:%s10] %v23
          %v25 = vld [vmem:[%s17 + $0x18] sm:%s10]
          %26 = vst [vmem:[%s18 + $0x30] sm:%s10] %v25
          %v27 = vld [vmem:[%s17 + $0x20] sm:%s10]
          %28 = vst [vmem:[%s18 + $0x40] sm:%s10] %v27
          %v29 = vld [vmem:[%s17 + $0x28] sm:%s10]
          %30 = vst [vmem:[%s18 + $0x50] sm:%s10] %v29
          %v31 = vld [vmem:[%s17 + $0x30] sm:%s10]
          %32 = vst [vmem:[%s18 + $0x60] sm:%s10] %v31
          %v33 = vld [vmem:[%s17 + $0x38] sm:%s10]
          %34 = vst [vmem:[%s18 + $0x70] sm:%s10] %v33
          %v35 = vld [vmem:[%s17 + $0x40] sm:%s10]
          %36 = vst [vmem:[%s18 + $0x80] sm:%s10] %v35
          %v37 = vld [vmem:[%s17 + $0x48] sm:%s10]
          %38 = vst [vmem:[%s18 + $0x90] sm:%s10] %v37
          %v39 = vld [vmem:[%s17 + $0x50] sm:%s10]
          %40 = vst [vmem:[%s18 + $0xa0] sm:%s10] %v39
          %v41 = vld [vmem:[%s17 + $0x58] sm:%s10]
          %42 = vst [vmem:[%s18 + $0xb0] sm:%s10] %v41
          %v43 = vld [vmem:[%s17 + $0x60] sm:%s10]
          %44 = vst [vmem:[%s18 + $0xc0] sm:%s10] %v43
          %v45 = vld [vmem:[%s17 + $0x68] sm:%s10]
          %46 = vst [vmem:[%s18 + $0xd0] sm:%s10] %v45
          %v47 = vld [vmem:[%s17 + $0x70] sm:%s10]
          %48 = vst [vmem:[%s18 + $0xe0] sm:%s10] %v47
          %v49 = vld [vmem:[%s17 + $0x78] sm:%s10]
          %50 = vst [vmem:[%s18 + $0xf0] sm:%s10] %v49
        $region18: #{reverse.0} parent=12 // loop_footer
          %s16 = sadd.s32 1, %s12
        $region19: #{reverse.0} parent=12 // loop_footer_branch
          %11 = sbr.rel target = $region15
        $region20: #{reverse.0} parent=12 // loop_exit
          _
      $region13: #{reverse.0} parent=4 // pred_fallthru
        _
    $region5: #{reverse.0} parent=1 // pred_fallthru
      _
    %95 = vnop
    %s96 = scalar_lea.vmem [#allocation0], 7
    %v97 = vld [vmem:[%s96] ss:$-1 sm:$0xff]
    %v98 = vrot.slane %v97, 1
    %99 = vst [vmem:[#allocation1] sm:$0xff] %v98
    %s100 = scalar_lea.vmem [#allocation0], 8
    %s101 = scalar_lea.vmem %s100, 7 [#allocation0]
    %v102 = vld [vmem:[%s101] ss:$-1 sm:$0xff]
    %v103 = vrot.slane %v102, 1
    %v104 = vlaneseq
    %v105 = vshrl.u32 %v104, 7
    %vm106 = vcmp.lt.s32.totalorder %v105, 7
    %107 = vst.msk [vmem:[#allocation1] sm:$0xff] %vm106, %v103
    %s108 = scalar_lea.vmem [#allocation1], 8
    %s109 = scalar_lea.vmem [#allocation0], 16
    %s110 = scalar_lea.vmem %s109, 7 [#allocation0]
    %v111 = vld [vmem:[%s110] ss:$-1 sm:$0xff]
    %v112 = vrot.slane %v111, 1
    %113 = vst [vmem:[%s108] sm:$0xff] %v112
    %s114 = scalar_lea.vmem %s109, 8 [#allocation0]
    %s115 = scalar_lea.vmem %s114, 7 [#allocation0]
    %v116 = vld [vmem:[%s115] ss:$-1 sm:$0xff]
    %v117 = vrot.slane %v116, 1
    %v118 = vlaneseq
    %v119 = vshrl.u32 %v118, 7
    %vm120 = vcmp.lt.s32.totalorder %v119, 7
    %121 = vst.msk [vmem:[%s108] sm:$0xff] %vm120, %v117
    %s122 = scalar_lea.vmem [#allocation1], 16
    %s123 = scalar_lea.vmem [#allocation0], 32
    %s124 = scalar_lea.vmem %s123, 7 [#allocation0]
    %v125 = vld [vmem:[%s124] ss:$-1 sm:$0xff]
    %v126 = vrot.slane %v125, 1
    %127 = vst [vmem:[%s122] sm:$0xff] %v126
    %s128 = scalar_lea.vmem %s123, 8 [#allocation0]
    %s129 = scalar_lea.vmem %s128, 7 [#allocation0]
    %v130 = vld [vmem:[%s129] ss:$-1 sm:$0xff]
    %v131 = vrot.slane %v130, 1
    %v132 = vlaneseq
    %v133 = vshrl.u32 %v132, 7
    %vm134 = vcmp.lt.s32.totalorder %v133, 7
    %135 = vst.msk [vmem:[%s122] sm:$0xff] %vm134, %v131
    %s136 = scalar_lea.vmem [#allocation1], 24
    %s137 = scalar_lea.vmem [#allocation0], 48
    %s138 = scalar_lea.vmem %s137, 7 [#allocation0]
    %v139 = vld [vmem:[%s138] ss:$-1 sm:$0xff]
    %v140 = vrot.slane %v139, 1
    %141 = vst [vmem:[%s136] sm:$0xff] %v140
    %s142 = scalar_lea.vmem %s137, 8 [#allocation0]
    %s143 = scalar_lea.vmem %s142, 7 [#allocation0]
    %v144 = vld [vmem:[%s143] ss:$-1 sm:$0xff]
    %v145 = vrot.slane %v144, 1
    %v146 = vlaneseq
    %v147 = vshrl.u32 %v146, 7
    %vm148 = vcmp.lt.s32.totalorder %v147, 7
    %149 = vst.msk [vmem:[%s136] sm:$0xff] %vm148, %v145
    %s150 = scalar_lea.vmem [#allocation1], 32
    %s151 = scalar_lea.vmem [#allocation0], 64
    %s152 = scalar_lea.vmem %s151, 7 [#allocation0]
    %v153 = vld [vmem:[%s152] ss:$-1 sm:$0xff]
    %v154 = vrot.slane %v153, 1
    %155 = vst [vmem:[%s150] sm:$0xff] %v154
    %s156 = scalar_lea.vmem %s151, 8 [#allocation0]
    %s157 = scalar_lea.vmem %s156, 7 [#allocation0]
    %v158 = vld [vmem:[%s157] ss:$-1 sm:$0xff]
    %v159 = vrot.slane %v158, 1
    %v160 = vlaneseq
    %v161 = vshrl.u32 %v160, 7
    %vm162 = vcmp.lt.s32.totalorder %v161, 7
    %163 = vst.msk [vmem:[%s150] sm:$0xff] %vm162, %v159
    %s164 = scalar_lea.vmem [#allocation1], 40
    %s165 = scalar_lea.vmem [#allocation0], 80
    %s166 = scalar_lea.vmem %s165, 7 [#allocation0]
    %v167 = vld [vmem:[%s166] ss:$-1 sm:$0xff]
    %v168 = vrot.slane %v167, 1
    %169 = vst [vmem:[%s164] sm:$0xff] %v168
    %s170 = scalar_lea.vmem %s165, 8 [#allocation0]
    %s171 = scalar_lea.vmem %s170, 7 [#allocation0]
    %v172 = vld [vmem:[%s171] ss:$-1 sm:$0xff]
    %v173 = vrot.slane %v172, 1
    %v174 = vlaneseq
    %v175 = vshrl.u32 %v174, 7
    %vm176 = vcmp.lt.s32.totalorder %v175, 7
    %177 = vst.msk [vmem:[%s164] sm:$0xff] %vm176, %v173
    %s178 = scalar_lea.vmem [#allocation1], 48
    %s179 = scalar_lea.vmem [#allocation0], 96
    %s180 = scalar_lea.vmem %s179, 7 [#allocation0]
    %v181 = vld [vmem:[%s180] ss:$-1 sm:$0xff]
    %v182 = vrot.slane %v181, 1
    %183 = vst [vmem:[%s178] sm:$0xff] %v182
    %s184 = scalar_lea.vmem %s179, 8 [#allocation0]
    %s185 = scalar_lea.vmem %s184, 7 [#allocation0]
    %v186 = vld [vmem:[%s185] ss:$-1 sm:$0xff]
    %v187 = vrot.slane %v186, 1
    %v188 = vlaneseq
    %v189 = vshrl.u32 %v188, 7
    %vm190 = vcmp.lt.s32.totalorder %v189, 7
    %191 = vst.msk [vmem:[%s178] sm:$0xff] %vm190, %v187
    %s192 = scalar_lea.vmem [#allocation1], 56
    %s193 = scalar_lea.vmem [#allocation0], 112
    %s194 = scalar_lea.vmem %s193, 7 [#allocation0]
    %v195 = vld [vmem:[%s194] ss:$-1 sm:$0xff]
    %v196 = vrot.slane %v195, 1
    %197 = vst [vmem:[%s192] sm:$0xff] %v196
    %s198 = scalar_lea.vmem %s193, 8 [#allocation0]
    %s199 = scalar_lea.vmem %s198, 7 [#allocation0]
    %v200 = vld [vmem:[%s199] ss:$-1 sm:$0xff]
    %v201 = vrot.slane %v200, 1
    %v202 = vlaneseq
    %v203 = vshrl.u32 %v202, 7
    %vm204 = vcmp.lt.s32.totalorder %v203, 7
    %205 = vst.msk [vmem:[%s192] sm:$0xff] %vm204, %v201
    %s206 = scalar_lea.vmem [#allocation1], 64
    %s207 = scalar_lea.vmem [#allocation0], 128
    %s208 = scalar_lea.vmem %s207, 7 [#allocation0]
    %v209 = vld [vmem:[%s208] ss:$-1 sm:$0xff]
    %v210 = vrot.slane %v209, 1
    %211 = vst [vmem:[%s206] sm:$0xff] %v210
    %s212 = scalar_lea.vmem %s207, 8 [#allocation0]
    %s213 = scalar_lea.vmem %s212, 7 [#allocation0]
    %v214 = vld [vmem:[%s213] ss:$-1 sm:$0xff]
    %v215 = vrot.slane %v214, 1
    %v216 = vlaneseq
    %v217 = vshrl.u32 %v216, 7
    %vm218 = vcmp.lt.s32.totalorder %v217, 7
    %219 = vst.msk [vmem:[%s206] sm:$0xff] %vm218, %v215
    %s220 = scalar_lea.vmem [#allocation1], 72
    %s221 = scalar_lea.vmem [#allocation0], 144
    %s222 = scalar_lea.vmem %s221, 7 [#allocation0]
    %v223 = vld [vmem:[%s222] ss:$-1 sm:$0xff]
    %v224 = vrot.slane %v223, 1
    %225 = vst [vmem:[%s220] sm:$0xff] %v224
    %s226 = scalar_lea.vmem %s221, 8 [#allocation0]
    %s227 = scalar_lea.vmem %s226, 7 [#allocation0]
    %v228 = vld [vmem:[%s227] ss:$-1 sm:$0xff]
    %v229 = vrot.slane %v228, 1
    %v230 = vlaneseq
    %v231 = vshrl.u32 %v230, 7
    %vm232 = vcmp.lt.s32.totalorder %v231, 7
    %233 = vst.msk [vmem:[%s220] sm:$0xff] %vm232, %v229
    %s234 = scalar_lea.vmem [#allocation1], 80
    %s235 = scalar_lea.vmem [#allocation0], 160
    %s236 = scalar_lea.vmem %s235, 7 [#allocation0]
    %v237 = vld [vmem:[%s236] ss:$-1 sm:$0xff]
    %v238 = vrot.slane %v237, 1
    %239 = vst [vmem:[%s234] sm:$0xff] %v238
    %s240 = scalar_lea.vmem %s235, 8 [#allocation0]
    %s241 = scalar_lea.vmem %s240, 7 [#allocation0]
    %v242 = vld [vmem:[%s241] ss:$-1 sm:$0xff]
    %v243 = vrot.slane %v242, 1
    %v244 = vlaneseq
    %v245 = vshrl.u32 %v244, 7
    %vm246 = vcmp.lt.s32.totalorder %v245, 7
    %247 = vst.msk [vmem:[%s234] sm:$0xff] %vm246, %v243
    %s248 = scalar_lea.vmem [#allocation1], 88
    %s249 = scalar_lea.vmem [#allocation0], 176
    %s250 = scalar_lea.vmem %s249, 7 [#allocation0]
    %v251 = vld [vmem:[%s250] ss:$-1 sm:$0xff]
    %v252 = vrot.slane %v251, 1
    %253 = vst [vmem:[%s248] sm:$0xff] %v252
    %s254 = scalar_lea.vmem %s249, 8 [#allocation0]
    %s255 = scalar_lea.vmem %s254, 7 [#allocation0]
    %v256 = vld [vmem:[%s255] ss:$-1 sm:$0xff]
    %v257 = vrot.slane %v256, 1
    %v258 = vlaneseq
    %v259 = vshrl.u32 %v258, 7
    %vm260 = vcmp.lt.s32.totalorder %v259, 7
    %261 = vst.msk [vmem:[%s248] sm:$0xff] %vm260, %v257
    %s262 = scalar_lea.vmem [#allocation1], 96
    %s263 = scalar_lea.vmem [#allocation0], 192
    %s264 = scalar_lea.vmem %s263, 7 [#allocation0]
    %v265 = vld [vmem:[%s264] ss:$-1 sm:$0xff]
    %v266 = vrot.slane %v265, 1
    %267 = vst [vmem:[%s262] sm:$0xff] %v266
    %s268 = scalar_lea.vmem %s263, 8 [#allocation0]
    %s269 = scalar_lea.vmem %s268, 7 [#allocation0]
    %v270 = vld [vmem:[%s269] ss:$-1 sm:$0xff]
    %v271 = vrot.slane %v270, 1
    %v272 = vlaneseq
    %v273 = vshrl.u32 %v272, 7
    %vm274 = vcmp.lt.s32.totalorder %v273, 7
    %275 = vst.msk [vmem:[%s262] sm:$0xff] %vm274, %v271
    %s276 = scalar_lea.vmem [#allocation1], 104
    %s277 = scalar_lea.vmem [#allocation0], 208
    %s278 = scalar_lea.vmem %s277, 7 [#allocation0]
    %v279 = vld [vmem:[%s278] ss:$-1 sm:$0xff]
    %v280 = vrot.slane %v279, 1
    %281 = vst [vmem:[%s276] sm:$0xff] %v280
    %s282 = scalar_lea.vmem %s277, 8 [#allocation0]
    %s283 = scalar_lea.vmem %s282, 7 [#allocation0]
    %v284 = vld [vmem:[%s283] ss:$-1 sm:$0xff]
    %v285 = vrot.slane %v284, 1
    %v286 = vlaneseq
    %v287 = vshrl.u32 %v286, 7
    %vm288 = vcmp.lt.s32.totalorder %v287, 7
    %289 = vst.msk [vmem:[%s276] sm:$0xff] %vm288, %v285
    %s290 = scalar_lea.vmem [#allocation1], 112
    %s291 = scalar_lea.vmem [#allocation0], 224
    %s292 = scalar_lea.vmem %s291, 7 [#allocation0]
    %v293 = vld [vmem:[%s292] ss:$-1 sm:$0xff]
    %v294 = vrot.slane %v293, 1
    %295 = vst [vmem:[%s290] sm:$0xff] %v294
    %s296 = scalar_lea.vmem %s291, 8 [#allocation0]
    %s297 = scalar_lea.vmem %s296, 7 [#allocation0]
    %v298 = vld [vmem:[%s297] ss:$-1 sm:$0xff]
    %v299 = vrot.slane %v298, 1
    %v300 = vlaneseq
    %v301 = vshrl.u32 %v300, 7
    %vm302 = vcmp.lt.s32.totalorder %v301, 7
    %303 = vst.msk [vmem:[%s290] sm:$0xff] %vm302, %v299
    %s304 = scalar_lea.vmem [#allocation1], 120
    %s305 = scalar_lea.vmem [#allocation0], 240
    %s306 = scalar_lea.vmem %s305, 7 [#allocation0]
    %v307 = vld [vmem:[%s306] ss:$-1 sm:$0xff]
    %v308 = vrot.slane %v307, 1
    %309 = vst [vmem:[%s304] sm:$0xff] %v308
    %s310 = scalar_lea.vmem %s305, 8 [#allocation0]
    %s311 = scalar_lea.vmem %s310, 7 [#allocation0]
    %v312 = vld [vmem:[%s311] ss:$-1 sm:$0xff]
    %v313 = vrot.slane %v312, 1
    %v314 = vlaneseq
    %v315 = vshrl.u32 %v314, 7
    %vm316 = vcmp.lt.s32.totalorder %v315, 7
    %317 = vst.msk [vmem:[%s304] sm:$0xff] %vm316, %v313
    // Predicated region
    $region36: #{reverse.0} parent=1 // pred_check
      _
    $region37: #{reverse.0} parent=1 // pred_check_branch
      %319 = sbr.rel (0) target = $region39
    $region38: #{reverse.0} parent=1 // pred_region
      // Predicated region
      $region40: #{reverse.0} parent=38 // pred_check
        _
      $region41: #{reverse.0} parent=38 // pred_check_branch
        %321 = sbr.rel (0) target = $region43
      $region42: #{reverse.0} parent=38 // pred_region
        // Predicated region
        $region55: #{reverse.0} parent=42 // pred_check
          _
        $region56: #{reverse.0} parent=42 // pred_check_branch
          %367 = sbr.rel (0) target = $region58
        $region57: #{reverse.0} parent=42 // pred_region
          loop: start=0, step=1, limit=1
          $region59: #{reverse.0} parent=57 // loop_pre_header
            _
          $region60: #{reverse.0} parent=57 // loop_header
            %s369 = sphi 0, %s373
            %p370 = scmp.ge.s32.totalorder %s369, 1
            %s374 = sphi [#allocation1], [#allocation1]
            %s375 = sphi %s1, %s1
          $region61: #{reverse.0} parent=57 // loop_header_branch
            %372 = sbr.rel (%p370) target = $region65
          $region62: #{reverse.0} parent=57 // loop_body
            %v376 = vld [vmem:[%s374] sm:$0xff]
            %377 = vst [vmem:[%s375] sm:$0xff] %v376
            %v378 = vld [vmem:[%s374 + $0x8] sm:$0xff]
            %379 = vst [vmem:[%s375 + $0x8] sm:$0xff] %v378
            %v380 = vld [vmem:[%s374 + $0x10] sm:$0xff]
            %381 = vst [vmem:[%s375 + $0x10] sm:$0xff] %v380
            %v382 = vld [vmem:[%s374 + $0x18] sm:$0xff]
            %383 = vst [vmem:[%s375 + $0x18] sm:$0xff] %v382
            %v384 = vld [vmem:[%s374 + $0x20] sm:$0xff]
            %385 = vst [vmem:[%s375 + $0x20] sm:$0xff] %v384
            %v386 = vld [vmem:[%s374 + $0x28] sm:$0xff]
            %387 = vst [vmem:[%s375 + $0x28] sm:$0xff] %v386
            %v388 = vld [vmem:[%s374 + $0x30] sm:$0xff]
            %389 = vst [vmem:[%s375 + $0x30] sm:$0xff] %v388
            %v390 = vld [vmem:[%s374 + $0x38] sm:$0xff]
            %391 = vst [vmem:[%s375 + $0x38] sm:$0xff] %v390
            %v392 = vld [vmem:[%s374 + $0x40] sm:$0xff]
            %393 = vst [vmem:[%s375 + $0x40] sm:$0xff] %v392
            %v394 = vld [vmem:[%s374 + $0x48] sm:$0xff]
            %395 = vst [vmem:[%s375 + $0x48] sm:$0xff] %v394
            %v396 = vld [vmem:[%s374 + $0x50] sm:$0xff]
            %397 = vst [vmem:[%s375 + $0x50] sm:$0xff] %v396
            %v398 = vld [vmem:[%s374 + $0x58] sm:$0xff]
            %399 = vst [vmem:[%s375 + $0x58] sm:$0xff] %v398
            %v400 = vld [vmem:[%s374 + $0x60] sm:$0xff]
            %401 = vst [vmem:[%s375 + $0x60] sm:$0xff] %v400
            %v402 = vld [vmem:[%s374 + $0x68] sm:$0xff]
            %403 = vst [vmem:[%s375 + $0x68] sm:$0xff] %v402
            %v404 = vld [vmem:[%s374 + $0x70] sm:$0xff]
            %405 = vst [vmem:[%s375 + $0x70] sm:$0xff] %v404
            %v406 = vld [vmem:[%s374 + $0x78] sm:$0xff]
            %407 = vst [vmem:[%s375 + $0x78] sm:$0xff] %v406
          $region63: #{reverse.0} parent=57 // loop_footer
            %s373 = sadd.s32 1, %s369
          $region64: #{reverse.0} parent=57 // loop_footer_branch
            %368 = sbr.rel target = $region60
          $region65: #{reverse.0} parent=57 // loop_exit
            _
        $region58: #{reverse.0} parent=42 // pred_fallthru
          _
        // Predicated region
        $region66: #{reverse.0} parent=42 // pred_check
          _
        $region67: #{reverse.0} parent=42 // pred_check_branch
          %409 = sbr.rel target = $region69
        $region68: #{reverse.0} parent=42 // pred_region
          _
        $region69: #{reverse.0} parent=42 // pred_fallthru
          _
      $region43: #{reverse.0} parent=38 // pred_fallthru
        _
      // Predicated region
      $region44: #{reverse.0} parent=38 // pred_check
        _
      $region45: #{reverse.0} parent=38 // pred_check_branch
        %323 = sbr.rel target = $region47
      $region46: #{reverse.0} parent=38 // pred_region
        %s325 = ssub.s32 256, 1
        loop: start=0, step=1, limit=1
        $region48: #{reverse.0} parent=46 // loop_pre_header
          _
        $region49: #{reverse.0} parent=46 // loop_header
          %s327 = sphi 0, %s331
          %p328 = scmp.ge.s32.totalorder %s327, 1
          %s332 = sphi [#allocation1], [#allocation1]
          %s333 = sphi %s1, %s1
        $region50: #{reverse.0} parent=46 // loop_header_branch
          %330 = sbr.rel (%p328) target = $region54
        $region51: #{reverse.0} parent=46 // loop_body
          %v334 = vld [vmem:[%s332] sm:%s325]
          %335 = vst [vmem:[%s333] sm:%s325] %v334
          %v336 = vld [vmem:[%s332 + $0x8] sm:%s325]
          %337 = vst [vmem:[%s333 + $0x8] sm:%s325] %v336
          %v338 = vld [vmem:[%s332 + $0x10] sm:%s325]
          %339 = vst [vmem:[%s333 + $0x10] sm:%s325] %v338
          %v340 = vld [vmem:[%s332 + $0x18] sm:%s325]
          %341 = vst [vmem:[%s333 + $0x18] sm:%s325] %v340
          %v342 = vld [vmem:[%s332 + $0x20] sm:%s325]
          %343 = vst [vmem:[%s333 + $0x20] sm:%s325] %v342
          %v344 = vld [vmem:[%s332 + $0x28] sm:%s325]
          %345 = vst [vmem:[%s333 + $0x28] sm:%s325] %v344
          %v346 = vld [vmem:[%s332 + $0x30] sm:%s325]
          %347 = vst [vmem:[%s333 + $0x30] sm:%s325] %v346
          %v348 = vld [vmem:[%s332 + $0x38] sm:%s325]
          %349 = vst [vmem:[%s333 + $0x38] sm:%s325] %v348
          %v350 = vld [vmem:[%s332 + $0x40] sm:%s325]
          %351 = vst [vmem:[%s333 + $0x40] sm:%s325] %v350
          %v352 = vld [vmem:[%s332 + $0x48] sm:%s325]
          %353 = vst [vmem:[%s333 + $0x48] sm:%s325] %v352
          %v354 = vld [vmem:[%s332 + $0x50] sm:%s325]
          %355 = vst [vmem:[%s333 + $0x50] sm:%s325] %v354
          %v356 = vld [vmem:[%s332 + $0x58] sm:%s325]
          %357 = vst [vmem:[%s333 + $0x58] sm:%s325] %v356
          %v358 = vld [vmem:[%s332 + $0x60] sm:%s325]
          %359 = vst [vmem:[%s333 + $0x60] sm:%s325] %v358
          %v360 = vld [vmem:[%s332 + $0x68] sm:%s325]
          %361 = vst [vmem:[%s333 + $0x68] sm:%s325] %v360
          %v362 = vld [vmem:[%s332 + $0x70] sm:%s325]
          %363 = vst [vmem:[%s333 + $0x70] sm:%s325] %v362
          %v364 = vld [vmem:[%s332 + $0x78] sm:%s325]
          %365 = vst [vmem:[%s333 + $0x78] sm:%s325] %v364
        $region52: #{reverse.0} parent=46 // loop_footer
          %s331 = sadd.s32 1, %s327
        $region53: #{reverse.0} parent=46 // loop_footer_branch
          %326 = sbr.rel target = $region49
        $region54: #{reverse.0} parent=46 // loop_exit
          _
      $region47: #{reverse.0} parent=38 // pred_fallthru
        _
    $region39: #{reverse.0} parent=1 // pred_fallthru
      _
    %410 = vnop

// kernel: ffc_bn_act_forward.7
$region0: #{ffc_bn_act_forward.7}
  #allocation0 [shape = 'u32[]', space=smem, size = 0x4, offset = 0x4, fixed_abs, tag = 'smem constant byte address 0x4 - core index']
  #allocation1 [shape = 'u32[144,128]{1,0:T(1,128)}', space=vmem, size = 0x12000, scoped, tag = 'internal scratch']
  %s0 = inlined_call_operand.vmem [shape: bf16[2,8,256], index: 0, kind: input, shape index: {}]
  %s1 = inlined_call_operand.vmem [shape: bf16[2,8,256], index: 1, kind: input, shape index: {}]
  %s2 = inlined_call_operand.vmem [shape: bf16[2,8,256], index: 2, kind: input, shape index: {}]
  %s3 = inlined_call_operand.vmem [shape: f32[2,8,256], index: 3, kind: input, shape index: {}]
  %s4 = inlined_call_operand.vmem [shape: f32[2,8,256], index: 4, kind: input, shape index: {}]
  %s5 = inlined_call_operand.vmem [shape: bf16[16,8], index: 5, kind: input, shape index: {}]
  %s6 = inlined_call_operand.vmem [shape: bf16[16,8], index: 6, kind: input, shape index: {}]
  %s7 = inlined_call_operand.vmem [shape: bf16[16,8], index: 7, kind: input, shape index: {}]
  %s8 = inlined_call_operand.vmem [shape: bf16[16,8], index: 8, kind: input, shape index: {}]
  %s9 = inlined_call_operand.vmem [shape: f32[16,1], index: 9, kind: input, shape index: {}]
  %s10 = inlined_call_operand.vmem [shape: f32[16,1], index: 10, kind: input, shape index: {}]
  %s11 = inlined_call_operand.vmem [shape: f32[2,16,256], index: 11, kind: output, shape index: {0}]
  %s12 = inlined_call_operand.vmem [shape: f32[2,16,256], index: 12, kind: output, shape index: {1}]
  %13 = xla_tuple %s11, %s12
  %s14 = sld [smem:[#allocation0]]
  $region85: #{ffc_bn_act_forward.7} parent=0
    _
  %s16 = ssub.s32 1, %s14
  %s17 = scalar_select 0, %s16, %s14
  loop: start=0, step=1, limit=4
  $region2: #{ffc_bn_act_forward.7} parent=0 // loop_pre_header
    _
  $region3: #{ffc_bn_act_forward.7} parent=0 // loop_header
    %s19 = sphi 0, %s23
    %p20 = scmp.ge.s32.totalorder %s19, 4
    %s26 = sphi 0, %s38
    %s27 = sphi 0, %s34
    %s28 = sphi 0, %s26
    %s29 = sphi 0, %s27
    %s30 = sphi 0, %s28
    %s31 = sphi 0, %s29
    %s43 = sphi 0, %s45
    %s46 = sphi 0, %s43
    %s47 = sphi 0, %s46
    %s63 = sphi 0, %s47
    %s71 = sphi 0, %s73
    %s74 = sphi 0, %s71
    %s75 = sphi 0, %s74
    %s91 = sphi 0, %s75
    %s99 = sphi 0, %s101
    %s102 = sphi 0, %s99
    %s103 = sphi 0, %s102
    %s119 = sphi 0, %s103
    %s127 = sphi 0, %s129
    %s130 = sphi 0, %s127
    %s131 = sphi 0, %s130
    %s147 = sphi 0, %s131
    %s155 = sphi 0, %s157
    %s158 = sphi 0, %s155
    %s159 = sphi 0, %s158
    %s175 = sphi 0, %s159
    %s179 = sphi 0, %s179
    %s181 = sphi 0, %s179
    %s182 = sphi 0, %s181
    %s196 = sphi 0, %s182
    %s200 = sphi 0, %s200
    %s202 = sphi 0, %s200
    %s203 = sphi 0, %s202
    %s217 = sphi 0, %s203
    %s221 = sphi 0, %s221
    %s223 = sphi 0, %s221
    %s224 = sphi 0, %s223
    %s238 = sphi 0, %s224
    %s242 = sphi 0, %s242
    %s244 = sphi 0, %s242
    %s245 = sphi 0, %s244
    %s259 = sphi 0, %s245
    %s263 = sphi 0, %s263
    %s265 = sphi 0, %s263
    %s266 = sphi 0, %s265
    %s280 = sphi 0, %s266
    %s284 = sphi 0, %s284
    %s286 = sphi 0, %s284
    %s287 = sphi 0, %s286
    %s301 = sphi 0, %s287
    %s309 = sphi 0, %s311
    %s312 = sphi 0, %s309
    %s313 = sphi 0, %s312
    %s329 = sphi 0, %s313
    %s337 = sphi 0, %s339
    %s340 = sphi 0, %s337
    %s341 = sphi 0, %s340
    %s357 = sphi 0, %s341
  $region4: #{ffc_bn_act_forward.7} parent=0 // loop_header_branch
    %22 = sbr.rel (%p20) target = $region8
  $region5: #{ffc_bn_act_forward.7} parent=0 // loop_body
    %s24 = ssub.s32 %s19, 1
    %s25 = ssub.s32 %s19, 2
    %s32 = sadd.s32 1, %s27
    %p33 = scmp.ge.s32.totalorder %s32, 1
    %s34 = scalar_select %p33, 0, %s32
    %s35 = sadd.s32 1, %s26
    %s36 = scalar_select %p33, %s35, %s26
    %p37 = scmp.ge.s32.totalorder %s36, 2
    %s38 = scalar_select %p37, 0, %s36
    %s39 = ssub.s32 %s26, %s38
    %s40 = ssub.s32 %s27, %s34
    %s41 = sor.u32 %s39, %s40
    %p42 = scmp.eq.s32.totalorder %s41, 0
    %s44 = sadd.s32 %s43, 1
    %s45 = scalar_select %p42, %s43, %s44
    %p48 = pneg %p42
    %p49 = scmp.eq.s32.totalorder %s19, 1
    %p50 = por %p48, %p49
    %p51 = scmp.ne.s32.totalorder %s43, %s46
    %p52 = scmp.eq.s32.totalorder %s19, 0
    %p53 = por %p51, %p52
    %p54 = scmp.ne.s32.totalorder %s43, %s46
    %p55 = scmp.eq.s32.totalorder %s24, 1
    %p56 = por %p54, %p55
    %p57 = scmp.ne.s32.totalorder %s46, %s47
    %p58 = scmp.eq.s32.totalorder %s24, 0
    %p59 = por %p57, %p58
    %p60 = scmp.ne.s32.totalorder %s46, %s47
    %p61 = scmp.eq.s32.totalorder %s25, 1
    %p62 = por %p60, %p61
    %p64 = scmp.ne.s32.totalorder %s47, %s63
    %p65 = scmp.eq.s32.totalorder %s25, 0
    %p66 = por %p64, %p65
    %s67 = ssub.s32 %s26, %s38
    %s68 = ssub.s32 %s27, %s34
    %s69 = sor.u32 %s67, %s68
    %p70 = scmp.eq.s32.totalorder %s69, 0
    %s72 = sadd.s32 %s71, 1
    %s73 = scalar_select %p70, %s71, %s72
    %p76 = pneg %p70
    %p77 = scmp.eq.s32.totalorder %s19, 1
    %p78 = por %p76, %p77
    %p79 = scmp.ne.s32.totalorder %s71, %s74
    %p80 = scmp.eq.s32.totalorder %s19, 0
    %p81 = por %p79, %p80
    %p82 = scmp.ne.s32.totalorder %s71, %s74
    %p83 = scmp.eq.s32.totalorder %s24, 1
    %p84 = por %p82, %p83
    %p85 = scmp.ne.s32.totalorder %s74, %s75
    %p86 = scmp.eq.s32.totalorder %s24, 0
    %p87 = por %p85, %p86
    %p88 = scmp.ne.s32.totalorder %s74, %s75
    %p89 = scmp.eq.s32.totalorder %s25, 1
    %p90 = por %p88, %p89
    %p92 = scmp.ne.s32.totalorder %s75, %s91
    %p93 = scmp.eq.s32.totalorder %s25, 0
    %p94 = por %p92, %p93
    %s95 = ssub.s32 %s26, %s38
    %s96 = ssub.s32 %s27, %s34
    %s97 = sor.u32 %s95, %s96
    %p98 = scmp.eq.s32.totalorder %s97, 0
    %s100 = sadd.s32 %s99, 1
    %s101 = scalar_select %p98, %s99, %s100
    %p104 = pneg %p98
    %p105 = scmp.eq.s32.totalorder %s19, 1
    %p106 = por %p104, %p105
    %p107 = scmp.ne.s32.totalorder %s99, %s102
    %p108 = scmp.eq.s32.totalorder %s19, 0
    %p109 = por %p107, %p108
    %p110 = scmp.ne.s32.totalorder %s99, %s102
    %p111 = scmp.eq.s32.totalorder %s24, 1
    %p112 = por %p110, %p111
    %p113 = scmp.ne.s32.totalorder %s102, %s103
    %p114 = scmp.eq.s32.totalorder %s24, 0
    %p115 = por %p113, %p114
    %p116 = scmp.ne.s32.totalorder %s102, %s103
    %p117 = scmp.eq.s32.totalorder %s25, 1
    %p118 = por %p116, %p117
    %p120 = scmp.ne.s32.totalorder %s103, %s119
    %p121 = scmp.eq.s32.totalorder %s25, 0
    %p122 = por %p120, %p121
    %s123 = ssub.s32 %s26, %s38
    %s124 = ssub.s32 %s27, %s34
    %s125 = sor.u32 %s123, %s124
    %p126 = scmp.eq.s32.totalorder %s125, 0
    %s128 = sadd.s32 %s127, 1
    %s129 = scalar_select %p126, %s127, %s128
    %p132 = pneg %p126
    %p133 = scmp.eq.s32.totalorder %s19, 1
    %p134 = por %p132, %p133
    %p135 = scmp.ne.s32.totalorder %s127, %s130
    %p136 = scmp.eq.s32.totalorder %s19, 0
    %p137 = por %p135, %p136
    %p138 = scmp.ne.s32.totalorder %s127, %s130
    %p139 = scmp.eq.s32.totalorder %s24, 1
    %p140 = por %p138, %p139
    %p141 = scmp.ne.s32.totalorder %s130, %s131
    %p142 = scmp.eq.s32.totalorder %s24, 0
    %p143 = por %p141, %p142
    %p144 = scmp.ne.s32.totalorder %s130, %s131
    %p145 = scmp.eq.s32.totalorder %s25, 1
    %p146 = por %p144, %p145
    %p148 = scmp.ne.s32.totalorder %s131, %s147
    %p149 = scmp.eq.s32.totalorder %s25, 0
    %p150 = por %p148, %p149
    %s151 = ssub.s32 %s26, %s38
    %s152 = ssub.s32 %s27, %s34
    %s153 = sor.u32 %s151, %s152
    %p154 = scmp.eq.s32.totalorder %s153, 0
    %s156 = sadd.s32 %s155, 1
    %s157 = scalar_select %p154, %s155, %s156
    %p160 = pneg %p154
    %p161 = scmp.eq.s32.totalorder %s19, 1
    %p162 = por %p160, %p161
    %p163 = scmp.ne.s32.totalorder %s155, %s158
    %p164 = scmp.eq.s32.totalorder %s19, 0
    %p165 = por %p163, %p164
    %p166 = scmp.ne.s32.totalorder %s155, %s158
    %p167 = scmp.eq.s32.totalorder %s24, 1
    %p168 = por %p166, %p167
    %p169 = scmp.ne.s32.totalorder %s158, %s159
    %p170 = scmp.eq.s32.totalorder %s24, 0
    %p171 = por %p169, %p170
    %p172 = scmp.ne.s32.totalorder %s158, %s159
    %p173 = scmp.eq.s32.totalorder %s25, 1
    %p174 = por %p172, %p173
    %p176 = scmp.ne.s32.totalorder %s159, %s175
    %p177 = scmp.eq.s32.totalorder %s25, 0
    %p178 = por %p176, %p177
    %s180 = sadd.s32 %s179, 1
    %p183 = scmp.eq.s32.totalorder %s19, 1
    %p184 = scmp.ne.s32.totalorder %s179, %s181
    %p185 = scmp.eq.s32.totalorder %s19, 0
    %p186 = por %p184, %p185
    %p187 = scmp.ne.s32.totalorder %s179, %s181
    %p188 = scmp.eq.s32.totalorder %s24, 1
    %p189 = por %p187, %p188
    %p190 = scmp.ne.s32.totalorder %s181, %s182
    %p191 = scmp.eq.s32.totalorder %s24, 0
    %p192 = por %p190, %p191
    %p193 = scmp.ne.s32.totalorder %s181, %s182
    %p194 = scmp.eq.s32.totalorder %s25, 1
    %p195 = por %p193, %p194
    %p197 = scmp.ne.s32.totalorder %s182, %s196
    %p198 = scmp.eq.s32.totalorder %s25, 0
    %p199 = por %p197, %p198
    %s201 = sadd.s32 %s200, 1
    %p204 = scmp.eq.s32.totalorder %s19, 1
    %p205 = scmp.ne.s32.totalorder %s200, %s202
    %p206 = scmp.eq.s32.totalorder %s19, 0
    %p207 = por %p205, %p206
    %p208 = scmp.ne.s32.totalorder %s200, %s202
    %p209 = scmp.eq.s32.totalorder %s24, 1
    %p210 = por %p208, %p209
    %p211 = scmp.ne.s32.totalorder %s202, %s203
    %p212 = scmp.eq.s32.totalorder %s24, 0
    %p213 = por %p211, %p212
    %p214 = scmp.ne.s32.totalorder %s202, %s203
    %p215 = scmp.eq.s32.totalorder %s25, 1
    %p216 = por %p214, %p215
    %p218 = scmp.ne.s32.totalorder %s203, %s217
    %p219 = scmp.eq.s32.totalorder %s25, 0
    %p220 = por %p218, %p219
    %s222 = sadd.s32 %s221, 1
    %p225 = scmp.eq.s32.totalorder %s19, 1
    %p226 = scmp.ne.s32.totalorder %s221, %s223
    %p227 = scmp.eq.s32.totalorder %s19, 0
    %p228 = por %p226, %p227
    %p229 = scmp.ne.s32.totalorder %s221, %s223
    %p230 = scmp.eq.s32.totalorder %s24, 1
    %p231 = por %p229, %p230
    %p232 = scmp.ne.s32.totalorder %s223, %s224
    %p233 = scmp.eq.s32.totalorder %s24, 0
    %p234 = por %p232, %p233
    %p235 = scmp.ne.s32.totalorder %s223, %s224
    %p236 = scmp.eq.s32.totalorder %s25, 1
    %p237 = por %p235, %p236
    %p239 = scmp.ne.s32.totalorder %s224, %s238
    %p240 = scmp.eq.s32.totalorder %s25, 0
    %p241 = por %p239, %p240
    %s243 = sadd.s32 %s242, 1
    %p246 = scmp.eq.s32.totalorder %s19, 1
    %p247 = scmp.ne.s32.totalorder %s242, %s244
    %p248 = scmp.eq.s32.totalorder %s19, 0
    %p249 = por %p247, %p248
    %p250 = scmp.ne.s32.totalorder %s242, %s244
    %p251 = scmp.eq.s32.totalorder %s24, 1
    %p252 = por %p250, %p251
    %p253 = scmp.ne.s32.totalorder %s244, %s245
    %p254 = scmp.eq.s32.totalorder %s24, 0
    %p255 = por %p253, %p254
    %p256 = scmp.ne.s32.totalorder %s244, %s245
    %p257 = scmp.eq.s32.totalorder %s25, 1
    %p258 = por %p256, %p257
    %p260 = scmp.ne.s32.totalorder %s245, %s259
    %p261 = scmp.eq.s32.totalorder %s25, 0
    %p262 = por %p260, %p261
    %s264 = sadd.s32 %s263, 1
    %p267 = scmp.eq.s32.totalorder %s19, 1
    %p268 = scmp.ne.s32.totalorder %s263, %s265
    %p269 = scmp.eq.s32.totalorder %s19, 0
    %p270 = por %p268, %p269
    %p271 = scmp.ne.s32.totalorder %s263, %s265
    %p272 = scmp.eq.s32.totalorder %s24, 1
    %p273 = por %p271, %p272
    %p274 = scmp.ne.s32.totalorder %s265, %s266
    %p275 = scmp.eq.s32.totalorder %s24, 0
    %p276 = por %p274, %p275
    %p277 = scmp.ne.s32.totalorder %s265, %s266
    %p278 = scmp.eq.s32.totalorder %s25, 1
    %p279 = por %p277, %p278
    %p281 = scmp.ne.s32.totalorder %s266, %s280
    %p282 = scmp.eq.s32.totalorder %s25, 0
    %p283 = por %p281, %p282
    %s285 = sadd.s32 %s284, 1
    %p288 = scmp.eq.s32.totalorder %s19, 1
    %p289 = scmp.ne.s32.totalorder %s284, %s286
    %p290 = scmp.eq.s32.totalorder %s19, 0
    %p291 = por %p289, %p290
    %p292 = scmp.ne.s32.totalorder %s284, %s286
    %p293 = scmp.eq.s32.totalorder %s24, 1
    %p294 = por %p292, %p293
    %p295 = scmp.ne.s32.totalorder %s286, %s287
    %p296 = scmp.eq.s32.totalorder %s24, 0
    %p297 = por %p295, %p296
    %p298 = scmp.ne.s32.totalorder %s286, %s287
    %p299 = scmp.eq.s32.totalorder %s25, 1
    %p300 = por %p298, %p299
    %p302 = scmp.ne.s32.totalorder %s287, %s301
    %p303 = scmp.eq.s32.totalorder %s25, 0
    %p304 = por %p302, %p303
    %s305 = ssub.s32 %s26, %s38
    %s306 = ssub.s32 %s27, %s34
    %s307 = sor.u32 %s305, %s306
    %p308 = scmp.eq.s32.totalorder %s307, 0
    %s310 = sadd.s32 %s309, 1
    %s311 = scalar_select %p308, %s309, %s310
    %p314 = pneg %p308
    %p315 = scmp.eq.s32.totalorder %s19, 1
    %p316 = por %p314, %p315
    %p317 = scmp.ne.s32.totalorder %s309, %s312
    %p318 = scmp.eq.s32.totalorder %s19, 0
    %p319 = por %p317, %p318
    %p320 = scmp.ne.s32.totalorder %s309, %s312
    %p321 = scmp.eq.s32.totalorder %s24, 1
    %p322 = por %p320, %p321
    %p323 = scmp.ne.s32.totalorder %s312, %s313
    %p324 = scmp.eq.s32.totalorder %s24, 0
    %p325 = por %p323, %p324
    %p326 = scmp.ne.s32.totalorder %s312, %s313
    %p327 = scmp.eq.s32.totalorder %s25, 1
    %p328 = por %p326, %p327
    %p330 = scmp.ne.s32.totalorder %s313, %s329
    %p331 = scmp.eq.s32.totalorder %s25, 0
    %p332 = por %p330, %p331
    %s333 = ssub.s32 %s26, %s38
    %s334 = ssub.s32 %s27, %s34
    %s335 = sor.u32 %s333, %s334
    %p336 = scmp.eq.s32.totalorder %s335, 0
    %s338 = sadd.s32 %s337, 1
    %s339 = scalar_select %p336, %s337, %s338
    %p342 = pneg %p336
    %p343 = scmp.eq.s32.totalorder %s19, 1
    %p344 = por %p342, %p343
    %p345 = scmp.ne.s32.totalorder %s337, %s340
    %p346 = scmp.eq.s32.totalorder %s19, 0
    %p347 = por %p345, %p346
    %p348 = scmp.ne.s32.totalorder %s337, %s340
    %p349 = scmp.eq.s32.totalorder %s24, 1
    %p350 = por %p348, %p349
    %p351 = scmp.ne.s32.totalorder %s340, %s341
    %p352 = scmp.eq.s32.totalorder %s24, 0
    %p353 = por %p351, %p352
    %p354 = scmp.ne.s32.totalorder %s340, %s341
    %p355 = scmp.eq.s32.totalorder %s25, 1
    %p356 = por %p354, %p355
    %p358 = scmp.ne.s32.totalorder %s341, %s357
    %p359 = scmp.eq.s32.totalorder %s25, 0
    %p360 = por %p358, %p359
    %p361 = scmp.le.s32.totalorder 1, %s19
    %p362 = scmp.lt.s32.totalorder %s19, 3
    %p363 = pnand %p361, %p362
    %p364 = pneg %p363
    // Predicated region
    $region9: #{ffc_bn_act_forward.7} parent=5 // pred_check
      _
    $region10: #{ffc_bn_act_forward.7} parent=5 // pred_check_branch
      %366 = sbr.rel (%p363) target = $region12
    $region11: #{ffc_bn_act_forward.7} parent=5 // pred_region
      %s367 = ssub.s32 %s19, 1
      // Predicated region
      $region13: #{ffc_bn_act_forward.7} parent=11 // pred_check
        %p368 = pneg %p192
      $region14: #{ffc_bn_act_forward.7} parent=11 // pred_check_branch
        %370 = sbr.rel (%p368) target = $region16
      $region15: #{ffc_bn_act_forward.7} parent=11 // pred_region
        _
      $region16: #{ffc_bn_act_forward.7} parent=11 // pred_fallthru
        _
      // Predicated region
      $region17: #{ffc_bn_act_forward.7} parent=11 // pred_check
        %p371 = pneg %p213
      $region18: #{ffc_bn_act_forward.7} parent=11 // pred_check_branch
        %373 = sbr.rel (%p371) target = $region20
      $region19: #{ffc_bn_act_forward.7} parent=11 // pred_region
        _
      $region20: #{ffc_bn_act_forward.7} parent=11 // pred_fallthru
        _
      // Predicated region
      $region21: #{ffc_bn_act_forward.7} parent=11 // pred_check
        %p374 = pneg %p234
      $region22: #{ffc_bn_act_forward.7} parent=11 // pred_check_branch
        %376 = sbr.rel (%p374) target = $region24
      $region23: #{ffc_bn_act_forward.7} parent=11 // pred_region
        _
      $region24: #{ffc_bn_act_forward.7} parent=11 // pred_fallthru
        _
      // Predicated region
      $region25: #{ffc_bn_act_forward.7} parent=11 // pred_check
        %p377 = pneg %p255
      $region26: #{ffc_bn_act_forward.7} parent=11 // pred_check_branch
        %379 = sbr.rel (%p377) target = $region28
      $region27: #{ffc_bn_act_forward.7} parent=11 // pred_region
        _
      $region28: #{ffc_bn_act_forward.7} parent=11 // pred_fallthru
        _
      // Predicated region
      $region29: #{ffc_bn_act_forward.7} parent=11 // pred_check
        %p380 = pneg %p276
      $region30: #{ffc_bn_act_forward.7} parent=11 // pred_check_branch
        %382 = sbr.rel (%p380) target = $region32
      $region31: #{ffc_bn_act_forward.7} parent=11 // pred_region
        _
      $region32: #{ffc_bn_act_forward.7} parent=11 // pred_fallthru
        _
      // Predicated region
      $region33: #{ffc_bn_act_forward.7} parent=11 // pred_check
        %p383 = pneg %p297
      $region34: #{ffc_bn_act_forward.7} parent=11 // pred_check_branch
        %385 = sbr.rel (%p383) target = $region36
      $region35: #{ffc_bn_act_forward.7} parent=11 // pred_region
        _
      $region36: #{ffc_bn_act_forward.7} parent=11 // pred_fallthru
        _
    $region12: #{ffc_bn_act_forward.7} parent=5 // pred_fallthru
      _
    %p386 = scmp.lt.s32.totalorder %s19, 2
    // Predicated region
    $region37: #{ffc_bn_act_forward.7} parent=5 // pred_check
      %p387 = pneg %p386
    $region38: #{ffc_bn_act_forward.7} parent=5 // pred_check_branch
      %389 = sbr.rel (%p387) target = $region40
    $region39: #{ffc_bn_act_forward.7} parent=5 // pred_region
      // Predicated region
      $region41: #{ffc_bn_act_forward.7} parent=39 // pred_check
        %p390 = pneg %p53
      $region42: #{ffc_bn_act_forward.7} parent=39 // pred_check_branch
        %392 = sbr.rel (%p390) target = $region44
      $region43: #{ffc_bn_act_forward.7} parent=39 // pred_region
        %s393 = smul.u32 2, %s27
        %p394 = scmp.lt.s32.totalorder %s26, 1
        %s395 = scalar_select %p394, %s26, 1
        %p396 = scmp.lt.s32.totalorder %s393, 1
        %s397 = scalar_select %p396, %s393, 1
        %s398 = smul.addr %s395, 2
        %s399 = sadd.s32 %s397, %s398
        %s400 = smul.addr %s399, 4
        %s401 = scalar_lea.vmem %s0, %s400
        %s402 = smul.u32 2, %s27
      $region44: #{ffc_bn_act_forward.7} parent=39 // pred_fallthru
        _
      // Predicated region
      $region45: #{ffc_bn_act_forward.7} parent=39 // pred_check
        %p403 = pneg %p81
      $region46: #{ffc_bn_act_forward.7} parent=39 // pred_check_branch
        %405 = sbr.rel (%p403) target = $region48
      $region47: #{ffc_bn_act_forward.7} parent=39 // pred_region
        %s406 = smul.u32 2, %s27
        %p407 = scmp.lt.s32.totalorder %s26, 1
        %s408 = scalar_select %p407, %s26, 1
        %p409 = scmp.lt.s32.totalorder %s406, 1
        %s410 = scalar_select %p409, %s406, 1
        %s411 = smul.addr %s408, 2
        %s412 = sadd.s32 %s410, %s411
        %s413 = smul.addr %s412, 4
        %s414 = scalar_lea.vmem %s1, %s413
        %s415 = smul.u32 2, %s27
      $region48: #{ffc_bn_act_forward.7} parent=39 // pred_fallthru
        _
      // Predicated region
      $region49: #{ffc_bn_act_forward.7} parent=39 // pred_check
        %p416 = pneg %p109
      $region50: #{ffc_bn_act_forward.7} parent=39 // pred_check_branch
        %418 = sbr.rel (%p416) target = $region52
      $region51: #{ffc_bn_act_forward.7} parent=39 // pred_region
        %s419 = smul.u32 2, %s27
        %p420 = scmp.lt.s32.totalorder %s26, 1
        %s421 = scalar_select %p420, %s26, 1
        %p422 = scmp.lt.s32.totalorder %s419, 1
        %s423 = scalar_select %p422, %s419, 1
        %s424 = smul.addr %s421, 2
        %s425 = sadd.s32 %s423, %s424
        %s426 = smul.addr %s425, 4
        %s427 = scalar_lea.vmem %s2, %s426
        %s428 = smul.u32 2, %s27
      $region52: #{ffc_bn_act_forward.7} parent=39 // pred_fallthru
        _
      // Predicated region
      $region53: #{ffc_bn_act_forward.7} parent=39 // pred_check
        %p429 = pneg %p137
      $region54: #{ffc_bn_act_forward.7} parent=39 // pred_check_branch
        %431 = sbr.rel (%p429) target = $region56
      $region55: #{ffc_bn_act_forward.7} parent=39 // pred_region
        %s432 = smul.u32 2, %s27
        %p433 = scmp.lt.s32.totalorder %s26, 1
        %s434 = scalar_select %p433, %s26, 1
        %p435 = scmp.lt.s32.totalorder %s432, 1
        %s436 = scalar_select %p435, %s432, 1
        %s437 = smul.addr %s434, 2
        %s438 = sadd.s32 %s436, %s437
        %s439 = smul.addr %s438, 8
        %s440 = scalar_lea.vmem %s3, %s439
        %s441 = smul.u32 2, %s27
      $region56: #{ffc_bn_act_forward.7} parent=39 // pred_fallthru
        _
      // Predicated region
      $region57: #{ffc_bn_act_forward.7} parent=39 // pred_check
        %p442 = pneg %p165
      $region58: #{ffc_bn_act_forward.7} parent=39 // pred_check_branch
        %444 = sbr.rel (%p442) target = $region60
      $region59: #{ffc_bn_act_forward.7} parent=39 // pred_region
        %s445 = smul.u32 2, %s27
        %p446 = scmp.lt.s32.totalorder %s26, 1
        %s447 = scalar_select %p446, %s26, 1
        %p448 = scmp.lt.s32.totalorder %s445, 1
        %s449 = scalar_select %p448, %s445, 1
        %s450 = smul.addr %s447, 2
        %s451 = sadd.s32 %s449, %s450
        %s452 = smul.addr %s451, 8
        %s453 = scalar_lea.vmem %s4, %s452
        %s454 = smul.u32 2, %s27
      $region60: #{ffc_bn_act_forward.7} parent=39 // pred_fallthru
        _
    $region40: #{ffc_bn_act_forward.7} parent=5 // pred_fallthru
      _
    %p455 = scmp.le.s32.totalorder 1, %s19
    %p456 = scmp.lt.s32.totalorder %s19, 3
    %p457 = pnand %p455, %p456
    %p458 = pneg %p457
    // Predicated region
    $region61: #{ffc_bn_act_forward.7} parent=5 // pred_check
      _
    $region62: #{ffc_bn_act_forward.7} parent=5 // pred_check_branch
      %460 = sbr.rel (%p457) target = $region64
    $region63: #{ffc_bn_act_forward.7} parent=5 // pred_region
      %s461 = ssub.s32 %s19, 1
      %s462 = smul.u32 2, %s29
      %p463 = scmp.lt.s32.totalorder %s28, 1
      %s464 = scalar_select %p463, %s28, 1
      %p465 = scmp.lt.s32.totalorder %s462, 1
      %s466 = scalar_select %p465, %s462, 1
      %s467 = smul.addr %s464, 2
      %s468 = sadd.s32 %s466, %s467
      %s469 = smul.addr %s468, 4
      %s470 = scalar_lea.vmem %s0, %s469
      %p471 = pneg %p59
      %p472 = pneg %p56
      %s473 = smul.u32 2, %s29
      %p474 = scmp.lt.s32.totalorder %s28, 1
      %s475 = scalar_select %p474, %s28, 1
      %p476 = scmp.lt.s32.totalorder %s473, 1
      %s477 = scalar_select %p476, %s473, 1
      %s478 = smul.addr %s475, 2
      %s479 = sadd.s32 %s477, %s478
      %s480 = smul.addr %s479, 4
      %s481 = scalar_lea.vmem %s1, %s480
      %p482 = pneg %p87
      %p483 = pneg %p84
      %s484 = smul.u32 2, %s29
      %p485 = scmp.lt.s32.totalorder %s28, 1
      %s486 = scalar_select %p485, %s28, 1
      %p487 = scmp.lt.s32.totalorder %s484, 1
      %s488 = scalar_select %p487, %s484, 1
      %s489 = smul.addr %s486, 2
      %s490 = sadd.s32 %s488, %s489
      %s491 = smul.addr %s490, 4
      %s492 = scalar_lea.vmem %s2, %s491
      %p493 = pneg %p115
      %p494 = pneg %p112
      %s495 = smul.u32 2, %s29
      %p496 = scmp.lt.s32.totalorder %s28, 1
      %s497 = scalar_select %p496, %s28, 1
      %p498 = scmp.lt.s32.totalorder %s495, 1
      %s499 = scalar_select %p498, %s495, 1
      %s500 = smul.addr %s497, 2
      %s501 = sadd.s32 %s499, %s500
      %s502 = smul.addr %s501, 8
      %s503 = scalar_lea.vmem %s3, %s502
      %p504 = pneg %p143
      %p505 = pneg %p140
      %s506 = smul.u32 2, %s29
      %p507 = scmp.lt.s32.totalorder %s28, 1
      %s508 = scalar_select %p507, %s28, 1
      %p509 = scmp.lt.s32.totalorder %s506, 1
      %s510 = scalar_select %p509, %s506, 1
      %s511 = smul.addr %s508, 2
      %s512 = sadd.s32 %s510, %s511
      %s513 = smul.addr %s512, 8
      %s514 = scalar_lea.vmem %s4, %s513
      %p515 = pneg %p171
      %p516 = pneg %p168
      %p517 = pneg %p192
      %p518 = pneg %p189
      %p519 = pneg %p213
      %p520 = pneg %p210
      %p521 = pneg %p234
      %p522 = pneg %p231
      %p523 = pneg %p255
      %p524 = pneg %p252
      %p525 = pneg %p276
      %p526 = pneg %p273
      %p527 = pneg %p297
      %p528 = pneg %p294
      %p529 = pneg %p325
      %p530 = pneg %p322
      %s531 = smul.u32 2, %s29
      %p532 = scmp.lt.s32.totalorder %s28, 1
      %s533 = scalar_select %p532, %s28, 1
      %p534 = scmp.lt.s32.totalorder %s531, 1
      %s535 = scalar_select %p534, %s531, 1
      %s536 = smul.addr %s533, 4
      %s537 = sadd.s32 %s535, %s536
      %s538 = smul.addr %s537, 8
      %s539 = scalar_lea.vmem %s11, %s538
      %p540 = pneg %p353
      %p541 = pneg %p350
      %s542 = smul.u32 2, %s29
      %p543 = scmp.lt.s32.totalorder %s28, 1
      %s544 = scalar_select %p543, %s28, 1
      %p545 = scmp.lt.s32.totalorder %s542, 1
      %s546 = scalar_select %p545, %s542, 1
      %s547 = smul.addr %s544, 4
      %s548 = sadd.s32 %s546, %s547
      %s549 = smul.addr %s548, 8
      %s550 = scalar_lea.vmem %s12, %s549
      %s551 = smul.u32 2, %s29
      %p552 = scmp.lt.s32.totalorder %s28, 1
      %s553 = scalar_select %p552, %s28, 1
      %p554 = scmp.lt.s32.totalorder %s551, 1
      %s555 = scalar_select %p554, %s551, 1
      %s556 = smul.addr %s553, 2
      %s557 = sadd.s32 %s555, %s556
      %s558 = smul.addr %s557, 4
      %s559 = scalar_lea.vmem %s0, %s558
      %s560 = smul.u32 2, %s29
      %s561 = smul.u32 2, %s29
      %p562 = scmp.lt.s32.totalorder %s28, 1
      %s563 = scalar_select %p562, %s28, 1
      %p564 = scmp.lt.s32.totalorder %s561, 1
      %s565 = scalar_select %p564, %s561, 1
      %s566 = smul.addr %s563, 2
      %s567 = sadd.s32 %s565, %s566
      %s568 = smul.addr %s567, 4
      %s569 = scalar_lea.vmem %s1, %s568
      %s570 = smul.u32 2, %s29
      %s571 = smul.u32 2, %s29
      %p572 = scmp.lt.s32.totalorder %s28, 1
      %s573 = scalar_select %p572, %s28, 1
      %p574 = scmp.lt.s32.totalorder %s571, 1
      %s575 = scalar_select %p574, %s571, 1
      %s576 = smul.addr %s573, 2
      %s577 = sadd.s32 %s575, %s576
      %s578 = smul.addr %s577, 4
      %s579 = scalar_lea.vmem %s2, %s578
      %s580 = smul.u32 2, %s29
      %s581 = smul.u32 2, %s29
      %p582 = scmp.lt.s32.totalorder %s28, 1
      %s583 = scalar_select %p582, %s28, 1
      %p584 = scmp.lt.s32.totalorder %s581, 1
      %s585 = scalar_select %p584, %s581, 1
      %s586 = smul.addr %s583, 2
      %s587 = sadd.s32 %s585, %s586
      %s588 = smul.addr %s587, 8
      %s589 = scalar_lea.vmem %s3, %s588
      %s590 = smul.u32 2, %s29
      %s591 = smul.u32 2, %s29
      %p592 = scmp.lt.s32.totalorder %s28, 1
      %s593 = scalar_select %p592, %s28, 1
      %p594 = scmp.lt.s32.totalorder %s591, 1
      %s595 = scalar_select %p594, %s591, 1
      %s596 = smul.addr %s593, 2
      %s597 = sadd.s32 %s595, %s596
      %s598 = smul.addr %s597, 8
      %s599 = scalar_lea.vmem %s4, %s598
      %s600 = smul.u32 2, %s29
      %s601 = smul.u32 2, %s29
      %p602 = scmp.lt.s32.totalorder %s28, 1
      %s603 = scalar_select %p602, %s28, 1
      %p604 = scmp.lt.s32.totalorder %s601, 1
      %s605 = scalar_select %p604, %s601, 1
      %s606 = smul.addr %s603, 4
      %s607 = sadd.s32 %s605, %s606
      %s608 = smul.addr %s607, 8
      %s609 = scalar_lea.vmem %s11, %s608
      %s610 = smul.u32 2, %s29
      %s611 = smul.u32 2, %s29
      %p612 = scmp.lt.s32.totalorder %s28, 1
      %s613 = scalar_select %p612, %s28, 1
      %p614 = scmp.lt.s32.totalorder %s611, 1
      %s615 = scalar_select %p614, %s611, 1
      %s616 = smul.addr %s613, 4
      %s617 = sadd.s32 %s615, %s616
      %s618 = smul.addr %s617, 8
      %s619 = scalar_lea.vmem %s12, %s618
      %s620 = smul.u32 2, %s29
      %v622 = vld [vmem:[%s559] sm:$0xff]
      %v623 = vld [vmem:[%s569] sm:$0xff]
      %v624 = vld [vmem:[%s579] sm:$0xff]
      %v625 = vunpack.c.l.bf16 %v624
      %v626 = vunpack.c.h.bf16 %v624
      %v627 = vld [vmem:[%s589] sm:$0xff]
      %v628 = vld [vmem:[%s589 + $0x8] sm:$0xff]
      %v629 = vadd.f32 %v625, %v627
      %v630 = vadd.f32 %v626, %v628
      %v631 = vld [vmem:[%s599] sm:$0xff]
      %v632 = vld [vmem:[%s599 + $0x8] sm:$0xff]
      %v633 = vadd.f32 %v629, %v631
      %v634 = vadd.f32 %v630, %v632
      %v635 = vpack.c.bf16 %v633, %v633
      %v636 = vpack.c.bf16 %v634, %v634
      %v637 = vld [vmem:[%s5] sm:$0xf]
      %v638 = vld [vmem:[%s5 + $0x4] sm:$0xf]
      %v639 = vld [vmem:[%s6] sm:$0xf]
      %v640 = vld [vmem:[%s6 + $0x4] sm:$0xf]
      %v643 = vunpack.c.l.b16 %v639
      %v644 = vunpack.c.l.b16 %v640
      %v645 = vpack.c.b16 %v644, %v643
      %v647 = vunpack.c.l.b16 %v623
      %v648 = vunpack.c.h.b16 %v623
      %v649 = vpack.c.b16 %v647, %v647
      %v650 = vpack.c.b16 %v648, %v648
      %vm651 = vcmask 64512
      %v653 = vsel %vm651, %v645, 0
      %vm655 = vcmask 1043456
      %v657 = vsel %vm655, %v649, 0
      %v660 = vsel %vm655, %v650, 0
      %662 = vmatprep.subr.bf16.mxu0 0
      %663 = vmatpush1.bf16.msra.mxu0 0
      %664 = vmatprep.subr.bf16.mxu0 0
      %665 = vmatpush1.bf16.msra.mxu0 0
      %666 = vmatprep.subr.bf16.mxu0 0
      %667 = vmatpush1.bf16.msra.mxu0 0
      %668 = vmatprep.subr.bf16.mxu0 0
      %669 = vmatpush1.bf16.msra.mxu0 0
      %670 = vmatprep.subr.bf16.mxu0 0
      %671 = vmatpush1.bf16.msra.mxu0 0
      %672 = vmatprep.subr.bf16.mxu0 0
      %673 = vmatpush1.bf16.msra.mxu0 0
      %674 = vmatprep.subr.bf16.mxu0 0
      %675 = vmatpush1.bf16.msra.mxu0 0
      %676 = vmatprep.subr.bf16.mxu0 %v660
      %677 = vmatpush1.bf16.msra.mxu0 %v657
      %678 = vmatprep.subr.bf16.mxu0 0
      %679 = vmatpush2.bf16.msra.mxu0 0
      %680 = vmatprep.subr.bf16.mxu0 0
      %681 = vmatpush2.bf16.msra.mxu0 0
      %682 = vmatprep.subr.bf16.mxu0 0
      %683 = vmatpush2.bf16.msra.mxu0 0
      %684 = vmatprep.subr.bf16.mxu0 0
      %685 = vmatpush2.bf16.msra.mxu0 0
      %686 = vmatprep.subr.bf16.mxu0 0
      %687 = vmatpush2.bf16.msra.mxu0 0
      %688 = vmatprep.subr.bf16.mxu0 0
      %689 = vmatpush2.bf16.msra.mxu0 0
      %690 = vmatprep.subr.bf16.mxu0 0
      %691 = vmatpush2.bf16.msra.mxu0 0
      %692 = vmatprep.subr.bf16.mxu0 0
      %693 = vmatpush2.bf16.msra.mxu0 0
      %694 = vmatprep.mubr.bf16.mxu0 0
      %695 = vmatmul.mubr.bf16.gmra.mxu0 %v653
      %v696 = vpop.f32.mrf.mxu0
      %v697 = vadd.f32 0.0, %v696
      %v698 = vpop.f32.mrf.mxu0
      %v699 = vadd.f32 0.0, %v698
      %v700 = vpop.f32.mrf.mxu0
      %v701 = vadd.f32 0.0, %v700
      %v702 = vpop.f32.mrf.mxu0
      %v703 = vadd.f32 0.0, %v702
      %704 = vdwg.mxu0
      %v707 = vunpack.c.l.b16 %v637
      %v708 = vunpack.c.l.b16 %v638
      %v709 = vpack.c.b16 %v708, %v707
      %v711 = vunpack.c.l.b16 %v622
      %v712 = vunpack.c.h.b16 %v622
      %v713 = vpack.c.b16 %v711, %v711
      %v714 = vpack.c.b16 %v712, %v712
      %v716 = vsel %vm651, %v709, 0
      %v719 = vsel %vm655, %v713, 0
      %v722 = vsel %vm655, %v714, 0
      %724 = vmatprep.subr.bf16.mxu0 0
      %725 = vmatpush1.bf16.msra.mxu0 0
      %726 = vmatprep.subr.bf16.mxu0 0
      %727 = vmatpush1.bf16.msra.mxu0 0
      %728 = vmatprep.subr.bf16.mxu0 0
      %729 = vmatpush1.bf16.msra.mxu0 0
      %730 = vmatprep.subr.bf16.mxu0 0
      %731 = vmatpush1.bf16.msra.mxu0 0
      %732 = vmatprep.subr.bf16.mxu0 0
      %733 = vmatpush1.bf16.msra.mxu0 0
      %734 = vmatprep.subr.bf16.mxu0 0
      %735 = vmatpush1.bf16.msra.mxu0 0
      %736 = vmatprep.subr.bf16.mxu0 0
      %737 = vmatpush1.bf16.msra.mxu0 0
      %738 = vmatprep.subr.bf16.mxu0 %v722
      %739 = vmatpush1.bf16.msra.mxu0 %v719
      %740 = vmatprep.subr.bf16.mxu0 0
      %741 = vmatpush2.bf16.msra.mxu0 0
      %742 = vmatprep.subr.bf16.mxu0 0
      %743 = vmatpush2.bf16.msra.mxu0 0
      %744 = vmatprep.subr.bf16.mxu0 0
      %745 = vmatpush2.bf16.msra.mxu0 0
      %746 = vmatprep.subr.bf16.mxu0 0
      %747 = vmatpush2.bf16.msra.mxu0 0
      %748 = vmatprep.subr.bf16.mxu0 0
      %749 = vmatpush2.bf16.msra.mxu0 0
      %750 = vmatprep.subr.bf16.mxu0 0
      %751 = vmatpush2.bf16.msra.mxu0 0
      %752 = vmatprep.subr.bf16.mxu0 0
      %753 = vmatpush2.bf16.msra.mxu0 0
      %754 = vmatprep.subr.bf16.mxu0 0
      %755 = vmatpush2.bf16.msra.mxu0 0
      %756 = vmatprep.mubr.bf16.mxu0 0
      %757 = vmatmul.mubr.bf16.gmra.mxu0 %v716
      %v758 = vpop.f32.mrf.mxu0
      %v759 = vadd.f32 %v697, %v758
      %v760 = vpop.f32.mrf.mxu0
      %v761 = vadd.f32 %v699, %v760
      %v762 = vpop.f32.mrf.mxu0
      %v763 = vadd.f32 %v701, %v762
      %v764 = vpop.f32.mrf.mxu0
      %v765 = vadd.f32 %v703, %v764
      %766 = vdwg.mxu0
      %v767 = vld [vmem:[%s9] sm:$0xff]
      %v768 = vld [vmem:[%s9 + $0x8] sm:$0xff]
      %770 = vset.pattern.permute.xlu0 0
      %771 = vperm.xlu0 %770, %v767
      %v772 = vpop.permute.xlu0 %771
      %775 = vset.pattern.permute.xlu0 0
      %776 = vperm.xlu0 %775, %v768
      %v777 = vpop.permute.xlu0 %776
      %v779 = vadd.f32 %v759, %v772
      %v780 = vadd.f32 %v761, %v772
      %v781 = vadd.f32 %v763, %v777
      %v782 = vadd.f32 %v765, %v777
      %v783 = vmax.f32 %v779, 0.0
      %v784 = vmax.f32 %v780, 0.0
      %v785 = vmax.f32 %v781, 0.0
      %v786 = vmax.f32 %v782, 0.0
      %v787 = vld [vmem:[%s7] sm:$0xf]
      %v788 = vld [vmem:[%s7 + $0x4] sm:$0xf]
      %v789 = vld [vmem:[%s8] sm:$0xf]
      %v790 = vld [vmem:[%s8 + $0x4] sm:$0xf]
      %v793 = vunpack.c.l.b16 %v789
      %v794 = vunpack.c.l.b16 %v790
      %v795 = vpack.c.b16 %v794, %v793
      %v797 = vsel %vm651, %v795, 0
      %v800 = vsel %vm655, %v635, 0
      %v803 = vsel %vm655, %v636, 0
      %805 = vmatprep.subr.bf16.mxu0 0
      %806 = vmatpush1.bf16.msra.mxu0 0
      %807 = vmatprep.subr.bf16.mxu0 0
      %808 = vmatpush1.bf16.msra.mxu0 0
      %809 = vmatprep.subr.bf16.mxu0 0
      %810 = vmatpush1.bf16.msra.mxu0 0
      %811 = vmatprep.subr.bf16.mxu0 0
      %812 = vmatpush1.bf16.msra.mxu0 0
      %813 = vmatprep.subr.bf16.mxu0 0
      %814 = vmatpush1.bf16.msra.mxu0 0
      %815 = vmatprep.subr.bf16.mxu0 0
      %816 = vmatpush1.bf16.msra.mxu0 0
      %817 = vmatprep.subr.bf16.mxu0 0
      %818 = vmatpush1.bf16.msra.mxu0 0
      %819 = vmatprep.subr.bf16.mxu0 %v803
      %820 = vmatpush1.bf16.msra.mxu0 %v800
      %821 = vmatprep.subr.bf16.mxu0 0
      %822 = vmatpush2.bf16.msra.mxu0 0
      %823 = vmatprep.subr.bf16.mxu0 0
      %824 = vmatpush2.bf16.msra.mxu0 0
      %825 = vmatprep.subr.bf16.mxu0 0
      %826 = vmatpush2.bf16.msra.mxu0 0
      %827 = vmatprep.subr.bf16.mxu0 0
      %828 = vmatpush2.bf16.msra.mxu0 0
      %829 = vmatprep.subr.bf16.mxu0 0
      %830 = vmatpush2.bf16.msra.mxu0 0
      %831 = vmatprep.subr.bf16.mxu0 0
      %832 = vmatpush2.bf16.msra.mxu0 0
      %833 = vmatprep.subr.bf16.mxu0 0
      %834 = vmatpush2.bf16.msra.mxu0 0
      %835 = vmatprep.subr.bf16.mxu0 0
      %836 = vmatpush2.bf16.msra.mxu0 0
      %837 = vmatprep.mubr.bf16.mxu0 0
      %838 = vmatmul.mubr.bf16.gmra.mxu0 %v797
      %v839 = vpop.f32.mrf.mxu0
      %v840 = vadd.f32 0.0, %v839
      %v841 = vpop.f32.mrf.mxu0
      %v842 = vadd.f32 0.0, %v841
      %v843 = vpop.f32.mrf.mxu0
      %v844 = vadd.f32 0.0, %v843
      %v845 = vpop.f32.mrf.mxu0
      %v846 = vadd.f32 0.0, %v845
      %847 = vdwg.mxu0
      %v850 = vunpack.c.l.b16 %v787
      %v851 = vunpack.c.l.b16 %v788
      %v852 = vpack.c.b16 %v851, %v850
      %v854 = vsel %vm651, %v852, 0
      %856 = vmatprep.subr.bf16.mxu0 0
      %857 = vmatpush1.bf16.msra.mxu0 0
      %858 = vmatprep.subr.bf16.mxu0 0
      %859 = vmatpush1.bf16.msra.mxu0 0
      %860 = vmatprep.subr.bf16.mxu0 0
      %861 = vmatpush1.bf16.msra.mxu0 0
      %862 = vmatprep.subr.bf16.mxu0 0
      %863 = vmatpush1.bf16.msra.mxu0 0
      %864 = vmatprep.subr.bf16.mxu0 0
      %865 = vmatpush1.bf16.msra.mxu0 0
      %866 = vmatprep.subr.bf16.mxu0 0
      %867 = vmatpush1.bf16.msra.mxu0 0
      %868 = vmatprep.subr.bf16.mxu0 0
      %869 = vmatpush1.bf16.msra.mxu0 0
      %870 = vmatprep.subr.bf16.mxu0 %v722
      %871 = vmatpush1.bf16.msra.mxu0 %v719
      %872 = vmatprep.subr.bf16.mxu0 0
      %873 = vmatpush2.bf16.msra.mxu0 0
      %874 = vmatprep.subr.bf16.mxu0 0
      %875 = vmatpush2.bf16.msra.mxu0 0
      %876 = vmatprep.subr.bf16.mxu0 0
      %877 = vmatpush2.bf16.msra.mxu0 0
      %878 = vmatprep.subr.bf16.mxu0 0
      %879 = vmatpush2.bf16.msra.mxu0 0
      %880 = vmatprep.subr.bf16.mxu0 0
      %881 = vmatpush2.bf16.msra.mxu0 0
      %882 = vmatprep.subr.bf16.mxu0 0
      %883 = vmatpush2.bf16.msra.mxu0 0
      %884 = vmatprep.subr.bf16.mxu0 0
      %885 = vmatpush2.bf16.msra.mxu0 0
      %886 = vmatprep.subr.bf16.mxu0 0
      %887 = vmatpush2.bf16.msra.mxu0 0
      %888 = vmatprep.mubr.bf16.mxu0 0
      %889 = vmatmul.mubr.bf16.gmra.mxu0 %v854
      %v890 = vpop.f32.mrf.mxu0
      %v891 = vadd.f32 %v840, %v890
      %v892 = vpop.f32.mrf.mxu0
      %v893 = vadd.f32 %v842, %v892
      %v894 = vpop.f32.mrf.mxu0
      %v895 = vadd.f32 %v844, %v894
      %v896 = vpop.f32.mrf.mxu0
      %v897 = vadd.f32 %v846, %v896
      %898 = vdwg.mxu0
      %v899 = vld [vmem:[%s10] sm:$0xff]
      %v900 = vld [vmem:[%s10 + $0x8] sm:$0xff]
      %902 = vset.pattern.permute.xlu0 0
      %903 = vperm.xlu0 %902, %v899
      %v904 = vpop.permute.xlu0 %903
      %907 = vset.pattern.permute.xlu0 0
      %908 = vperm.xlu0 %907, %v900
      %v909 = vpop.permute.xlu0 %908
      %v911 = vadd.f32 %v891, %v904
      %v912 = vadd.f32 %v893, %v904
      %v913 = vadd.f32 %v895, %v909
      %v914 = vadd.f32 %v897, %v909
      %v915 = vmax.f32 %v911, 0.0
      %v916 = vmax.f32 %v912, 0.0
      %v917 = vmax.f32 %v913, 0.0
      %v918 = vmax.f32 %v914, 0.0
      %919 = vst [vmem:[%s609] sm:$0xff] %v783
      %920 = vst [vmem:[%s609 + $0x8] sm:$0xff] %v784
      %921 = vst [vmem:[%s609 + $0x10] sm:$0xff] %v785
      %922 = vst [vmem:[%s609 + $0x18] sm:$0xff] %v786
      %923 = vst [vmem:[%s619] sm:$0xff] %v915
      %924 = vst [vmem:[%s619 + $0x8] sm:$0xff] %v916
      %925 = vst [vmem:[%s619 + $0x10] sm:$0xff] %v917
      %926 = vst [vmem:[%s619 + $0x18] sm:$0xff] %v918
      %s927 = smul.u32 2, %s29
      %p928 = scmp.lt.s32.totalorder %s28, 1
      %s929 = scalar_select %p928, %s28, 1
      %p930 = scmp.lt.s32.totalorder %s927, 1
      %s931 = scalar_select %p930, %s927, 1
      %s932 = smul.addr %s929, 4
      %s933 = sadd.s32 %s931, %s932
      %s934 = smul.addr %s933, 8
      %s935 = scalar_lea.vmem %s11, %s934
      %s936 = smul.u32 2, %s29
      %p937 = scmp.lt.s32.totalorder %s28, 1
      %s938 = scalar_select %p937, %s28, 1
      %p939 = scmp.lt.s32.totalorder %s936, 1
      %s940 = scalar_select %p939, %s936, 1
      %s941 = smul.addr %s938, 4
      %s942 = sadd.s32 %s940, %s941
      %s943 = smul.addr %s942, 8
      %s944 = scalar_lea.vmem %s12, %s943
      // Predicated region
      $region65: #{ffc_bn_act_forward.7} parent=63 // pred_check
        %p945 = pneg %p322
      $region66: #{ffc_bn_act_forward.7} parent=63 // pred_check_branch
        %947 = sbr.rel (%p945) target = $region68
      $region67: #{ffc_bn_act_forward.7} parent=63 // pred_region
        %s948 = smul.u32 2, %s29
      $region68: #{ffc_bn_act_forward.7} parent=63 // pred_fallthru
        _
      // Predicated region
      $region69: #{ffc_bn_act_forward.7} parent=63 // pred_check
        %p949 = pneg %p350
      $region70: #{ffc_bn_act_forward.7} parent=63 // pred_check_branch
        %951 = sbr.rel (%p949) target = $region72
      $region71: #{ffc_bn_act_forward.7} parent=63 // pred_region
        %s952 = smul.u32 2, %s29
      $region72: #{ffc_bn_act_forward.7} parent=63 // pred_fallthru
        _
    $region64: #{ffc_bn_act_forward.7} parent=5 // pred_fallthru
      _
    %p953 = scmp.le.s32.totalorder 2, %s19
    // Predicated region
    $region73: #{ffc_bn_act_forward.7} parent=5 // pred_check
      %p954 = pneg %p953
    $region74: #{ffc_bn_act_forward.7} parent=5 // pred_check_branch
      %956 = sbr.rel (%p954) target = $region76
    $region75: #{ffc_bn_act_forward.7} parent=5 // pred_region
      %s957 = ssub.s32 %s19, 2
      // Predicated region
      $region77: #{ffc_bn_act_forward.7} parent=75 // pred_check
        %p958 = pneg %p328
      $region78: #{ffc_bn_act_forward.7} parent=75 // pred_check_branch
        %960 = sbr.rel (%p958) target = $region80
      $region79: #{ffc_bn_act_forward.7} parent=75 // pred_region
        %s961 = smul.u32 2, %s31
        %p962 = scmp.lt.s32.totalorder %s30, 1
        %s963 = scalar_select %p962, %s30, 1
        %p964 = scmp.lt.s32.totalorder %s961, 1
        %s965 = scalar_select %p964, %s961, 1
        %s966 = smul.addr %s963, 4
        %s967 = sadd.s32 %s965, %s966
        %s968 = smul.addr %s967, 8
        %s969 = scalar_lea.vmem %s11, %s968
      $region80: #{ffc_bn_act_forward.7} parent=75 // pred_fallthru
        _
      // Predicated region
      $region81: #{ffc_bn_act_forward.7} parent=75 // pred_check
        %p970 = pneg %p356
      $region82: #{ffc_bn_act_forward.7} parent=75 // pred_check_branch
        %972 = sbr.rel (%p970) target = $region84
      $region83: #{ffc_bn_act_forward.7} parent=75 // pred_region
        %s973 = smul.u32 2, %s31
        %p974 = scmp.lt.s32.totalorder %s30, 1
        %s975 = scalar_select %p974, %s30, 1
        %p976 = scmp.lt.s32.totalorder %s973, 1
        %s977 = scalar_select %p976, %s973, 1
        %s978 = smul.addr %s975, 4
        %s979 = sadd.s32 %s977, %s978
        %s980 = smul.addr %s979, 8
        %s981 = scalar_lea.vmem %s12, %s980
      $region84: #{ffc_bn_act_forward.7} parent=75 // pred_fallthru
        _
    $region76: #{ffc_bn_act_forward.7} parent=5 // pred_fallthru
      _
  $region6: #{ffc_bn_act_forward.7} parent=0 // loop_footer
    %s23 = sadd.s32 1, %s19
  $region7: #{ffc_bn_act_forward.7} parent=0 // loop_footer_branch
    %18 = sbr.rel target = $region3
  $region8: #{ffc_bn_act_forward.7} parent=0 // loop_exit
    _

</llo_original>
